<compile_context>
chip_gen: v7x
topology: tpu7x:2x2x1
jax: 0.10.0
libtpu: 0.0.40
codegen_flags: <defaults>
</compile_context>

<pallas_src>
import jax
import jax.numpy as jnp
import numpy as np
from jax import lax
from jax.experimental import pallas as pl
from jax.experimental.pallas import tpu as pltpu

EPS = 1e-5


# ---------------------------------------------------------------------------
# tiling / budget helpers
# ---------------------------------------------------------------------------
def _largest_divisor_leq(n, cap):
    cap = max(1, min(cap, n))
    for d in range(cap, 0, -1):
        if n % d == 0:
            return d
    return 1


def _pick_row_tile(m, cap):
    """Largest 8-aligned divisor of m that is <= cap, else the full extent."""
    cap = max(1, min(cap, m))
    for d in range(cap, 0, -1):
        if m % d == 0 and d % 8 == 0:
            return d
    return m


def _vmem_limit(per_step_bytes):
    # 4x covers double-buffered in/out blocks + compiler scratch.  48 MiB cap
    # leaves headroom under v7x's 64 MiB/TC; on v5e/v6e (128 MiB physical) the
    # cap can be raised toward ~100 MiB if larger tiles are wanted.
    return int(min(max(4 * per_step_bytes, 16 << 20), 48 << 20))


def _combine_stats(stats, rows_per_tile):
    """Chan's parallel combine of equal-size per-tile (mean, M2) -> (mu, var).

    Avoids the catastrophic cancellation of E[x^2] - E[x]^2.  `stats` is
    (T, 2, C); variance is biased, matching BatchNorm's normalization.
    """
    means = stats[:, 0, :]                       # (T, C)
    m2s = stats[:, 1, :]                         # (T, C)
    mu = jnp.mean(means, axis=0)
    m2 = jnp.sum(m2s, axis=0) + rows_per_tile * jnp.sum((means - mu) ** 2, axis=0)
    var = m2 / (stats.shape[0] * rows_per_tile)
    return mu, var


# ---------------------------------------------------------------------------
# pass 1: 1x1 conv (two accumulating matmuls) + per-tile BN1 stats
# ---------------------------------------------------------------------------
def _conv1_stats_kernel(g_ref, f_ref, w1g_ref, w1f_ref, b1_ref,
                        h_ref, stats_ref):
    # concat([g, f], channel) @ W1  ==  g @ W1g + f @ W1f  (no lane concat).
    h = jnp.dot(g_ref[...], w1g_ref[...], preferred_element_type=jnp.float32)
    h = h + jnp.dot(f_ref[...], w1f_ref[...], preferred_element_type=jnp.float32)
    h = h + b1_ref[...]
    h_ref[...] = h

    mu = jnp.mean(h, axis=0, keepdims=True)                      # (1, C)
    m2 = jnp.sum((h - mu) * (h - mu), axis=0, keepdims=True)     # (1, C)
    stats_ref[...] = jnp.concatenate([mu, m2], axis=0).reshape(1, 2, -1)


# ---------------------------------------------------------------------------
# pass 2: BN1+ReLU + 3x3 conv (nine accumulating matmuls) + per-tile BN2 stats
# ---------------------------------------------------------------------------
def _bn1_conv2_stats_kernel(hmid_ref, htop_ref, hbot_ref, w2_ref, b2_ref,
                            scale1_ref, shift1_ref,
                            y_ref, stats_ref, pad_ref):
    _, TH, W, C = hmid_ref.shape
    t = pl.program_id(1)
    nt = pl.num_programs(1)

    scale = scale1_ref[...]                      # (1, C), broadcasts on (.., W, C)
    shift = shift1_ref[...]
    bn1_relu = lambda x: jnp.maximum(x * scale + shift, 0.0)

    mid = bn1_relu(hmid_ref[...].reshape(TH, W, C))
    top = bn1_relu(htop_ref[...].reshape(1, W, C))
    bot = bn1_relu(hbot_ref[...].reshape(1, W, C))
    # Halo rows come from the neighbouring H-tile (1-row BlockSpecs); at the
    # image top/bottom they are the conv's zero padding instead.
    top = jnp.where(t == 0, 0.0, top)
    bot = jnp.where(t == nt - 1, 0.0, bot)

    # Zero-padded activation tile staged in VMEM scratch (per tile, small).
    # TODO(synk): stage this scratch in bf16 once packed-dtype unaligned
    # sublane slices are verified on the target toolchain (halves vld bytes).
    pad_ref[1:TH + 1, 1:W + 1, :] = mid
    pad_ref[0:1, 1:W + 1, :] = top
    pad_ref[TH + 1:TH + 2, 1:W + 1, :] = bot
    zcol = jnp.zeros((TH + 2, 1, C), jnp.float32)
    pad_ref[:, 0:1, :] = zcol
    pad_ref[:, W + 1:W + 2, :] = zcol

    # 3x3 conv as nine accumulating K=C matmuls (bf16 operands, f32 MXU acc):
    # no materialized (rows, 9C) im2col buffer.
    acc = jnp.zeros((TH * W, C), jnp.float32)
    for dy in range(3):
        for dx in range(3):
            patch = pad_ref[dy:dy + TH, dx:dx + W, :].reshape(TH * W, C)
            acc = acc + jnp.dot(patch.astype(jnp.bfloat16),
                                w2_ref[dy * 3 + dx],
                                preferred_element_type=jnp.float32)
    acc = acc + b2_ref[...]

    y_ref[...] = acc.reshape(1, TH, W, C)

    mu = jnp.mean(acc, axis=0, keepdims=True)
    m2 = jnp.sum((acc - mu) * (acc - mu), axis=0, keepdims=True)
    stats_ref[...] = jnp.concatenate([mu, m2], axis=0).reshape(1, 1, 2, C)


# ---------------------------------------------------------------------------
# pass 3: BN2 + ReLU epilogue on a lane-dense (N*H, W*C) view
# ---------------------------------------------------------------------------
def _bn2_relu_kernel(y_ref, scale_ref, shift_ref, o_ref):
    o_ref[...] = jnp.maximum(y_ref[...] * scale_ref[...] + shift_ref[...], 0.0)


# ---------------------------------------------------------------------------
# wrapper (NCHW in / NCHW out, like the PyTorch module; training-mode BN)
# ---------------------------------------------------------------------------
@jax.jit
def hlayer_forward(prevG, f, w1, b1, gm1, bt1, w2, b2, gm2, bt2):
    N, Cg, H, W = prevG.shape
    Cf = f.shape[1]
    C = w1.shape[0]
    M = N * H * W

    # Boundary transposes kept only for PyTorch NCHW interface parity.
    g2d = jnp.transpose(prevG, (0, 2, 3, 1)).reshape(M, Cg).astype(jnp.bfloat16)
    f2d = jnp.transpose(f, (0, 2, 3, 1)).reshape(M, Cf).astype(jnp.bfloat16)

    # Parameter prep: PyTorch layouts -> MXU layouts.
    w1_mat = jnp.transpose(w1[:, :, 0, 0], (1, 0)).astype(jnp.bfloat16)  # (Cg+Cf, C)
    w1g, w1f = w1_mat[:Cg], w1_mat[Cg:]
    w2_k = jnp.transpose(w2, (2, 3, 1, 0)).reshape(9, C, C).astype(jnp.bfloat16)
    row = lambda v: v.reshape(1, C).astype(jnp.float32)
    b1r, b2r = row(b1), row(b2)

    # ---------------- pass 1: conv1x1 + BN1 partial stats ----------------
    tm = _pick_row_tile(M, min(1024, max(M // 2, 8)))
    t1 = M // tm
    blk1 = tm * (Cg + Cf) * 2 + 2 * tm * C * 4 + (Cg + Cf) * C * 2 + 3 * C * 4
    h_flat, stats1 = pl.pallas_call(
        _conv1_stats_kernel,
        out_shape=(jax.ShapeDtypeStruct((M, C), jnp.float32),
                   jax.ShapeDtypeStruct((t1, 2, C), jnp.float32)),
        grid_spec=pltpu.PrefetchScalarGridSpec(
            num_scalar_prefetch=0,
            grid=(t1,),
            in_specs=[
                pl.BlockSpec((tm, Cg), lambda i: (i, 0)),
                pl.BlockSpec((tm, Cf), lambda i: (i, 0)),
                pl.BlockSpec((Cg, C), lambda i: (0, 0)),
                pl.BlockSpec((Cf, C), lambda i: (0, 0)),
                pl.BlockSpec((1, C), lambda i: (0, 0)),
            ],
            out_specs=[
                pl.BlockSpec((tm, C), lambda i: (i, 0)),
                pl.BlockSpec((1, 2, C), lambda i: (i, 0, 0)),
            ]),
        compiler_params=pltpu.CompilerParams(
            dimension_semantics=("parallel",),
            vmem_limit_bytes=_vmem_limit(blk1)),
    )(g2d, f2d, w1g, w1f, b1r)

    mu1, var1 = _combine_stats(stats1, tm)
    rstd1 = lax.rsqrt(var1 + EPS)
    scale1 = (gm1 * rstd1).reshape(1, C).astype(jnp.float32)
    shift1 = (bt1 - mu1 * gm1 * rstd1).reshape(1, C).astype(jnp.float32)

    # ------------- pass 2: BN1+ReLU + conv3x3 + BN2 partial stats --------
    h_nhwc = h_flat.reshape(N, H, W, C)
    th = _largest_divisor_leq(H, min(max(H // 2, 1), max(4096 // W, 1)))
    nt = H // th
    blk2 = (2 * th * W * C * 4 + 2 * W * C * 4
            + (th + 2) * (W + 2) * C * 4 + 9 * C * C * 2 + 4 * C * 4)
    y_pre, stats2 = pl.pallas_call(
        _bn1_conv2_stats_kernel,
        out_shape=(jax.ShapeDtypeStruct((N, H, W, C), jnp.float32),
                   jax.ShapeDtypeStruct((N, nt, 2, C), jnp.float32)),
        grid_spec=pltpu.PrefetchScalarGridSpec(
            num_scalar_prefetch=0,
            grid=(N, nt),
            in_specs=[
                pl.BlockSpec((1, th, W, C), lambda n, t: (n, t, 0, 0)),
                pl.BlockSpec((1, 1, W, C),
                             lambda n, t: (n, jnp.maximum(t * th - 1, 0), 0, 0)),
                pl.BlockSpec((1, 1, W, C),
                             lambda n, t: (n, jnp.minimum(t * th + th, H - 1), 0, 0)),
                pl.BlockSpec((9, C, C), lambda n, t: (0, 0, 0)),
                pl.BlockSpec((1, C), lambda n, t: (0, 0)),
                pl.BlockSpec((1, C), lambda n, t: (0, 0)),
                pl.BlockSpec((1, C), lambda n, t: (0, 0)),
            ],
            out_specs=[
                pl.BlockSpec((1, th, W, C), lambda n, t: (n, t, 0, 0)),
                pl.BlockSpec((1, 1, 2, C), lambda n, t: (n, t, 0, 0)),
            ],
            scratch_shapes=[pltpu.VMEM((th + 2, W + 2, C), jnp.float32)]),
        compiler_params=pltpu.CompilerParams(
            dimension_semantics=("parallel", "parallel"),
            vmem_limit_bytes=_vmem_limit(blk2)),
    )(h_nhwc, h_nhwc, h_nhwc, w2_k, b2r, scale1, shift1)

    mu2, var2 = _combine_stats(stats2.reshape(N * nt, 2, C), th * W)
    rstd2 = lax.rsqrt(var2 + EPS)
    scale2 = gm2 * rstd2
    shift2 = bt2 - mu2 * scale2
    # Lane-dense epilogue layout: (N*H, W*C) so stores are full 128-lane vst
    # even for small C; per-channel affine is pre-tiled across W.
    lane = W * C
    scale2_l = jnp.tile(scale2.astype(jnp.float32), W).reshape(1, lane)
    shift2_l = jnp.tile(shift2.astype(jnp.float32), W).reshape(1, lane)

    # ---------------- pass 3: BN2 + ReLU epilogue -------------------------
    rows = N * H
    tr = _pick_row_tile(rows, min(1024, max(rows // 2, 8)))
    t3 = rows // tr
    blk3 = 2 * tr * lane * 4 + 2 * lane * 4
    out2d = pl.pallas_call(
        _bn2_relu_kernel,
        out_shape=jax.ShapeDtypeStruct((rows, lane), jnp.float32),
        grid_spec=pltpu.PrefetchScalarGridSpec(
            num_scalar_prefetch=0,
            grid=(t3,),
            in_specs=[
                pl.BlockSpec((tr, lane), lambda i: (i, 0)),
                pl.BlockSpec((1, lane), lambda i: (0, 0)),
                pl.BlockSpec((1, lane), lambda i: (0, 0)),
            ],
            out_specs=pl.BlockSpec((tr, lane), lambda i: (i, 0))),
        compiler_params=pltpu.CompilerParams(
            dimension_semantics=("parallel",),
            vmem_limit_bytes=_vmem_limit(blk3)),
    )(y_pre.reshape(rows, lane), scale2_l, shift2_l)

    out_nhwc = out2d.reshape(N, H, W, C)
    return jnp.transpose(out_nhwc, (0, 3, 1, 2))


# ---------------------------------------------------------------------------
# pure-JAX NCHW reference (training-mode BatchNorm, like the PyTorch forward)
# ---------------------------------------------------------------------------
def _reference_nchw(prevG, f, w1, b1, gm1, bt1, w2, b2, gm2, bt2):
    x = jnp.concatenate([prevG, f], axis=1)
    h = lax.conv_general_dilated(x, w1, (1, 1), 'VALID',
                                 dimension_numbers=('NCHW', 'OIHW', 'NCHW'))
    h = h + b1.reshape(1, -1, 1, 1)
    mu = jnp.mean(h, axis=(0, 2, 3), keepdims=True)
    var = jnp.var(h, axis=(0, 2, 3), keepdims=True)
    h = (h - mu) * lax.rsqrt(var + EPS) * gm1.reshape(1, -1, 1, 1) \
        + bt1.reshape(1, -1, 1, 1)
    h = jnp.maximum(h, 0.0)

    y = lax.conv_general_dilated(h, w2, (1, 1), ((1, 1), (1, 1)),
                                 dimension_numbers=('NCHW', 'OIHW', 'NCHW'))
    y = y + b2.reshape(1, -1, 1, 1)
    mu2 = jnp.mean(y, axis=(0, 2, 3), keepdims=True)
    var2 = jnp.var(y, axis=(0, 2, 3), keepdims=True)
    y = (y - mu2) * lax.rsqrt(var2 + EPS) * gm2.reshape(1, -1, 1, 1) \
        + bt2.reshape(1, -1, 1, 1)
    return jnp.maximum(y, 0.0)


if __name__ == "__main__":
    key = jax.random.PRNGKey(0)
    ks = jax.random.split(key, 12)

    N, H, W = 2, 16, 16
    Cg, Cf, Cout = 4, 4, 8          # inputChannels = Cg + Cf = 8, outputChannels = 8

    prevG = jax.random.normal(ks[0], (N, Cg, H, W), jnp.float32)
    fmap = jax.random.normal(ks[1], (N, Cf, H, W), jnp.float32)

    # Synthetic parameters in PyTorch layouts (nn.Conv2d / nn.BatchNorm2d).
    w1 = 0.1 * jax.random.normal(ks[2], (Cout, Cg + Cf, 1, 1), jnp.float32)
    b1 = 0.1 * jax.random.normal(ks[3], (Cout,), jnp.float32)
    gm1 = 1.0 + 0.1 * jax.random.normal(ks[4], (Cout,), jnp.float32)
    bt1 = 0.1 * jax.random.normal(ks[5], (Cout,), jnp.float32)
    w2 = 0.1 * jax.random.normal(ks[6], (Cout, Cout, 3, 3), jnp.float32)
    b2 = 0.1 * jax.random.normal(ks[7], (Cout,), jnp.float32)
    gm2 = 1.0 + 0.1 * jax.random.normal(ks[8], (Cout,), jnp.float32)
    bt2 = 0.1 * jax.random.normal(ks[9], (Cout,), jnp.float32)

    out = hlayer_forward(prevG, fmap, w1, b1, gm1, bt1, w2, b2, gm2, bt2)
    out = jax.block_until_ready(out)

    ref = _reference_nchw(prevG, fmap, w1, b1, gm1, bt1, w2, b2, gm2, bt2)
    # Tolerance sized for bf16 MXU operands with f32 accumulation.
    np.testing.assert_allclose(np.asarray(out), np.asarray(ref),
                               rtol=2e-2, atol=2e-2)

    print("KERNEL_OK")
</pallas_src>

<mosaic_0001>
module attributes {stable_mosaic.version = 11 : i64} {
  func.func @_conv1_stats_kernel(%arg0: i32, %arg1: memref<256x4xbf16, #tpu.memory_space<vmem>>, %arg2: memref<256x4xbf16, #tpu.memory_space<vmem>>, %arg3: memref<4x8xbf16, #tpu.memory_space<vmem>>, %arg4: memref<4x8xbf16, #tpu.memory_space<vmem>>, %arg5: memref<1x8xf32, #tpu.memory_space<vmem>>, %arg6: memref<256x8xf32, #tpu.memory_space<vmem>>, %arg7: memref<1x2x8xf32, #tpu.memory_space<vmem>>) attributes {dimension_semantics = [#tpu.dimension_semantics<parallel>], iteration_bounds = array<i64: 2>, scalar_prefetch = 0 : i64, scratch_operands = 0 : i64, tpu.core_type = #tpu.core_type<tc>, window_params = [{transform_indices = @transform_0, window_bounds = array<i64: 256, 4>}, {transform_indices = @transform_1, window_bounds = array<i64: 256, 4>}, {pipeline_mode = #tpu.pipeline_mode<synchronous>, transform_indices = @transform_2, window_bounds = array<i64: 4, 8>}, {pipeline_mode = #tpu.pipeline_mode<synchronous>, transform_indices = @transform_3, window_bounds = array<i64: 4, 8>}, {pipeline_mode = #tpu.pipeline_mode<synchronous>, transform_indices = @transform_4, window_bounds = array<i64: 1, 8>}, {transform_indices = @transform_5, window_bounds = array<i64: 256, 8>}, {transform_indices = @transform_6, window_bounds = array<i64: 1, 2, 8>}]} {
    %c0 = arith.constant 0 : index
    %c0_0 = arith.constant 0 : index
    %0 = vector.load %arg1[%c0, %c0_0] : memref<256x4xbf16, #tpu.memory_space<vmem>>, vector<256x4xbf16>
    %c0_1 = arith.constant 0 : index
    %c0_2 = arith.constant 0 : index
    %1 = vector.load %arg3[%c0_1, %c0_2] : memref<4x8xbf16, #tpu.memory_space<vmem>>, vector<4x8xbf16>
    %cst = arith.constant dense<0.000000e+00> : vector<256x8xf32>
    %2 = tpu.matmul %0, %1, %cst {dimension_numbers = #tpu.dot_dimension_numbers<[1], [0], [0], [1], [0, 0, 1, 1], [], []>} : vector<256x4xbf16>, vector<4x8xbf16>, vector<256x8xf32> -> vector<256x8xf32>
    %c0_3 = arith.constant 0 : index
    %c0_4 = arith.constant 0 : index
    %3 = vector.load %arg2[%c0_3, %c0_4] : memref<256x4xbf16, #tpu.memory_space<vmem>>, vector<256x4xbf16>
    %c0_5 = arith.constant 0 : index
    %c0_6 = arith.constant 0 : index
    %4 = vector.load %arg4[%c0_5, %c0_6] : memref<4x8xbf16, #tpu.memory_space<vmem>>, vector<4x8xbf16>
    %cst_7 = arith.constant dense<0.000000e+00> : vector<256x8xf32>
    %5 = tpu.matmul %3, %4, %cst_7 {dimension_numbers = #tpu.dot_dimension_numbers<[1], [0], [0], [1], [0, 0, 1, 1], [], []>} : vector<256x4xbf16>, vector<4x8xbf16>, vector<256x8xf32> -> vector<256x8xf32>
    %6 = arith.addf %2, %5 : vector<256x8xf32>
    %c0_8 = arith.constant 0 : index
    %c0_9 = arith.constant 0 : index
    %7 = vector.load %arg5[%c0_8, %c0_9] : memref<1x8xf32, #tpu.memory_space<vmem>>, vector<1x8xf32>
    %8 = vector.broadcast %7 : vector<1x8xf32> to vector<256x8xf32>
    %9 = arith.addf %6, %8 : vector<256x8xf32>
    %c0_10 = arith.constant 0 : index
    %c0_11 = arith.constant 0 : index
    %10 = vector.load %arg6[%c0_10, %c0_11] : memref<256x8xf32, #tpu.memory_space<vmem>>, vector<256x8xf32>
    tpu.vector_store %arg6[%c0_10, %c0_11], %9 {strides = array<i32>} : memref<256x8xf32, #tpu.memory_space<vmem>>, vector<256x8xf32>,
    %cst_12 = arith.constant dense<0.000000e+00> : vector<8xf32>
    %11 = vector.multi_reduction <add>, %9, %cst_12 [0] : vector<256x8xf32> to vector<8xf32>
    %12 = vector.shape_cast %11 : vector<8xf32> to vector<1x8xf32>
    %cst_13 = arith.constant 2.560000e+02 : f32
    %13 = vector.broadcast %cst_13 : f32 to vector<1x8xf32>
    %14 = arith.divf %12, %13 : vector<1x8xf32>
    %15 = vector.broadcast %14 : vector<1x8xf32> to vector<256x8xf32>
    %16 = arith.subf %9, %15 : vector<256x8xf32>
    %17 = vector.broadcast %14 : vector<1x8xf32> to vector<256x8xf32>
    %18 = arith.subf %9, %17 : vector<256x8xf32>
    %19 = arith.mulf %16, %18 : vector<256x8xf32>
    %cst_14 = arith.constant dense<0.000000e+00> : vector<8xf32>
    %20 = vector.multi_reduction <add>, %19, %cst_14 [0] : vector<256x8xf32> to vector<8xf32>
    %21 = vector.shape_cast %20 : vector<8xf32> to vector<1x8xf32>
    %22 = tpu.concatenate %14, %21 in 0 : vector<1x8xf32>, vector<1x8xf32> -> vector<2x8xf32>
    %23 = vector.shape_cast %22 : vector<2x8xf32> to vector<1x2x8xf32>
    %c0_15 = arith.constant 0 : index
    %c0_16 = arith.constant 0 : index
    %c0_17 = arith.constant 0 : index
    %24 = vector.load %arg7[%c0_15, %c0_16, %c0_17] : memref<1x2x8xf32, #tpu.memory_space<vmem>>, vector<1x2x8xf32>
    tpu.vector_store %arg7[%c0_15, %c0_16, %c0_17], %23 {strides = array<i32>} : memref<1x2x8xf32, #tpu.memory_space<vmem>>, vector<1x2x8xf32>,
    return
  }
  func.func @transform_0(%arg0: i32) -> (i32, i32) {
    %c0_i32 = arith.constant 0 : i32
    %c0_i32_0 = arith.constant 0 : i32
    return %arg0, %c0_i32 : i32, i32
  }
  func.func @transform_1(%arg0: i32) -> (i32, i32) {
    %c0_i32 = arith.constant 0 : i32
    %c0_i32_0 = arith.constant 0 : i32
    return %arg0, %c0_i32 : i32, i32
  }
  func.func @transform_2(%arg0: i32) -> (i32, i32) {
    %c0_i32 = arith.constant 0 : i32
    %c0_i32_0 = arith.constant 0 : i32
    %c0_i32_1 = arith.constant 0 : i32
    return %c0_i32, %c0_i32_0 : i32, i32
  }
  func.func @transform_3(%arg0: i32) -> (i32, i32) {
    %c0_i32 = arith.constant 0 : i32
    %c0_i32_0 = arith.constant 0 : i32
    %c0_i32_1 = arith.constant 0 : i32
    return %c0_i32, %c0_i32_0 : i32, i32
  }
  func.func @transform_4(%arg0: i32) -> (i32, i32) {
    %c0_i32 = arith.constant 0 : i32
    %c0_i32_0 = arith.constant 0 : i32
    %c0_i32_1 = arith.constant 0 : i32
    return %c0_i32, %c0_i32_0 : i32, i32
  }
  func.func @transform_5(%arg0: i32) -> (i32, i32) {
    %c0_i32 = arith.constant 0 : i32
    %c0_i32_0 = arith.constant 0 : i32
    return %arg0, %c0_i32 : i32, i32
  }
  func.func @transform_6(%arg0: i32) -> (i32, i32, i32) {
    %c0_i32 = arith.constant 0 : i32
    %c0_i32_0 = arith.constant 0 : i32
    %c0_i32_1 = arith.constant 0 : i32
    return %arg0, %c0_i32, %c0_i32_0 : i32, i32, i32
  }
}

module attributes {stable_mosaic.version = 11 : i64} {
  func.func @_bn1_conv2_stats_kernel(%arg0: i32, %arg1: i32, %arg2: memref<1x8x16x8xf32, #tpu.memory_space<vmem>>, %arg3: memref<1x1x16x8xf32, #tpu.memory_space<vmem>>, %arg4: memref<1x1x16x8xf32, #tpu.memory_space<vmem>>, %arg5: memref<9x8x8xbf16, #tpu.memory_space<vmem>>, %arg6: memref<1x8xf32, #tpu.memory_space<vmem>>, %arg7: memref<1x8xf32, #tpu.memory_space<vmem>>, %arg8: memref<1x8xf32, #tpu.memory_space<vmem>>, %arg9: memref<1x8x16x8xf32, #tpu.memory_space<vmem>>, %arg10: memref<1x1x2x8xf32, #tpu.memory_space<vmem>>, %arg11: memref<10x18x8xf32, #tpu.memory_space<vmem>>) attributes {dimension_semantics = [#tpu.dimension_semantics<parallel>, #tpu.dimension_semantics<parallel>], iteration_bounds = array<i64: 2, 2>, scalar_prefetch = 0 : i64, scratch_operands = 1 : i64, tpu.core_type = #tpu.core_type<tc>, window_params = [{transform_indices = @transform_0, window_bounds = array<i64: 1, 8, 16, 8>}, {transform_indices = @transform_1, window_bounds = array<i64: 1, 1, 16, 8>}, {transform_indices = @transform_2, window_bounds = array<i64: 1, 1, 16, 8>}, {pipeline_mode = #tpu.pipeline_mode<synchronous>, transform_indices = @transform_3, window_bounds = array<i64: 9, 8, 8>}, {pipeline_mode = #tpu.pipeline_mode<synchronous>, transform_indices = @transform_4, window_bounds = array<i64: 1, 8>}, {pipeline_mode = #tpu.pipeline_mode<synchronous>, transform_indices = @transform_5, window_bounds = array<i64: 1, 8>}, {pipeline_mode = #tpu.pipeline_mode<synchronous>, transform_indices = @transform_6, window_bounds = array<i64: 1, 8>}, {transform_indices = @transform_7, window_bounds = array<i64: 1, 8, 16, 8>}, {transform_indices = @transform_8, window_bounds = array<i64: 1, 1, 2, 8>}]} {
    %c0 = arith.constant 0 : index
    %c0_0 = arith.constant 0 : index
    %0 = vector.load %arg7[%c0, %c0_0] : memref<1x8xf32, #tpu.memory_space<vmem>>, vector<1x8xf32>
    %c0_1 = arith.constant 0 : index
    %c0_2 = arith.constant 0 : index
    %1 = vector.load %arg8[%c0_1, %c0_2] : memref<1x8xf32, #tpu.memory_space<vmem>>, vector<1x8xf32>
    %c0_3 = arith.constant 0 : index
    %c0_4 = arith.constant 0 : index
    %c0_5 = arith.constant 0 : index
    %c0_6 = arith.constant 0 : index
    %2 = vector.load %arg2[%c0_3, %c0_4, %c0_5, %c0_6] : memref<1x8x16x8xf32, #tpu.memory_space<vmem>>, vector<1x8x16x8xf32>
    %3 = vector.shape_cast %2 : vector<1x8x16x8xf32> to vector<8x16x8xf32>
    %4 = vector.shape_cast %0 : vector<1x8xf32> to vector<1x1x8xf32>
    %5 = vector.broadcast %4 : vector<1x1x8xf32> to vector<8x16x8xf32>
    %6 = arith.mulf %3, %5 : vector<8x16x8xf32>
    %7 = vector.shape_cast %1 : vector<1x8xf32> to vector<1x1x8xf32>
    %8 = vector.broadcast %7 : vector<1x1x8xf32> to vector<8x16x8xf32>
    %9 = arith.addf %6, %8 : vector<8x16x8xf32>
    %cst = arith.constant 0.000000e+00 : f32
    %10 = vector.broadcast %cst : f32 to vector<8x16x8xf32>
    %11 = arith.maximumf %9, %10 : vector<8x16x8xf32>
    %c0_7 = arith.constant 0 : index
    %c0_8 = arith.constant 0 : index
    %c0_9 = arith.constant 0 : index
    %c0_10 = arith.constant 0 : index
    %12 = vector.load %arg3[%c0_7, %c0_8, %c0_9, %c0_10] : memref<1x1x16x8xf32, #tpu.memory_space<vmem>>, vector<1x1x16x8xf32>
    %13 = vector.shape_cast %12 : vector<1x1x16x8xf32> to vector<1x16x8xf32>
    %14 = vector.shape_cast %0 : vector<1x8xf32> to vector<1x1x8xf32>
    %15 = vector.broadcast %14 : vector<1x1x8xf32> to vector<1x16x8xf32>
    %16 = arith.mulf %13, %15 : vector<1x16x8xf32>
    %17 = vector.shape_cast %1 : vector<1x8xf32> to vector<1x1x8xf32>
    %18 = vector.broadcast %17 : vector<1x1x8xf32> to vector<1x16x8xf32>
    %19 = arith.addf %16, %18 : vector<1x16x8xf32>
    %cst_11 = arith.constant 0.000000e+00 : f32
    %20 = vector.broadcast %cst_11 : f32 to vector<1x16x8xf32>
    %21 = arith.maximumf %19, %20 : vector<1x16x8xf32>
    %c0_12 = arith.constant 0 : index
    %c0_13 = arith.constant 0 : index
    %c0_14 = arith.constant 0 : index
    %c0_15 = arith.constant 0 : index
    %22 = vector.load %arg4[%c0_12, %c0_13, %c0_14, %c0_15] : memref<1x1x16x8xf32, #tpu.memory_space<vmem>>, vector<1x1x16x8xf32>
    %23 = vector.shape_cast %22 : vector<1x1x16x8xf32> to vector<1x16x8xf32>
    %24 = vector.shape_cast %0 : vector<1x8xf32> to vector<1x1x8xf32>
    %25 = vector.broadcast %24 : vector<1x1x8xf32> to vector<1x16x8xf32>
    %26 = arith.mulf %23, %25 : vector<1x16x8xf32>
    %27 = vector.shape_cast %1 : vector<1x8xf32> to vector<1x1x8xf32>
    %28 = vector.broadcast %27 : vector<1x1x8xf32> to vector<1x16x8xf32>
    %29 = arith.addf %26, %28 : vector<1x16x8xf32>
    %cst_16 = arith.constant 0.000000e+00 : f32
    %30 = vector.broadcast %cst_16 : f32 to vector<1x16x8xf32>
    %31 = arith.maximumf %29, %30 : vector<1x16x8xf32>
    %c0_i32 = arith.constant 0 : i32
    %32 = arith.cmpi eq, %arg1, %c0_i32 : i32
    %cst_17 = arith.constant 0.000000e+00 : f32
    %33 = vector.broadcast %cst_17 : f32 to vector<1x16x8xf32>
    %34 = arith.select %32, %33, %21 : vector<1x16x8xf32>
    %c1_i32 = arith.constant 1 : i32
    %35 = arith.cmpi eq, %arg1, %c1_i32 : i32
    %cst_18 = arith.constant 0.000000e+00 : f32
    %36 = vector.broadcast %cst_18 : f32 to vector<1x16x8xf32>
    %37 = arith.select %35, %36, %31 : vector<1x16x8xf32>
    %c1 = arith.constant 1 : index
    %c1_19 = arith.constant 1 : index
    %c0_20 = arith.constant 0 : index
    %38 = vector.load %arg11[%c1, %c1_19, %c0_20] : memref<10x18x8xf32, #tpu.memory_space<vmem>>, vector<8x16x8xf32>
    tpu.vector_store %arg11[%c1, %c1_19, %c0_20], %11 {strides = array<i32>} : memref<10x18x8xf32, #tpu.memory_space<vmem>>, vector<8x16x8xf32>,
    %c0_21 = arith.constant 0 : index
    %c1_22 = arith.constant 1 : index
    %c0_23 = arith.constant 0 : index
    %39 = vector.load %arg11[%c0_21, %c1_22, %c0_23] : memref<10x18x8xf32, #tpu.memory_space<vmem>>, vector<1x16x8xf32>
    tpu.vector_store %arg11[%c0_21, %c1_22, %c0_23], %34 {strides = array<i32>} : memref<10x18x8xf32, #tpu.memory_space<vmem>>, vector<1x16x8xf32>,
    %c9 = arith.constant 9 : index
    %c1_24 = arith.constant 1 : index
    %c0_25 = arith.constant 0 : index
    %40 = vector.load %arg11[%c9, %c1_24, %c0_25] : memref<10x18x8xf32, #tpu.memory_space<vmem>>, vector<1x16x8xf32>
    tpu.vector_store %arg11[%c9, %c1_24, %c0_25], %37 {strides = array<i32>} : memref<10x18x8xf32, #tpu.memory_space<vmem>>, vector<1x16x8xf32>,
    %cst_26 = arith.constant 0.000000e+00 : f32
    %41 = vector.broadcast %cst_26 : f32 to vector<10x1x8xf32>
    %c0_27 = arith.constant 0 : index
    %c0_28 = arith.constant 0 : index
    %c0_29 = arith.constant 0 : index
    %42 = vector.load %arg11[%c0_27, %c0_28, %c0_29] : memref<10x18x8xf32, #tpu.memory_space<vmem>>, vector<10x1x8xf32>
    tpu.vector_store %arg11[%c0_27, %c0_28, %c0_29], %41 {strides = array<i32>} : memref<10x18x8xf32, #tpu.memory_space<vmem>>, vector<10x1x8xf32>,
    %c0_30 = arith.constant 0 : index
    %c17 = arith.constant 17 : index
    %c0_31 = arith.constant 0 : index
    %43 = vector.load %arg11[%c0_30, %c17, %c0_31] : memref<10x18x8xf32, #tpu.memory_space<vmem>>, vector<10x1x8xf32>
    tpu.vector_store %arg11[%c0_30, %c17, %c0_31], %41 {strides = array<i32>} : memref<10x18x8xf32, #tpu.memory_space<vmem>>, vector<10x1x8xf32>,
    %cst_32 = arith.constant 0.000000e+00 : f32
    %44 = vector.broadcast %cst_32 : f32 to vector<128x8xf32>
    %c0_33 = arith.constant 0 : index
    %c0_34 = arith.constant 0 : index
    %c0_35 = arith.constant 0 : index
    %45 = vector.load %arg11[%c0_33, %c0_34, %c0_35] : memref<10x18x8xf32, #tpu.memory_space<vmem>>, vector<8x16x8xf32>
    %46 = vector.shape_cast %45 : vector<8x16x8xf32> to vector<128x8xf32>
    %47 = arith.truncf %46 : vector<128x8xf32> to vector<128x8xbf16>
    %c0_36 = arith.constant 0 : index
    %c0_37 = arith.constant 0 : index
    %c0_38 = arith.constant 0 : index
    %48 = vector.load %arg5[%c0_36, %c0_37, %c0_38] : memref<9x8x8xbf16, #tpu.memory_space<vmem>>, vector<1x8x8xbf16>
    %49 = vector.shape_cast %48 : vector<1x8x8xbf16> to vector<8x8xbf16>
    %cst_39 = arith.constant dense<0.000000e+00> : vector<128x8xf32>
    %50 = tpu.matmul %47, %49, %cst_39 {dimension_numbers = #tpu.dot_dimension_numbers<[1], [0], [0], [1], [0, 0, 1, 1], [], []>} : vector<128x8xbf16>, vector<8x8xbf16>, vector<128x8xf32> -> vector<128x8xf32>
    %51 = arith.addf %44, %50 : vector<128x8xf32>
    %c0_40 = arith.constant 0 : index
    %c1_41 = arith.constant 1 : index
    %c0_42 = arith.constant 0 : index
    %52 = vector.load %arg11[%c0_40, %c1_41, %c0_42] : memref<10x18x8xf32, #tpu.memory_space<vmem>>, vector<8x16x8xf32>
    %53 = vector.shape_cast %52 : vector<8x16x8xf32> to vector<128x8xf32>
    %54 = arith.truncf %53 : vector<128x8xf32> to vector<128x8xbf16>
    %c1_43 = arith.constant 1 : index
    %c0_44 = arith.constant 0 : index
    %c0_45 = arith.constant 0 : index
    %55 = vector.load %arg5[%c1_43, %c0_44, %c0_45] : memref<9x8x8xbf16, #tpu.memory_space<vmem>>, vector<1x8x8xbf16>
    %56 = vector.shape_cast %55 : vector<1x8x8xbf16> to vector<8x8xbf16>
    %cst_46 = arith.constant dense<0.000000e+00> : vector<128x8xf32>
    %57 = tpu.matmul %54, %56, %cst_46 {dimension_numbers = #tpu.dot_dimension_numbers<[1], [0], [0], [1], [0, 0, 1, 1], [], []>} : vector<128x8xbf16>, vector<8x8xbf16>, vector<128x8xf32> -> vector<128x8xf32>
    %58 = arith.addf %51, %57 : vector<128x8xf32>
    %c0_47 = arith.constant 0 : index
    %c2 = arith.constant 2 : index
    %c0_48 = arith.constant 0 : index
    %59 = vector.load %arg11[%c0_47, %c2, %c0_48] : memref<10x18x8xf32, #tpu.memory_space<vmem>>, vector<8x16x8xf32>
    %60 = vector.shape_cast %59 : vector<8x16x8xf32> to vector<128x8xf32>
    %61 = arith.truncf %60 : vector<128x8xf32> to vector<128x8xbf16>
    %c2_49 = arith.constant 2 : index
    %c0_50 = arith.constant 0 : index
    %c0_51 = arith.constant 0 : index
    %62 = vector.load %arg5[%c2_49, %c0_50, %c0_51] : memref<9x8x8xbf16, #tpu.memory_space<vmem>>, vector<1x8x8xbf16>
    %63 = vector.shape_cast %62 : vector<1x8x8xbf16> to vector<8x8xbf16>
    %cst_52 = arith.constant dense<0.000000e+00> : vector<128x8xf32>
    %64 = tpu.matmul %61, %63, %cst_52 {dimension_numbers = #tpu.dot_dimension_numbers<[1], [0], [0], [1], [0, 0, 1, 1], [], []>} : vector<128x8xbf16>, vector<8x8xbf16>, vector<128x8xf32> -> vector<128x8xf32>
    %65 = arith.addf %58, %64 : vector<128x8xf32>
    %c1_53 = arith.constant 1 : index
    %c0_54 = arith.constant 0 : index
    %c0_55 = arith.constant 0 : index
    %66 = vector.load %arg11[%c1_53, %c0_54, %c0_55] : memref<10x18x8xf32, #tpu.memory_space<vmem>>, vector<8x16x8xf32>
    %67 = vector.shape_cast %66 : vector<8x16x8xf32> to vector<128x8xf32>
    %68 = arith.truncf %67 : vector<128x8xf32> to vector<128x8xbf16>
    %c3 = arith.constant 3 : index
    %c0_56 = arith.constant 0 : index
    %c0_57 = arith.constant 0 : index
    %69 = vector.load %arg5[%c3, %c0_56, %c0_57] : memref<9x8x8xbf16, #tpu.memory_space<vmem>>, vector<1x8x8xbf16>
    %70 = vector.shape_cast %69 : vector<1x8x8xbf16> to vector<8x8xbf16>
    %cst_58 = arith.constant dense<0.000000e+00> : vector<128x8xf32>
    %71 = tpu.matmul %68, %70, %cst_58 {dimension_numbers = #tpu.dot_dimension_numbers<[1], [0], [0], [1], [0, 0, 1, 1], [], []>} : vector<128x8xbf16>, vector<8x8xbf16>, vector<128x8xf32> -> vector<128x8xf32>
    %72 = arith.addf %65, %71 : vector<128x8xf32>
    %c1_59 = arith.constant 1 : index
    %c1_60 = arith.constant 1 : index
    %c0_61 = arith.constant 0 : index
    %73 = vector.load %arg11[%c1_59, %c1_60, %c0_61] : memref<10x18x8xf32, #tpu.memory_space<vmem>>, vector<8x16x8xf32>
    %74 = vector.shape_cast %73 : vector<8x16x8xf32> to vector<128x8xf32>
    %75 = arith.truncf %74 : vector<128x8xf32> to vector<128x8xbf16>
    %c4 = arith.constant 4 : index
    %c0_62 = arith.constant 0 : index
    %c0_63 = arith.constant 0 : index
    %76 = vector.load %arg5[%c4, %c0_62, %c0_63] : memref<9x8x8xbf16, #tpu.memory_space<vmem>>, vector<1x8x8xbf16>
    %77 = vector.shape_cast %76 : vector<1x8x8xbf16> to vector<8x8xbf16>
    %cst_64 = arith.constant dense<0.000000e+00> : vector<128x8xf32>
    %78 = tpu.matmul %75, %77, %cst_64 {dimension_numbers = #tpu.dot_dimension_numbers<[1], [0], [0], [1], [0, 0, 1, 1], [], []>} : vector<128x8xbf16>, vector<8x8xbf16>, vector<128x8xf32> -> vector<128x8xf32>
    %79 = arith.addf %72, %78 : vector<128x8xf32>
    %c1_65 = arith.constant 1 : index
    %c2_66 = arith.constant 2 : index
    %c0_67 = arith.constant 0 : index
    %80 = vector.load %arg11[%c1_65, %c2_66, %c0_67] : memref<10x18x8xf32, #tpu.memory_space<vmem>>, vector<8x16x8xf32>
    %81 = vector.shape_cast %80 : vector<8x16x8xf32> to vector<128x8xf32>
    %82 = arith.truncf %81 : vector<128x8xf32> to vector<128x8xbf16>
    %c5 = arith.constant 5 : index
    %c0_68 = arith.constant 0 : index
    %c0_69 = arith.constant 0 : index
    %83 = vector.load %arg5[%c5, %c0_68, %c0_69] : memref<9x8x8xbf16, #tpu.memory_space<vmem>>, vector<1x8x8xbf16>
    %84 = vector.shape_cast %83 : vector<1x8x8xbf16> to vector<8x8xbf16>
    %cst_70 = arith.constant dense<0.000000e+00> : vector<128x8xf32>
    %85 = tpu.matmul %82, %84, %cst_70 {dimension_numbers = #tpu.dot_dimension_numbers<[1], [0], [0], [1], [0, 0, 1, 1], [], []>} : vector<128x8xbf16>, vector<8x8xbf16>, vector<128x8xf32> -> vector<128x8xf32>
    %86 = arith.addf %79, %85 : vector<128x8xf32>
    %c2_71 = arith.constant 2 : index
    %c0_72 = arith.constant 0 : index
    %c0_73 = arith.constant 0 : index
    %87 = vector.load %arg11[%c2_71, %c0_72, %c0_73] : memref<10x18x8xf32, #tpu.memory_space<vmem>>, vector<8x16x8xf32>
    %88 = vector.shape_cast %87 : vector<8x16x8xf32> to vector<128x8xf32>
    %89 = arith.truncf %88 : vector<128x8xf32> to vector<128x8xbf16>
    %c6 = arith.constant 6 : index
    %c0_74 = arith.constant 0 : index
    %c0_75 = arith.constant 0 : index
    %90 = vector.load %arg5[%c6, %c0_74, %c0_75] : memref<9x8x8xbf16, #tpu.memory_space<vmem>>, vector<1x8x8xbf16>
    %91 = vector.shape_cast %90 : vector<1x8x8xbf16> to vector<8x8xbf16>
    %cst_76 = arith.constant dense<0.000000e+00> : vector<128x8xf32>
    %92 = tpu.matmul %89, %91, %cst_76 {dimension_numbers = #tpu.dot_dimension_numbers<[1], [0], [0], [1], [0, 0, 1, 1], [], []>} : vector<128x8xbf16>, vector<8x8xbf16>, vector<128x8xf32> -> vector<128x8xf32>
    %93 = arith.addf %86, %92 : vector<128x8xf32>
    %c2_77 = arith.constant 2 : index
    %c1_78 = arith.constant 1 : index
    %c0_79 = arith.constant 0 : index
    %94 = vector.load %arg11[%c2_77, %c1_78, %c0_79] : memref<10x18x8xf32, #tpu.memory_space<vmem>>, vector<8x16x8xf32>
    %95 = vector.shape_cast %94 : vector<8x16x8xf32> to vector<128x8xf32>
    %96 = arith.truncf %95 : vector<128x8xf32> to vector<128x8xbf16>
    %c7 = arith.constant 7 : index
    %c0_80 = arith.constant 0 : index
    %c0_81 = arith.constant 0 : index
    %97 = vector.load %arg5[%c7, %c0_80, %c0_81] : memref<9x8x8xbf16, #tpu.memory_space<vmem>>, vector<1x8x8xbf16>
    %98 = vector.shape_cast %97 : vector<1x8x8xbf16> to vector<8x8xbf16>
    %cst_82 = arith.constant dense<0.000000e+00> : vector<128x8xf32>
    %99 = tpu.matmul %96, %98, %cst_82 {dimension_numbers = #tpu.dot_dimension_numbers<[1], [0], [0], [1], [0, 0, 1, 1], [], []>} : vector<128x8xbf16>, vector<8x8xbf16>, vector<128x8xf32> -> vector<128x8xf32>
    %100 = arith.addf %93, %99 : vector<128x8xf32>
    %c2_83 = arith.constant 2 : index
    %c2_84 = arith.constant 2 : index
    %c0_85 = arith.constant 0 : index
    %101 = vector.load %arg11[%c2_83, %c2_84, %c0_85] : memref<10x18x8xf32, #tpu.memory_space<vmem>>, vector<8x16x8xf32>
    %102 = vector.shape_cast %101 : vector<8x16x8xf32> to vector<128x8xf32>
    %103 = arith.truncf %102 : vector<128x8xf32> to vector<128x8xbf16>
    %c8 = arith.constant 8 : index
    %c0_86 = arith.constant 0 : index
    %c0_87 = arith.constant 0 : index
    %104 = vector.load %arg5[%c8, %c0_86, %c0_87] : memref<9x8x8xbf16, #tpu.memory_space<vmem>>, vector<1x8x8xbf16>
    %105 = vector.shape_cast %104 : vector<1x8x8xbf16> to vector<8x8xbf16>
    %cst_88 = arith.constant dense<0.000000e+00> : vector<128x8xf32>
    %106 = tpu.matmul %103, %105, %cst_88 {dimension_numbers = #tpu.dot_dimension_numbers<[1], [0], [0], [1], [0, 0, 1, 1], [], []>} : vector<128x8xbf16>, vector<8x8xbf16>, vector<128x8xf32> -> vector<128x8xf32>
    %107 = arith.addf %100, %106 : vector<128x8xf32>
    %c0_89 = arith.constant 0 : index
    %c0_90 = arith.constant 0 : index
    %108 = vector.load %arg6[%c0_89, %c0_90] : memref<1x8xf32, #tpu.memory_space<vmem>>, vector<1x8xf32>
    %109 = vector.broadcast %108 : vector<1x8xf32> to vector<128x8xf32>
    %110 = arith.addf %107, %109 : vector<128x8xf32>
    %111 = vector.shape_cast %110 : vector<128x8xf32> to vector<1x8x16x8xf32>
    %c0_91 = arith.constant 0 : index
    %c0_92 = arith.constant 0 : index
    %c0_93 = arith.constant 0 : index
    %c0_94 = arith.constant 0 : index
    %112 = vector.load %arg9[%c0_91, %c0_92, %c0_93, %c0_94] : memref<1x8x16x8xf32, #tpu.memory_space<vmem>>, vector<1x8x16x8xf32>
    tpu.vector_store %arg9[%c0_91, %c0_92, %c0_93, %c0_94], %111 {strides = array<i32>} : memref<1x8x16x8xf32, #tpu.memory_space<vmem>>, vector<1x8x16x8xf32>,
    %cst_95 = arith.constant dense<0.000000e+00> : vector<8xf32>
    %113 = vector.multi_reduction <add>, %110, %cst_95 [0] : vector<128x8xf32> to vector<8xf32>
    %114 = vector.shape_cast %113 : vector<8xf32> to vector<1x8xf32>
    %cst_96 = arith.constant 1.280000e+02 : f32
    %115 = vector.broadcast %cst_96 : f32 to vector<1x8xf32>
    %116 = arith.divf %114, %115 : vector<1x8xf32>
    %117 = vector.broadcast %116 : vector<1x8xf32> to vector<128x8xf32>
    %118 = arith.subf %110, %117 : vector<128x8xf32>
    %119 = vector.broadcast %116 : vector<1x8xf32> to vector<128x8xf32>
    %120 = arith.subf %110, %119 : vector<128x8xf32>
    %121 = arith.mulf %118, %120 : vector<128x8xf32>
    %cst_97 = arith.constant dense<0.000000e+00> : vector<8xf32>
    %122 = vector.multi_reduction <add>, %121, %cst_97 [0] : vector<128x8xf32> to vector<8xf32>
    %123 = vector.shape_cast %122 : vector<8xf32> to vector<1x8xf32>
    %124 = tpu.concatenate %116, %123 in 0 : vector<1x8xf32>, vector<1x8xf32> -> vector<2x8xf32>
    %125 = vector.shape_cast %124 : vector<2x8xf32> to vector<1x1x2x8xf32>
    %c0_98 = arith.constant 0 : index
    %c0_99 = arith.constant 0 : index
    %c0_100 = arith.constant 0 : index
    %c0_101 = arith.constant 0 : index
    %126 = vector.load %arg10[%c0_98, %c0_99, %c0_100, %c0_101] : memref<1x1x2x8xf32, #tpu.memory_space<vmem>>, vector<1x1x2x8xf32>
    tpu.vector_store %arg10[%c0_98, %c0_99, %c0_100, %c0_101], %125 {strides = array<i32>} : memref<1x1x2x8xf32, #tpu.memory_space<vmem>>, vector<1x1x2x8xf32>,
    return
  }
  func.func @transform_0(%arg0: i32, %arg1: i32) -> (i32, i32, i32, i32) {
    %c0_i32 = arith.constant 0 : i32
    %c0_i32_0 = arith.constant 0 : i32
    %c0_i32_1 = arith.constant 0 : i32
    return %arg0, %arg1, %c0_i32, %c0_i32_0 : i32, i32, i32, i32
  }
  func.func @transform_1(%arg0: i32, %arg1: i32) -> (i32, i32, i32, i32) {
    %c8_i32 = arith.constant 8 : i32
    %0 = arith.muli %arg1, %c8_i32 : i32
    %c1_i32 = arith.constant 1 : i32
    %1 = arith.subi %0, %c1_i32 : i32
    %c0_i32 = arith.constant 0 : i32
    %2 = arith.maxsi %1, %c0_i32 : i32
    %c0_i32_0 = arith.constant 0 : i32
    %c0_i32_1 = arith.constant 0 : i32
    %c0_i32_2 = arith.constant 0 : i32
    return %arg0, %2, %c0_i32_0, %c0_i32_1 : i32, i32, i32, i32
  }
  func.func @transform_2(%arg0: i32, %arg1: i32) -> (i32, i32, i32, i32) {
    %c8_i32 = arith.constant 8 : i32
    %0 = arith.muli %arg1, %c8_i32 : i32
    %c8_i32_0 = arith.constant 8 : i32
    %1 = arith.addi %0, %c8_i32_0 : i32
    %c15_i32 = arith.constant 15 : i32
    %2 = arith.minsi %1, %c15_i32 : i32
    %c0_i32 = arith.constant 0 : i32
    %c0_i32_1 = arith.constant 0 : i32
    %c0_i32_2 = arith.constant 0 : i32
    return %arg0, %2, %c0_i32, %c0_i32_1 : i32, i32, i32, i32
  }
  func.func @transform_3(%arg0: i32, %arg1: i32) -> (i32, i32, i32) {
    %c0_i32 = arith.constant 0 : i32
    %c0_i32_0 = arith.constant 0 : i32
    %c0_i32_1 = arith.constant 0 : i32
    %c0_i32_2 = arith.constant 0 : i32
    return %c0_i32, %c0_i32_0, %c0_i32_1 : i32, i32, i32
  }
  func.func @transform_4(%arg0: i32, %arg1: i32) -> (i32, i32) {
    %c0_i32 = arith.constant 0 : i32
    %c0_i32_0 = arith.constant 0 : i32
    %c0_i32_1 = arith.constant 0 : i32
    return %c0_i32, %c0_i32_0 : i32, i32
  }
  func.func @transform_5(%arg0: i32, %arg1: i32) -> (i32, i32) {
    %c0_i32 = arith.constant 0 : i32
    %c0_i32_0 = arith.constant 0 : i32
    %c0_i32_1 = arith.constant 0 : i32
    return %c0_i32, %c0_i32_0 : i32, i32
  }
  func.func @transform_6(%arg0: i32, %arg1: i32) -> (i32, i32) {
    %c0_i32 = arith.constant 0 : i32
    %c0_i32_0 = arith.constant 0 : i32
    %c0_i32_1 = arith.constant 0 : i32
    return %c0_i32, %c0_i32_0 : i32, i32
  }
  func.func @transform_7(%arg0: i32, %arg1: i32) -> (i32, i32, i32, i32) {
    %c0_i32 = arith.constant 0 : i32
    %c0_i32_0 = arith.constant 0 : i32
    %c0_i32_1 = arith.constant 0 : i32
    return %arg0, %arg1, %c0_i32, %c0_i32_0 : i32, i32, i32, i32
  }
  func.func @transform_8(%arg0: i32, %arg1: i32) -> (i32, i32, i32, i32) {
    %c0_i32 = arith.constant 0 : i32
    %c0_i32_0 = arith.constant 0 : i32
    %c0_i32_1 = arith.constant 0 : i32
    return %arg0, %arg1, %c0_i32, %c0_i32_0 : i32, i32, i32, i32
  }
}

module attributes {stable_mosaic.version = 11 : i64} {
  func.func @_bn2_relu_kernel(%arg0: i32, %arg1: memref<16x128xf32, #tpu.memory_space<vmem>>, %arg2: memref<1x128xf32, #tpu.memory_space<vmem>>, %arg3: memref<1x128xf32, #tpu.memory_space<vmem>>, %arg4: memref<16x128xf32, #tpu.memory_space<vmem>>) attributes {dimension_semantics = [#tpu.dimension_semantics<parallel>], iteration_bounds = array<i64: 2>, scalar_prefetch = 0 : i64, scratch_operands = 0 : i64, tpu.core_type = #tpu.core_type<tc>, window_params = [{transform_indices = @transform_0, window_bounds = array<i64: 16, 128>}, {pipeline_mode = #tpu.pipeline_mode<synchronous>, transform_indices = @transform_1, window_bounds = array<i64: 1, 128>}, {pipeline_mode = #tpu.pipeline_mode<synchronous>, transform_indices = @transform_2, window_bounds = array<i64: 1, 128>}, {transform_indices = @transform_3, window_bounds = array<i64: 16, 128>}]} {
    %c0 = arith.constant 0 : index
    %c0_0 = arith.constant 0 : index
    %0 = vector.load %arg1[%c0, %c0_0] : memref<16x128xf32, #tpu.memory_space<vmem>>, vector<16x128xf32>
    %c0_1 = arith.constant 0 : index
    %c0_2 = arith.constant 0 : index
    %1 = vector.load %arg2[%c0_1, %c0_2] : memref<1x128xf32, #tpu.memory_space<vmem>>, vector<1x128xf32>
    %2 = vector.broadcast %1 : vector<1x128xf32> to vector<16x128xf32>
    %3 = arith.mulf %0, %2 : vector<16x128xf32>
    %c0_3 = arith.constant 0 : index
    %c0_4 = arith.constant 0 : index
    %4 = vector.load %arg3[%c0_3, %c0_4] : memref<1x128xf32, #tpu.memory_space<vmem>>, vector<1x128xf32>
    %5 = vector.broadcast %4 : vector<1x128xf32> to vector<16x128xf32>
    %6 = arith.addf %3, %5 : vector<16x128xf32>
    %cst = arith.constant 0.000000e+00 : f32
    %7 = vector.broadcast %cst : f32 to vector<16x128xf32>
    %8 = arith.maximumf %6, %7 : vector<16x128xf32>
    %c0_5 = arith.constant 0 : index
    %c0_6 = arith.constant 0 : index
    %9 = vector.load %arg4[%c0_5, %c0_6] : memref<16x128xf32, #tpu.memory_space<vmem>>, vector<16x128xf32>
    tpu.vector_store %arg4[%c0_5, %c0_6], %8 {strides = array<i32>} : memref<16x128xf32, #tpu.memory_space<vmem>>, vector<16x128xf32>,
    return
  }
  func.func @transform_0(%arg0: i32) -> (i32, i32) {
    %c0_i32 = arith.constant 0 : i32
    %c0_i32_0 = arith.constant 0 : i32
    return %arg0, %c0_i32 : i32, i32
  }
  func.func @transform_1(%arg0: i32) -> (i32, i32) {
    %c0_i32 = arith.constant 0 : i32
    %c0_i32_0 = arith.constant 0 : i32
    %c0_i32_1 = arith.constant 0 : i32
    return %c0_i32, %c0_i32_0 : i32, i32
  }
  func.func @transform_2(%arg0: i32) -> (i32, i32) {
    %c0_i32 = arith.constant 0 : i32
    %c0_i32_0 = arith.constant 0 : i32
    %c0_i32_1 = arith.constant 0 : i32
    return %c0_i32, %c0_i32_0 : i32, i32
  }
  func.func @transform_3(%arg0: i32) -> (i32, i32) {
    %c0_i32 = arith.constant 0 : i32
    %c0_i32_0 = arith.constant 0 : i32
    return %arg0, %c0_i32 : i32, i32
  }
}

</mosaic_0001>

<llo_original>
// kernel: tile.18
$region0: #{tile.18}
  #allocation0 [shape = 's32[1]{0}', space=sflag, size = 0x4, scoped, tag = 'scoped memory for tile.18']
  %s0 = inlined_call_operand.vmem [shape: f32[8], index: 0, kind: input, shape index: {}]
  %s1 = inlined_call_operand.vmem [shape: f32[16,8], index: 1, kind: output, shape index: {}]
  // Predicated region
  $region2: #{tile.18} parent=0 // pred_check
    _
  $region3: #{tile.18} parent=0 // pred_check_branch
    %3 = sbr.rel (0) target = $region5
  $region4: #{tile.18} parent=0 // pred_region
    _
  $region5: #{tile.18} parent=0 // pred_fallthru
    _
  %v4 = vld [vmem:[%s0] ss:$0 sm:$0xff]
  %5 = vst [vmem:[%s1] sm:$0xff] %v4
  %s6 = scalar_lea.vmem %s1, 8
  %7 = vst [vmem:[%s6] sm:$0xff] %v4

// kernel: tile.19
$region0: #{tile.19}
  %s0 = inlined_call_operand.vmem [shape: f32[16,8], index: 0, kind: input, shape index: {}]
  %s1 = inlined_call_operand.vmem [shape: f32[1,128], index: 1, kind: output, shape index: {}]
  $region1: #{tile.19} parent=0
    #allocation0 [shape = 'u8[4096]{0}', space=vmem, size = 0x1000, scoped, tag = 'scoped mem for output reshape']
    %v2 = vld [vmem:[%s0] sm:$0x1]
    %vm3 = vcmask 64512
    %4 = vst.msk [vmem:[#allocation0] sm:$0x1] %vm3, %v2
    %s5 = scalar_lea.vmem %s0, 15
    %v6 = vld [vmem:[%s5] sm:$0x1]
    %7 = vrot.lane.b32.xlu0 %v6, 120
    %v8 = vpop.permute.xlu0 %7
    %vm9 = vcmask 1048512
    %10 = vst.msk [vmem:[#allocation0] sm:$0x1] %vm9, %v8
    %s11 = scalar_lea.vmem %s0, 14
    %v12 = vld [vmem:[%s11] sm:$0x1]
    %13 = vrot.lane.b32.xlu0 %v12, 112
    %v14 = vpop.permute.xlu0 %13
    %vm15 = vcmask 982912
    %16 = vst.msk [vmem:[#allocation0] sm:$0x1] %vm15, %v14
    %s17 = scalar_lea.vmem %s0, 13
    %v18 = vld [vmem:[%s17] sm:$0x1]
    %19 = vrot.lane.b32.xlu0 %v18, 104
    %v20 = vpop.permute.xlu0 %19
    %vm21 = vcmask 917312
    %22 = vst.msk [vmem:[#allocation0] sm:$0x1] %vm21, %v20
    %s23 = scalar_lea.vmem %s0, 12
    %v24 = vld [vmem:[%s23] sm:$0x1]
    %25 = vrot.lane.b32.xlu0 %v24, 96
    %v26 = vpop.permute.xlu0 %25
    %vm27 = vcmask 851712
    %28 = vst.msk [vmem:[#allocation0] sm:$0x1] %vm27, %v26
    %s29 = scalar_lea.vmem %s0, 11
    %v30 = vld [vmem:[%s29] sm:$0x1]
    %31 = vrot.lane.b32.xlu0 %v30, 88
    %v32 = vpop.permute.xlu0 %31
    %vm33 = vcmask 786112
    %34 = vst.msk [vmem:[#allocation0] sm:$0x1] %vm33, %v32
    %s35 = scalar_lea.vmem %s0, 10
    %v36 = vld [vmem:[%s35] sm:$0x1]
    %37 = vrot.lane.b32.xlu0 %v36, 80
    %v38 = vpop.permute.xlu0 %37
    %vm39 = vcmask 720512
    %40 = vst.msk [vmem:[#allocation0] sm:$0x1] %vm39, %v38
    %s41 = scalar_lea.vmem %s0, 9
    %v42 = vld [vmem:[%s41] sm:$0x1]
    %43 = vrot.lane.b32.xlu0 %v42, 72
    %v44 = vpop.permute.xlu0 %43
    %vm45 = vcmask 654912
    %46 = vst.msk [vmem:[#allocation0] sm:$0x1] %vm45, %v44
    %s47 = scalar_lea.vmem %s0, 8
    %v48 = vld [vmem:[%s47] sm:$0x1]
    %49 = vrot.lane.b32.xlu0 %v48, 64
    %v50 = vpop.permute.xlu0 %49
    %vm51 = vcmask 589312
    %52 = vst.msk [vmem:[#allocation0] sm:$0x1] %vm51, %v50
    %s53 = scalar_lea.vmem %s0, 7
    %v54 = vld [vmem:[%s53] sm:$0x1]
    %55 = vrot.lane.b32.xlu0 %v54, 56
    %v56 = vpop.permute.xlu0 %55
    %vm57 = vcmask 523712
    %58 = vst.msk [vmem:[#allocation0] sm:$0x1] %vm57, %v56
    %s59 = scalar_lea.vmem %s0, 6
    %v60 = vld [vmem:[%s59] sm:$0x1]
    %61 = vrot.lane.b32.xlu0 %v60, 48
    %v62 = vpop.permute.xlu0 %61
    %vm63 = vcmask 458112
    %64 = vst.msk [vmem:[#allocation0] sm:$0x1] %vm63, %v62
    %s65 = scalar_lea.vmem %s0, 5
    %v66 = vld [vmem:[%s65] sm:$0x1]
    %67 = vrot.lane.b32.xlu0 %v66, 40
    %v68 = vpop.permute.xlu0 %67
    %vm69 = vcmask 392512
    %70 = vst.msk [vmem:[#allocation0] sm:$0x1] %vm69, %v68
    %s71 = scalar_lea.vmem %s0, 4
    %v72 = vld [vmem:[%s71] sm:$0x1]
    %73 = vrot.lane.b32.xlu0 %v72, 32
    %v74 = vpop.permute.xlu0 %73
    %vm75 = vcmask 326912
    %76 = vst.msk [vmem:[#allocation0] sm:$0x1] %vm75, %v74
    %s77 = scalar_lea.vmem %s0, 3
    %v78 = vld [vmem:[%s77] sm:$0x1]
    %79 = vrot.lane.b32.xlu0 %v78, 24
    %v80 = vpop.permute.xlu0 %79
    %vm81 = vcmask 261312
    %82 = vst.msk [vmem:[#allocation0] sm:$0x1] %vm81, %v80
    %s83 = scalar_lea.vmem %s0, 2
    %v84 = vld [vmem:[%s83] sm:$0x1]
    %85 = vrot.lane.b32.xlu0 %v84, 16
    %v86 = vpop.permute.xlu0 %85
    %vm87 = vcmask 195712
    %88 = vst.msk [vmem:[#allocation0] sm:$0x1] %vm87, %v86
    %s89 = scalar_lea.vmem %s0, 1
    %v90 = vld [vmem:[%s89] sm:$0x1]
    %91 = vrot.lane.b32.xlu0 %v90, 8
    %v92 = vpop.permute.xlu0 %91
    %vm93 = vcmask 130112
    %94 = vst.msk [vmem:[#allocation0] sm:$0x1] %vm93, %v92
    %s96 = sshllo.u32 0, 1
    %v98 = vld [vmem:[#allocation0] sm:%s96]
    %s99 = sshllo.u32 0, 1
    %100 = vst [vmem:[%s1] sm:%s99] %v98

// kernel: hlayer_forward.3
$region0: #{hlayer_forward.3}
  #allocation0 [shape = 'u32[]', space=smem, size = 0x4, offset = 0x4, fixed_abs, tag = 'smem constant byte address 0x4 - core index']
  #allocation1 [shape = 'u32[144,128]{1,0:T(1,128)}', space=vmem, size = 0x12000, scoped, tag = 'internal scratch']
  %s0 = inlined_call_operand.vmem [shape: bf16[512,4], index: 0, kind: input, shape index: {}]
  %s1 = inlined_call_operand.vmem [shape: bf16[512,4], index: 1, kind: input, shape index: {}]
  %s2 = inlined_call_operand.vmem [shape: bf16[4,8], index: 2, kind: input, shape index: {}]
  %s3 = inlined_call_operand.vmem [shape: bf16[4,8], index: 3, kind: input, shape index: {}]
  %s4 = inlined_call_operand.vmem [shape: f32[1,8], index: 4, kind: input, shape index: {}]
  %s5 = inlined_call_operand.vmem [shape: f32[512,8], index: 5, kind: output, shape index: {0}]
  %s6 = inlined_call_operand.vmem [shape: f32[2,2,8], index: 6, kind: output, shape index: {1}]
  %7 = xla_tuple %s5, %s6
  %s8 = sld [smem:[#allocation0]]
  $region61: #{hlayer_forward.3} parent=0
    _
  %s10 = ssub.s32 1, %s8
  %s11 = scalar_select 0, %s10, %s8
  loop: start=0, step=1, limit=4
  $region2: #{hlayer_forward.3} parent=0 // loop_pre_header
    _
  $region3: #{hlayer_forward.3} parent=0 // loop_header
    %s13 = sphi 0, %s17
    %p14 = scmp.ge.s32.totalorder %s13, 4
    %s23 = sphi 0, %s25
    %s26 = sphi 0, %s23
    %s27 = sphi 0, %s26
    %s43 = sphi 0, %s27
    %s49 = sphi 0, %s51
    %s52 = sphi 0, %s49
    %s53 = sphi 0, %s52
    %s69 = sphi 0, %s53
    %s73 = sphi 0, %s73
    %s75 = sphi 0, %s73
    %s76 = sphi 0, %s75
    %s90 = sphi 0, %s76
    %s94 = sphi 0, %s94
    %s96 = sphi 0, %s94
    %s97 = sphi 0, %s96
    %s111 = sphi 0, %s97
    %s115 = sphi 0, %s115
    %s117 = sphi 0, %s115
    %s118 = sphi 0, %s117
    %s132 = sphi 0, %s118
    %s138 = sphi 0, %s140
    %s141 = sphi 0, %s138
    %s142 = sphi 0, %s141
    %s158 = sphi 0, %s142
    %s164 = sphi 0, %s166
    %s167 = sphi 0, %s164
    %s168 = sphi 0, %s167
    %s184 = sphi 0, %s168
  $region4: #{hlayer_forward.3} parent=0 // loop_header_branch
    %16 = sbr.rel (%p14) target = $region8
  $region5: #{hlayer_forward.3} parent=0 // loop_body
    %s18 = ssub.s32 %s13, 1
    %s19 = ssub.s32 %s13, 2
    %s20 = sadd.s32 %s13, 1
    %s21 = ssub.s32 %s13, %s20
    %p22 = scmp.eq.s32.totalorder %s21, 0
    %s24 = sadd.s32 %s23, 1
    %s25 = scalar_select %p22, %s23, %s24
    %p28 = pneg %p22
    %p29 = scmp.eq.s32.totalorder %s13, 1
    %p30 = por %p28, %p29
    %p31 = scmp.ne.s32.totalorder %s23, %s26
    %p32 = scmp.eq.s32.totalorder %s13, 0
    %p33 = por %p31, %p32
    %p34 = scmp.ne.s32.totalorder %s23, %s26
    %p35 = scmp.eq.s32.totalorder %s18, 1
    %p36 = por %p34, %p35
    %p37 = scmp.ne.s32.totalorder %s26, %s27
    %p38 = scmp.eq.s32.totalorder %s18, 0
    %p39 = por %p37, %p38
    %p40 = scmp.ne.s32.totalorder %s26, %s27
    %p41 = scmp.eq.s32.totalorder %s19, 1
    %p42 = por %p40, %p41
    %p44 = scmp.ne.s32.totalorder %s27, %s43
    %p45 = scmp.eq.s32.totalorder %s19, 0
    %p46 = por %p44, %p45
    %s47 = ssub.s32 %s13, %s20
    %p48 = scmp.eq.s32.totalorder %s47, 0
    %s50 = sadd.s32 %s49, 1
    %s51 = scalar_select %p48, %s49, %s50
    %p54 = pneg %p48
    %p55 = scmp.eq.s32.totalorder %s13, 1
    %p56 = por %p54, %p55
    %p57 = scmp.ne.s32.totalorder %s49, %s52
    %p58 = scmp.eq.s32.totalorder %s13, 0
    %p59 = por %p57, %p58
    %p60 = scmp.ne.s32.totalorder %s49, %s52
    %p61 = scmp.eq.s32.totalorder %s18, 1
    %p62 = por %p60, %p61
    %p63 = scmp.ne.s32.totalorder %s52, %s53
    %p64 = scmp.eq.s32.totalorder %s18, 0
    %p65 = por %p63, %p64
    %p66 = scmp.ne.s32.totalorder %s52, %s53
    %p67 = scmp.eq.s32.totalorder %s19, 1
    %p68 = por %p66, %p67
    %p70 = scmp.ne.s32.totalorder %s53, %s69
    %p71 = scmp.eq.s32.totalorder %s19, 0
    %p72 = por %p70, %p71
    %s74 = sadd.s32 %s73, 1
    %p77 = scmp.eq.s32.totalorder %s13, 1
    %p78 = scmp.ne.s32.totalorder %s73, %s75
    %p79 = scmp.eq.s32.totalorder %s13, 0
    %p80 = por %p78, %p79
    %p81 = scmp.ne.s32.totalorder %s73, %s75
    %p82 = scmp.eq.s32.totalorder %s18, 1
    %p83 = por %p81, %p82
    %p84 = scmp.ne.s32.totalorder %s75, %s76
    %p85 = scmp.eq.s32.totalorder %s18, 0
    %p86 = por %p84, %p85
    %p87 = scmp.ne.s32.totalorder %s75, %s76
    %p88 = scmp.eq.s32.totalorder %s19, 1
    %p89 = por %p87, %p88
    %p91 = scmp.ne.s32.totalorder %s76, %s90
    %p92 = scmp.eq.s32.totalorder %s19, 0
    %p93 = por %p91, %p92
    %s95 = sadd.s32 %s94, 1
    %p98 = scmp.eq.s32.totalorder %s13, 1
    %p99 = scmp.ne.s32.totalorder %s94, %s96
    %p100 = scmp.eq.s32.totalorder %s13, 0
    %p101 = por %p99, %p100
    %p102 = scmp.ne.s32.totalorder %s94, %s96
    %p103 = scmp.eq.s32.totalorder %s18, 1
    %p104 = por %p102, %p103
    %p105 = scmp.ne.s32.totalorder %s96, %s97
    %p106 = scmp.eq.s32.totalorder %s18, 0
    %p107 = por %p105, %p106
    %p108 = scmp.ne.s32.totalorder %s96, %s97
    %p109 = scmp.eq.s32.totalorder %s19, 1
    %p110 = por %p108, %p109
    %p112 = scmp.ne.s32.totalorder %s97, %s111
    %p113 = scmp.eq.s32.totalorder %s19, 0
    %p114 = por %p112, %p113
    %s116 = sadd.s32 %s115, 1
    %p119 = scmp.eq.s32.totalorder %s13, 1
    %p120 = scmp.ne.s32.totalorder %s115, %s117
    %p121 = scmp.eq.s32.totalorder %s13, 0
    %p122 = por %p120, %p121
    %p123 = scmp.ne.s32.totalorder %s115, %s117
    %p124 = scmp.eq.s32.totalorder %s18, 1
    %p125 = por %p123, %p124
    %p126 = scmp.ne.s32.totalorder %s117, %s118
    %p127 = scmp.eq.s32.totalorder %s18, 0
    %p128 = por %p126, %p127
    %p129 = scmp.ne.s32.totalorder %s117, %s118
    %p130 = scmp.eq.s32.totalorder %s19, 1
    %p131 = por %p129, %p130
    %p133 = scmp.ne.s32.totalorder %s118, %s132
    %p134 = scmp.eq.s32.totalorder %s19, 0
    %p135 = por %p133, %p134
    %s136 = ssub.s32 %s13, %s20
    %p137 = scmp.eq.s32.totalorder %s136, 0
    %s139 = sadd.s32 %s138, 1
    %s140 = scalar_select %p137, %s138, %s139
    %p143 = pneg %p137
    %p144 = scmp.eq.s32.totalorder %s13, 1
    %p145 = por %p143, %p144
    %p146 = scmp.ne.s32.totalorder %s138, %s141
    %p147 = scmp.eq.s32.totalorder %s13, 0
    %p148 = por %p146, %p147
    %p149 = scmp.ne.s32.totalorder %s138, %s141
    %p150 = scmp.eq.s32.totalorder %s18, 1
    %p151 = por %p149, %p150
    %p152 = scmp.ne.s32.totalorder %s141, %s142
    %p153 = scmp.eq.s32.totalorder %s18, 0
    %p154 = por %p152, %p153
    %p155 = scmp.ne.s32.totalorder %s141, %s142
    %p156 = scmp.eq.s32.totalorder %s19, 1
    %p157 = por %p155, %p156
    %p159 = scmp.ne.s32.totalorder %s142, %s158
    %p160 = scmp.eq.s32.totalorder %s19, 0
    %p161 = por %p159, %p160
    %s162 = ssub.s32 %s13, %s20
    %p163 = scmp.eq.s32.totalorder %s162, 0
    %s165 = sadd.s32 %s164, 1
    %s166 = scalar_select %p163, %s164, %s165
    %p169 = pneg %p163
    %p170 = scmp.eq.s32.totalorder %s13, 1
    %p171 = por %p169, %p170
    %p172 = scmp.ne.s32.totalorder %s164, %s167
    %p173 = scmp.eq.s32.totalorder %s13, 0
    %p174 = por %p172, %p173
    %p175 = scmp.ne.s32.totalorder %s164, %s167
    %p176 = scmp.eq.s32.totalorder %s18, 1
    %p177 = por %p175, %p176
    %p178 = scmp.ne.s32.totalorder %s167, %s168
    %p179 = scmp.eq.s32.totalorder %s18, 0
    %p180 = por %p178, %p179
    %p181 = scmp.ne.s32.totalorder %s167, %s168
    %p182 = scmp.eq.s32.totalorder %s19, 1
    %p183 = por %p181, %p182
    %p185 = scmp.ne.s32.totalorder %s168, %s184
    %p186 = scmp.eq.s32.totalorder %s19, 0
    %p187 = por %p185, %p186
    %p188 = scmp.le.s32.totalorder 1, %s13
    %p189 = scmp.lt.s32.totalorder %s13, 3
    %p190 = pnand %p188, %p189
    %p191 = pneg %p190
    // Predicated region
    $region9: #{hlayer_forward.3} parent=5 // pred_check
      _
    $region10: #{hlayer_forward.3} parent=5 // pred_check_branch
      %193 = sbr.rel (%p190) target = $region12
    $region11: #{hlayer_forward.3} parent=5 // pred_region
      %s194 = ssub.s32 %s13, 1
      // Predicated region
      $region13: #{hlayer_forward.3} parent=11 // pred_check
        %p195 = pneg %p86
      $region14: #{hlayer_forward.3} parent=11 // pred_check_branch
        %197 = sbr.rel (%p195) target = $region16
      $region15: #{hlayer_forward.3} parent=11 // pred_region
        _
      $region16: #{hlayer_forward.3} parent=11 // pred_fallthru
        _
      // Predicated region
      $region17: #{hlayer_forward.3} parent=11 // pred_check
        %p198 = pneg %p107
      $region18: #{hlayer_forward.3} parent=11 // pred_check_branch
        %200 = sbr.rel (%p198) target = $region20
      $region19: #{hlayer_forward.3} parent=11 // pred_region
        _
      $region20: #{hlayer_forward.3} parent=11 // pred_fallthru
        _
      // Predicated region
      $region21: #{hlayer_forward.3} parent=11 // pred_check
        %p201 = pneg %p128
      $region22: #{hlayer_forward.3} parent=11 // pred_check_branch
        %203 = sbr.rel (%p201) target = $region24
      $region23: #{hlayer_forward.3} parent=11 // pred_region
        _
      $region24: #{hlayer_forward.3} parent=11 // pred_fallthru
        _
    $region12: #{hlayer_forward.3} parent=5 // pred_fallthru
      _
    %p204 = scmp.lt.s32.totalorder %s13, 2
    // Predicated region
    $region25: #{hlayer_forward.3} parent=5 // pred_check
      %p205 = pneg %p204
    $region26: #{hlayer_forward.3} parent=5 // pred_check_branch
      %207 = sbr.rel (%p205) target = $region28
    $region27: #{hlayer_forward.3} parent=5 // pred_region
      // Predicated region
      $region29: #{hlayer_forward.3} parent=27 // pred_check
        %p208 = pneg %p33
      $region30: #{hlayer_forward.3} parent=27 // pred_check_branch
        %210 = sbr.rel (%p208) target = $region32
      $region31: #{hlayer_forward.3} parent=27 // pred_region
        %s211 = smul.u32 32, %s13
        %p212 = scmp.lt.s32.totalorder %s211, 63
        %s213 = scalar_select %p212, %s211, 63
        %s214 = smul.addr %s213, 4
        %s215 = scalar_lea.vmem %s0, %s214
        %s216 = smul.u32 32, %s13
      $region32: #{hlayer_forward.3} parent=27 // pred_fallthru
        _
      // Predicated region
      $region33: #{hlayer_forward.3} parent=27 // pred_check
        %p217 = pneg %p59
      $region34: #{hlayer_forward.3} parent=27 // pred_check_branch
        %219 = sbr.rel (%p217) target = $region36
      $region35: #{hlayer_forward.3} parent=27 // pred_region
        %s220 = smul.u32 32, %s13
        %p221 = scmp.lt.s32.totalorder %s220, 63
        %s222 = scalar_select %p221, %s220, 63
        %s223 = smul.addr %s222, 4
        %s224 = scalar_lea.vmem %s1, %s223
        %s225 = smul.u32 32, %s13
      $region36: #{hlayer_forward.3} parent=27 // pred_fallthru
        _
    $region28: #{hlayer_forward.3} parent=5 // pred_fallthru
      _
    %p226 = scmp.le.s32.totalorder 1, %s13
    %p227 = scmp.lt.s32.totalorder %s13, 3
    %p228 = pnand %p226, %p227
    %p229 = pneg %p228
    // Predicated region
    $region37: #{hlayer_forward.3} parent=5 // pred_check
      _
    $region38: #{hlayer_forward.3} parent=5 // pred_check_branch
      %231 = sbr.rel (%p228) target = $region40
    $region39: #{hlayer_forward.3} parent=5 // pred_region
      %s232 = ssub.s32 %s13, 1
      %s233 = smul.u32 32, %s18
      %p234 = scmp.lt.s32.totalorder %s233, 63
      %s235 = scalar_select %p234, %s233, 63
      %s236 = smul.addr %s235, 4
      %s237 = scalar_lea.vmem %s0, %s236
      %p238 = pneg %p39
      %p239 = pneg %p36
      %s240 = smul.u32 32, %s18
      %p241 = scmp.lt.s32.totalorder %s240, 63
      %s242 = scalar_select %p241, %s240, 63
      %s243 = smul.addr %s242, 4
      %s244 = scalar_lea.vmem %s1, %s243
      %p245 = pneg %p65
      %p246 = pneg %p62
      %p247 = pneg %p86
      %p248 = pneg %p83
      %p249 = pneg %p107
      %p250 = pneg %p104
      %p251 = pneg %p128
      %p252 = pneg %p125
      %p253 = pneg %p154
      %p254 = pneg %p151
      %s255 = smul.u32 32, %s18
      %p256 = scmp.lt.s32.totalorder %s255, 63
      %s257 = scalar_select %p256, %s255, 63
      %s258 = smul.addr %s257, 8
      %s259 = scalar_lea.vmem %s5, %s258
      %p260 = pneg %p180
      %p261 = pneg %p177
      %p262 = scmp.lt.s32.totalorder %s18, 1
      %s263 = scalar_select %p262, %s18, 1
      %s264 = smul.addr %s263, 2
      %s265 = scalar_lea.vmem %s6, %s264
      %s266 = smul.u32 32, %s18
      %p267 = scmp.lt.s32.totalorder %s266, 63
      %s268 = scalar_select %p267, %s266, 63
      %s269 = smul.addr %s268, 4
      %s270 = scalar_lea.vmem %s0, %s269
      %s271 = smul.u32 32, %s18
      %s272 = smul.u32 32, %s18
      %p273 = scmp.lt.s32.totalorder %s272, 63
      %s274 = scalar_select %p273, %s272, 63
      %s275 = smul.addr %s274, 4
      %s276 = scalar_lea.vmem %s1, %s275
      %s277 = smul.u32 32, %s18
      %s278 = smul.u32 32, %s18
      %p279 = scmp.lt.s32.totalorder %s278, 63
      %s280 = scalar_select %p279, %s278, 63
      %s281 = smul.addr %s280, 8
      %s282 = scalar_lea.vmem %s5, %s281
      %s283 = smul.u32 32, %s18
      %p284 = scmp.lt.s32.totalorder %s18, 1
      %s285 = scalar_select %p284, %s18, 1
      %s286 = smul.addr %s285, 2
      %s287 = scalar_lea.vmem %s6, %s286
      %v289 = vld [vmem:[%s270] sm:$0xf]
      %v290 = vld [vmem:[%s270 + $0x4] sm:$0xf]
      %v291 = vld [vmem:[%s270 + $0x8] sm:$0xf]
      %v292 = vld [vmem:[%s270 + $0xc] sm:$0xf]
      %v293 = vld [vmem:[%s270 + $0x10] sm:$0xf]
      %v294 = vld [vmem:[%s270 + $0x14] sm:$0xf]
      %v295 = vld [vmem:[%s270 + $0x18] sm:$0xf]
      %v296 = vld [vmem:[%s270 + $0x1c] sm:$0xf]
      %v297 = vld [vmem:[%s270 + $0x20] sm:$0xf]
      %v298 = vld [vmem:[%s270 + $0x24] sm:$0xf]
      %v299 = vld [vmem:[%s270 + $0x28] sm:$0xf]
      %v300 = vld [vmem:[%s270 + $0x2c] sm:$0xf]
      %v301 = vld [vmem:[%s270 + $0x30] sm:$0xf]
      %v302 = vld [vmem:[%s270 + $0x34] sm:$0xf]
      %v303 = vld [vmem:[%s270 + $0x38] sm:$0xf]
      %v304 = vld [vmem:[%s270 + $0x3c] sm:$0xf]
      %v305 = vld [vmem:[%s270 + $0x40] sm:$0xf]
      %v306 = vld [vmem:[%s270 + $0x44] sm:$0xf]
      %v307 = vld [vmem:[%s270 + $0x48] sm:$0xf]
      %v308 = vld [vmem:[%s270 + $0x4c] sm:$0xf]
      %v309 = vld [vmem:[%s270 + $0x50] sm:$0xf]
      %v310 = vld [vmem:[%s270 + $0x54] sm:$0xf]
      %v311 = vld [vmem:[%s270 + $0x58] sm:$0xf]
      %v312 = vld [vmem:[%s270 + $0x5c] sm:$0xf]
      %v313 = vld [vmem:[%s270 + $0x60] sm:$0xf]
      %v314 = vld [vmem:[%s270 + $0x64] sm:$0xf]
      %v315 = vld [vmem:[%s270 + $0x68] sm:$0xf]
      %v316 = vld [vmem:[%s270 + $0x6c] sm:$0xf]
      %v317 = vld [vmem:[%s270 + $0x70] sm:$0xf]
      %v318 = vld [vmem:[%s270 + $0x74] sm:$0xf]
      %v319 = vld [vmem:[%s270 + $0x78] sm:$0xf]
      %v320 = vld [vmem:[%s270 + $0x7c] sm:$0xf]
      %v321 = vld [vmem:[%s2] sm:$0x3]
      %v322 = vld [vmem:[%s276] sm:$0xf]
      %v323 = vld [vmem:[%s276 + $0x4] sm:$0xf]
      %v324 = vld [vmem:[%s276 + $0x8] sm:$0xf]
      %v325 = vld [vmem:[%s276 + $0xc] sm:$0xf]
      %v326 = vld [vmem:[%s276 + $0x10] sm:$0xf]
      %v327 = vld [vmem:[%s276 + $0x14] sm:$0xf]
      %v328 = vld [vmem:[%s276 + $0x18] sm:$0xf]
      %v329 = vld [vmem:[%s276 + $0x1c] sm:$0xf]
      %v330 = vld [vmem:[%s276 + $0x20] sm:$0xf]
      %v331 = vld [vmem:[%s276 + $0x24] sm:$0xf]
      %v332 = vld [vmem:[%s276 + $0x28] sm:$0xf]
      %v333 = vld [vmem:[%s276 + $0x2c] sm:$0xf]
      %v334 = vld [vmem:[%s276 + $0x30] sm:$0xf]
      %v335 = vld [vmem:[%s276 + $0x34] sm:$0xf]
      %v336 = vld [vmem:[%s276 + $0x38] sm:$0xf]
      %v337 = vld [vmem:[%s276 + $0x3c] sm:$0xf]
      %v338 = vld [vmem:[%s276 + $0x40] sm:$0xf]
      %v339 = vld [vmem:[%s276 + $0x44] sm:$0xf]
      %v340 = vld [vmem:[%s276 + $0x48] sm:$0xf]
      %v341 = vld [vmem:[%s276 + $0x4c] sm:$0xf]
      %v342 = vld [vmem:[%s276 + $0x50] sm:$0xf]
      %v343 = vld [vmem:[%s276 + $0x54] sm:$0xf]
      %v344 = vld [vmem:[%s276 + $0x58] sm:$0xf]
      %v345 = vld [vmem:[%s276 + $0x5c] sm:$0xf]
      %v346 = vld [vmem:[%s276 + $0x60] sm:$0xf]
      %v347 = vld [vmem:[%s276 + $0x64] sm:$0xf]
      %v348 = vld [vmem:[%s276 + $0x68] sm:$0xf]
      %v349 = vld [vmem:[%s276 + $0x6c] sm:$0xf]
      %v350 = vld [vmem:[%s276 + $0x70] sm:$0xf]
      %v351 = vld [vmem:[%s276 + $0x74] sm:$0xf]
      %v352 = vld [vmem:[%s276 + $0x78] sm:$0xf]
      %v353 = vld [vmem:[%s276 + $0x7c] sm:$0xf]
      %v354 = vld [vmem:[%s3] sm:$0x3]
      %v387 = vunpack.c.l.b16 %v322
      %v388 = vunpack.c.l.b16 %v323
      %v389 = vunpack.c.l.b16 %v324
      %v390 = vunpack.c.l.b16 %v325
      %v391 = vunpack.c.l.b16 %v326
      %v392 = vunpack.c.l.b16 %v327
      %v393 = vunpack.c.l.b16 %v328
      %v394 = vunpack.c.l.b16 %v329
      %v395 = vunpack.c.l.b16 %v330
      %v396 = vunpack.c.l.b16 %v331
      %v397 = vunpack.c.l.b16 %v332
      %v398 = vunpack.c.l.b16 %v333
      %v399 = vunpack.c.l.b16 %v334
      %v400 = vunpack.c.l.b16 %v335
      %v401 = vunpack.c.l.b16 %v336
      %v402 = vunpack.c.l.b16 %v337
      %v403 = vunpack.c.l.b16 %v338
      %v404 = vunpack.c.l.b16 %v339
      %v405 = vunpack.c.l.b16 %v340
      %v406 = vunpack.c.l.b16 %v341
      %v407 = vunpack.c.l.b16 %v342
      %v408 = vunpack.c.l.b16 %v343
      %v409 = vunpack.c.l.b16 %v344
      %v410 = vunpack.c.l.b16 %v345
      %v411 = vunpack.c.l.b16 %v346
      %v412 = vunpack.c.l.b16 %v347
      %v413 = vunpack.c.l.b16 %v348
      %v414 = vunpack.c.l.b16 %v349
      %v415 = vunpack.c.l.b16 %v350
      %v416 = vunpack.c.l.b16 %v351
      %v417 = vunpack.c.l.b16 %v352
      %v418 = vunpack.c.l.b16 %v353
      %v419 = vpack.c.b16 %v388, %v387
      %v420 = vpack.c.b16 %v390, %v389
      %v421 = vpack.c.b16 %v392, %v391
      %v422 = vpack.c.b16 %v394, %v393
      %v423 = vpack.c.b16 %v396, %v395
      %v424 = vpack.c.b16 %v398, %v397
      %v425 = vpack.c.b16 %v400, %v399
      %v426 = vpack.c.b16 %v402, %v401
      %v427 = vpack.c.b16 %v404, %v403
      %v428 = vpack.c.b16 %v406, %v405
      %v429 = vpack.c.b16 %v408, %v407
      %v430 = vpack.c.b16 %v410, %v409
      %v431 = vpack.c.b16 %v412, %v411
      %v432 = vpack.c.b16 %v414, %v413
      %v433 = vpack.c.b16 %v416, %v415
      %v434 = vpack.c.b16 %v418, %v417
      %vm435 = vcmask 31744
      %v437 = vsel %vm435, %v419, 0
      %v440 = vsel %vm435, %v420, 0
      %v443 = vsel %vm435, %v421, 0
      %v446 = vsel %vm435, %v422, 0
      %v449 = vsel %vm435, %v423, 0
      %v452 = vsel %vm435, %v424, 0
      %v455 = vsel %vm435, %v425, 0
      %v458 = vsel %vm435, %v426, 0
      %v461 = vsel %vm435, %v427, 0
      %v464 = vsel %vm435, %v428, 0
      %v467 = vsel %vm435, %v429, 0
      %v470 = vsel %vm435, %v430, 0
      %v473 = vsel %vm435, %v431, 0
      %v476 = vsel %vm435, %v432, 0
      %v479 = vsel %vm435, %v433, 0
      %v482 = vsel %vm435, %v434, 0
      %vm484 = vcmask 1041408
      %v486 = vsel %vm484, %v354, 0
      %488 = vmatprep.subr.bf16.mxu0 0
      %489 = vmatpush1.bf16.msra.mxu0 %v486
      %490 = vmatprep.subr.bf16.mxu0 0
      %491 = vmatpush1.bf16.msra.mxu0 0
      %492 = vmatprep.subr.bf16.mxu0 0
      %493 = vmatpush1.bf16.msra.mxu0 0
      %494 = vmatprep.subr.bf16.mxu0 0
      %495 = vmatpush1.bf16.msra.mxu0 0
      %496 = vmatprep.subr.bf16.mxu0 0
      %497 = vmatpush1.bf16.msra.mxu0 0
      %498 = vmatprep.subr.bf16.mxu0 0
      %499 = vmatpush1.bf16.msra.mxu0 0
      %500 = vmatprep.subr.bf16.mxu0 0
      %501 = vmatpush1.bf16.msra.mxu0 0
      %502 = vmatprep.subr.bf16.mxu0 0
      %503 = vmatpush1.bf16.msra.mxu0 0
      %504 = vmatprep.subr.bf16.mxu0 0
      %505 = vmatpush1.bf16.msra.mxu0 0
      %506 = vmatprep.subr.bf16.mxu0 0
      %507 = vmatpush1.bf16.msra.mxu0 0
      %508 = vmatprep.subr.bf16.mxu0 0
      %509 = vmatpush1.bf16.msra.mxu0 0
      %510 = vmatprep.subr.bf16.mxu0 0
      %511 = vmatpush1.bf16.msra.mxu0 0
      %512 = vmatprep.subr.bf16.mxu0 0
      %513 = vmatpush1.bf16.msra.mxu0 0
      %514 = vmatprep.subr.bf16.mxu0 0
      %515 = vmatpush1.bf16.msra.mxu0 0
      %516 = vmatprep.subr.bf16.mxu0 0
      %517 = vmatpush1.bf16.msra.mxu0 0
      %518 = vmatprep.subr.bf16.mxu0 0
      %519 = vmatpush1.bf16.msra.mxu0 0
      %520 = vmatprep.mubr.bf16.mxu0 0
      %521 = vmatmul.mubr.bf16.gmra.mrb[0].mxu0 %v437
      %v522 = vpop.f32.mrb[0].mxu0
      %v523 = vadd.f32 0.0, %v522
      %v524 = vpop.f32.mrb[0].mxu0
      %v525 = vpop.f32.mrb[0].mxu0
      %v526 = vadd.f32 0.0, %v525
      %v527 = vpop.f32.mrb[0].mxu0
      %528 = vmatprep.mubr.bf16.mxu0 0
      %529 = vmatmul.mubr.bf16.gmra.mrb[0].mxu0 %v440
      %v530 = vpop.f32.mrb[0].mxu0
      %v531 = vadd.f32 0.0, %v530
      %v532 = vpop.f32.mrb[0].mxu0
      %v533 = vpop.f32.mrb[0].mxu0
      %v534 = vadd.f32 0.0, %v533
      %v535 = vpop.f32.mrb[0].mxu0
      %536 = vmatprep.mubr.bf16.mxu0 0
      %537 = vmatmul.mubr.bf16.gmra.mrb[0].mxu0 %v443
      %v538 = vpop.f32.mrb[0].mxu0
      %v539 = vadd.f32 0.0, %v538
      %v540 = vpop.f32.mrb[0].mxu0
      %v541 = vpop.f32.mrb[0].mxu0
      %v542 = vadd.f32 0.0, %v541
      %v543 = vpop.f32.mrb[0].mxu0
      %544 = vmatprep.mubr.bf16.mxu0 0
      %545 = vmatmul.mubr.bf16.gmra.mrb[0].mxu0 %v446
      %v546 = vpop.f32.mrb[0].mxu0
      %v547 = vadd.f32 0.0, %v546
      %v548 = vpop.f32.mrb[0].mxu0
      %v549 = vpop.f32.mrb[0].mxu0
      %v550 = vadd.f32 0.0, %v549
      %v551 = vpop.f32.mrb[0].mxu0
      %552 = vmatprep.mubr.bf16.mxu0 0
      %553 = vmatmul.mubr.bf16.gmra.mrb[0].mxu0 %v449
      %v554 = vpop.f32.mrb[0].mxu0
      %v555 = vadd.f32 0.0, %v554
      %v556 = vpop.f32.mrb[0].mxu0
      %v557 = vpop.f32.mrb[0].mxu0
      %v558 = vadd.f32 0.0, %v557
      %v559 = vpop.f32.mrb[0].mxu0
      %560 = vmatprep.mubr.bf16.mxu0 0
      %561 = vmatmul.mubr.bf16.gmra.mrb[0].mxu0 %v452
      %v562 = vpop.f32.mrb[0].mxu0
      %v563 = vadd.f32 0.0, %v562
      %v564 = vpop.f32.mrb[0].mxu0
      %v565 = vpop.f32.mrb[0].mxu0
      %v566 = vadd.f32 0.0, %v565
      %v567 = vpop.f32.mrb[0].mxu0
      %568 = vmatprep.mubr.bf16.mxu0 0
      %569 = vmatmul.mubr.bf16.gmra.mrb[0].mxu0 %v455
      %v570 = vpop.f32.mrb[0].mxu0
      %v571 = vadd.f32 0.0, %v570
      %v572 = vpop.f32.mrb[0].mxu0
      %v573 = vpop.f32.mrb[0].mxu0
      %v574 = vadd.f32 0.0, %v573
      %v575 = vpop.f32.mrb[0].mxu0
      %576 = vmatprep.mubr.bf16.mxu0 0
      %577 = vmatmul.mubr.bf16.gmra.mrb[0].mxu0 %v458
      %v578 = vpop.f32.mrb[0].mxu0
      %v579 = vadd.f32 0.0, %v578
      %v580 = vpop.f32.mrb[0].mxu0
      %v581 = vpop.f32.mrb[0].mxu0
      %v582 = vadd.f32 0.0, %v581
      %v583 = vpop.f32.mrb[0].mxu0
      %584 = vmatprep.mubr.bf16.mxu0 0
      %585 = vmatmul.mubr.bf16.gmra.mrb[0].mxu0 %v461
      %v586 = vpop.f32.mrb[0].mxu0
      %v587 = vadd.f32 0.0, %v586
      %v588 = vpop.f32.mrb[0].mxu0
      %v589 = vpop.f32.mrb[0].mxu0
      %v590 = vadd.f32 0.0, %v589
      %v591 = vpop.f32.mrb[0].mxu0
      %592 = vmatprep.mubr.bf16.mxu0 0
      %593 = vmatmul.mubr.bf16.gmra.mrb[0].mxu0 %v464
      %v594 = vpop.f32.mrb[0].mxu0
      %v595 = vadd.f32 0.0, %v594
      %v596 = vpop.f32.mrb[0].mxu0
      %v597 = vpop.f32.mrb[0].mxu0
      %v598 = vadd.f32 0.0, %v597
      %v599 = vpop.f32.mrb[0].mxu0
      %600 = vmatprep.mubr.bf16.mxu0 0
      %601 = vmatmul.mubr.bf16.gmra.mrb[0].mxu0 %v467
      %v602 = vpop.f32.mrb[0].mxu0
      %v603 = vadd.f32 0.0, %v602
      %v604 = vpop.f32.mrb[0].mxu0
      %v605 = vpop.f32.mrb[0].mxu0
      %v606 = vadd.f32 0.0, %v605
      %v607 = vpop.f32.mrb[0].mxu0
      %608 = vmatprep.mubr.bf16.mxu0 0
      %609 = vmatmul.mubr.bf16.gmra.mrb[0].mxu0 %v470
      %v610 = vpop.f32.mrb[0].mxu0
      %v611 = vadd.f32 0.0, %v610
      %v612 = vpop.f32.mrb[0].mxu0
      %v613 = vpop.f32.mrb[0].mxu0
      %v614 = vadd.f32 0.0, %v613
      %v615 = vpop.f32.mrb[0].mxu0
      %616 = vmatprep.mubr.bf16.mxu0 0
      %617 = vmatmul.mubr.bf16.gmra.mrb[0].mxu0 %v473
      %v618 = vpop.f32.mrb[0].mxu0
      %v619 = vadd.f32 0.0, %v618
      %v620 = vpop.f32.mrb[0].mxu0
      %v621 = vpop.f32.mrb[0].mxu0
      %v622 = vadd.f32 0.0, %v621
      %v623 = vpop.f32.mrb[0].mxu0
      %624 = vmatprep.mubr.bf16.mxu0 0
      %625 = vmatmul.mubr.bf16.gmra.mrb[0].mxu0 %v476
      %v626 = vpop.f32.mrb[0].mxu0
      %v627 = vadd.f32 0.0, %v626
      %v628 = vpop.f32.mrb[0].mxu0
      %v629 = vpop.f32.mrb[0].mxu0
      %v630 = vadd.f32 0.0, %v629
      %v631 = vpop.f32.mrb[0].mxu0
      %632 = vmatprep.mubr.bf16.mxu0 0
      %633 = vmatmul.mubr.bf16.gmra.mrb[0].mxu0 %v479
      %v634 = vpop.f32.mrb[0].mxu0
      %v635 = vadd.f32 0.0, %v634
      %v636 = vpop.f32.mrb[0].mxu0
      %v637 = vpop.f32.mrb[0].mxu0
      %v638 = vadd.f32 0.0, %v637
      %v639 = vpop.f32.mrb[0].mxu0
      %640 = vmatprep.mubr.bf16.mxu0 0
      %641 = vmatmul.mubr.bf16.gmra.mrb[0].mxu0 %v482
      %v642 = vpop.f32.mrb[0].mxu0
      %v643 = vadd.f32 0.0, %v642
      %v644 = vpop.f32.mrb[0].mxu0
      %v645 = vpop.f32.mrb[0].mxu0
      %v646 = vadd.f32 0.0, %v645
      %v647 = vpop.f32.mrb[0].mxu0
      %648 = vdwg.mxu0
      %v681 = vunpack.c.l.b16 %v289
      %v682 = vunpack.c.l.b16 %v290
      %v683 = vunpack.c.l.b16 %v291
      %v684 = vunpack.c.l.b16 %v292
      %v685 = vunpack.c.l.b16 %v293
      %v686 = vunpack.c.l.b16 %v294
      %v687 = vunpack.c.l.b16 %v295
      %v688 = vunpack.c.l.b16 %v296
      %v689 = vunpack.c.l.b16 %v297
      %v690 = vunpack.c.l.b16 %v298
      %v691 = vunpack.c.l.b16 %v299
      %v692 = vunpack.c.l.b16 %v300
      %v693 = vunpack.c.l.b16 %v301
      %v694 = vunpack.c.l.b16 %v302
      %v695 = vunpack.c.l.b16 %v303
      %v696 = vunpack.c.l.b16 %v304
      %v697 = vunpack.c.l.b16 %v305
      %v698 = vunpack.c.l.b16 %v306
      %v699 = vunpack.c.l.b16 %v307
      %v700 = vunpack.c.l.b16 %v308
      %v701 = vunpack.c.l.b16 %v309
      %v702 = vunpack.c.l.b16 %v310
      %v703 = vunpack.c.l.b16 %v311
      %v704 = vunpack.c.l.b16 %v312
      %v705 = vunpack.c.l.b16 %v313
      %v706 = vunpack.c.l.b16 %v314
      %v707 = vunpack.c.l.b16 %v315
      %v708 = vunpack.c.l.b16 %v316
      %v709 = vunpack.c.l.b16 %v317
      %v710 = vunpack.c.l.b16 %v318
      %v711 = vunpack.c.l.b16 %v319
      %v712 = vunpack.c.l.b16 %v320
      %v713 = vpack.c.b16 %v682, %v681
      %v714 = vpack.c.b16 %v684, %v683
      %v715 = vpack.c.b16 %v686, %v685
      %v716 = vpack.c.b16 %v688, %v687
      %v717 = vpack.c.b16 %v690, %v689
      %v718 = vpack.c.b16 %v692, %v691
      %v719 = vpack.c.b16 %v694, %v693
      %v720 = vpack.c.b16 %v696, %v695
      %v721 = vpack.c.b16 %v698, %v697
      %v722 = vpack.c.b16 %v700, %v699
      %v723 = vpack.c.b16 %v702, %v701
      %v724 = vpack.c.b16 %v704, %v703
      %v725 = vpack.c.b16 %v706, %v705
      %v726 = vpack.c.b16 %v708, %v707
      %v727 = vpack.c.b16 %v710, %v709
      %v728 = vpack.c.b16 %v712, %v711
      %v730 = vsel %vm435, %v713, 0
      %v733 = vsel %vm435, %v714, 0
      %v736 = vsel %vm435, %v715, 0
      %v739 = vsel %vm435, %v716, 0
      %v742 = vsel %vm435, %v717, 0
      %v745 = vsel %vm435, %v718, 0
      %v748 = vsel %vm435, %v719, 0
      %v751 = vsel %vm435, %v720, 0
      %v754 = vsel %vm435, %v721, 0
      %v757 = vsel %vm435, %v722, 0
      %v760 = vsel %vm435, %v723, 0
      %v763 = vsel %vm435, %v724, 0
      %v766 = vsel %vm435, %v725, 0
      %v769 = vsel %vm435, %v726, 0
      %v772 = vsel %vm435, %v727, 0
      %v775 = vsel %vm435, %v728, 0
      %v778 = vsel %vm484, %v321, 0
      %780 = vmatprep.subr.bf16.mxu0 0
      %781 = vmatpush1.bf16.msra.mxu0 %v778
      %782 = vmatprep.subr.bf16.mxu0 0
      %783 = vmatpush1.bf16.msra.mxu0 0
      %784 = vmatprep.subr.bf16.mxu0 0
      %785 = vmatpush1.bf16.msra.mxu0 0
      %786 = vmatprep.subr.bf16.mxu0 0
      %787 = vmatpush1.bf16.msra.mxu0 0
      %788 = vmatprep.subr.bf16.mxu0 0
      %789 = vmatpush1.bf16.msra.mxu0 0
      %790 = vmatprep.subr.bf16.mxu0 0
      %791 = vmatpush1.bf16.msra.mxu0 0
      %792 = vmatprep.subr.bf16.mxu0 0
      %793 = vmatpush1.bf16.msra.mxu0 0
      %794 = vmatprep.subr.bf16.mxu0 0
      %795 = vmatpush1.bf16.msra.mxu0 0
      %796 = vmatprep.subr.bf16.mxu0 0
      %797 = vmatpush1.bf16.msra.mxu0 0
      %798 = vmatprep.subr.bf16.mxu0 0
      %799 = vmatpush1.bf16.msra.mxu0 0
      %800 = vmatprep.subr.bf16.mxu0 0
      %801 = vmatpush1.bf16.msra.mxu0 0
      %802 = vmatprep.subr.bf16.mxu0 0
      %803 = vmatpush1.bf16.msra.mxu0 0
      %804 = vmatprep.subr.bf16.mxu0 0
      %805 = vmatpush1.bf16.msra.mxu0 0
      %806 = vmatprep.subr.bf16.mxu0 0
      %807 = vmatpush1.bf16.msra.mxu0 0
      %808 = vmatprep.subr.bf16.mxu0 0
      %809 = vmatpush1.bf16.msra.mxu0 0
      %810 = vmatprep.subr.bf16.mxu0 0
      %811 = vmatpush1.bf16.msra.mxu0 0
      %812 = vmatprep.mubr.bf16.mxu0 0
      %813 = vmatmul.mubr.bf16.gmra.mrb[0].mxu0 %v730
      %v814 = vpop.f32.mrb[0].mxu0
      %v815 = vadd.f32 %v523, %v814
      %v816 = vpop.f32.mrb[0].mxu0
      %v817 = vpop.f32.mrb[0].mxu0
      %v818 = vadd.f32 %v526, %v817
      %v819 = vpop.f32.mrb[0].mxu0
      %820 = vmatprep.mubr.bf16.mxu0 0
      %821 = vmatmul.mubr.bf16.gmra.mrb[0].mxu0 %v733
      %v822 = vpop.f32.mrb[0].mxu0
      %v823 = vadd.f32 %v531, %v822
      %v824 = vpop.f32.mrb[0].mxu0
      %v825 = vpop.f32.mrb[0].mxu0
      %v826 = vadd.f32 %v534, %v825
      %v827 = vpop.f32.mrb[0].mxu0
      %828 = vmatprep.mubr.bf16.mxu0 0
      %829 = vmatmul.mubr.bf16.gmra.mrb[0].mxu0 %v736
      %v830 = vpop.f32.mrb[0].mxu0
      %v831 = vadd.f32 %v539, %v830
      %v832 = vpop.f32.mrb[0].mxu0
      %v833 = vpop.f32.mrb[0].mxu0
      %v834 = vadd.f32 %v542, %v833
      %v835 = vpop.f32.mrb[0].mxu0
      %836 = vmatprep.mubr.bf16.mxu0 0
      %837 = vmatmul.mubr.bf16.gmra.mrb[0].mxu0 %v739
      %v838 = vpop.f32.mrb[0].mxu0
      %v839 = vadd.f32 %v547, %v838
      %v840 = vpop.f32.mrb[0].mxu0
      %v841 = vpop.f32.mrb[0].mxu0
      %v842 = vadd.f32 %v550, %v841
      %v843 = vpop.f32.mrb[0].mxu0
      %844 = vmatprep.mubr.bf16.mxu0 0
      %845 = vmatmul.mubr.bf16.gmra.mrb[0].mxu0 %v742
      %v846 = vpop.f32.mrb[0].mxu0
      %v847 = vadd.f32 %v555, %v846
      %v848 = vpop.f32.mrb[0].mxu0
      %v849 = vpop.f32.mrb[0].mxu0
      %v850 = vadd.f32 %v558, %v849
      %v851 = vpop.f32.mrb[0].mxu0
      %852 = vmatprep.mubr.bf16.mxu0 0
      %853 = vmatmul.mubr.bf16.gmra.mrb[0].mxu0 %v745
      %v854 = vpop.f32.mrb[0].mxu0
      %v855 = vadd.f32 %v563, %v854
      %v856 = vpop.f32.mrb[0].mxu0
      %v857 = vpop.f32.mrb[0].mxu0
      %v858 = vadd.f32 %v566, %v857
      %v859 = vpop.f32.mrb[0].mxu0
      %860 = vmatprep.mubr.bf16.mxu0 0
      %861 = vmatmul.mubr.bf16.gmra.mrb[0].mxu0 %v748
      %v862 = vpop.f32.mrb[0].mxu0
      %v863 = vadd.f32 %v571, %v862
      %v864 = vpop.f32.mrb[0].mxu0
      %v865 = vpop.f32.mrb[0].mxu0
      %v866 = vadd.f32 %v574, %v865
      %v867 = vpop.f32.mrb[0].mxu0
      %868 = vmatprep.mubr.bf16.mxu0 0
      %869 = vmatmul.mubr.bf16.gmra.mrb[0].mxu0 %v751
      %v870 = vpop.f32.mrb[0].mxu0
      %v871 = vadd.f32 %v579, %v870
      %v872 = vpop.f32.mrb[0].mxu0
      %v873 = vpop.f32.mrb[0].mxu0
      %v874 = vadd.f32 %v582, %v873
      %v875 = vpop.f32.mrb[0].mxu0
      %876 = vmatprep.mubr.bf16.mxu0 0
      %877 = vmatmul.mubr.bf16.gmra.mrb[0].mxu0 %v754
      %v878 = vpop.f32.mrb[0].mxu0
      %v879 = vadd.f32 %v587, %v878
      %v880 = vpop.f32.mrb[0].mxu0
      %v881 = vpop.f32.mrb[0].mxu0
      %v882 = vadd.f32 %v590, %v881
      %v883 = vpop.f32.mrb[0].mxu0
      %884 = vmatprep.mubr.bf16.mxu0 0
      %885 = vmatmul.mubr.bf16.gmra.mrb[0].mxu0 %v757
      %v886 = vpop.f32.mrb[0].mxu0
      %v887 = vadd.f32 %v595, %v886
      %v888 = vpop.f32.mrb[0].mxu0
      %v889 = vpop.f32.mrb[0].mxu0
      %v890 = vadd.f32 %v598, %v889
      %v891 = vpop.f32.mrb[0].mxu0
      %892 = vmatprep.mubr.bf16.mxu0 0
      %893 = vmatmul.mubr.bf16.gmra.mrb[0].mxu0 %v760
      %v894 = vpop.f32.mrb[0].mxu0
      %v895 = vadd.f32 %v603, %v894
      %v896 = vpop.f32.mrb[0].mxu0
      %v897 = vpop.f32.mrb[0].mxu0
      %v898 = vadd.f32 %v606, %v897
      %v899 = vpop.f32.mrb[0].mxu0
      %900 = vmatprep.mubr.bf16.mxu0 0
      %901 = vmatmul.mubr.bf16.gmra.mrb[0].mxu0 %v763
      %v902 = vpop.f32.mrb[0].mxu0
      %v903 = vadd.f32 %v611, %v902
      %v904 = vpop.f32.mrb[0].mxu0
      %v905 = vpop.f32.mrb[0].mxu0
      %v906 = vadd.f32 %v614, %v905
      %v907 = vpop.f32.mrb[0].mxu0
      %908 = vmatprep.mubr.bf16.mxu0 0
      %909 = vmatmul.mubr.bf16.gmra.mrb[0].mxu0 %v766
      %v910 = vpop.f32.mrb[0].mxu0
      %v911 = vadd.f32 %v619, %v910
      %v912 = vpop.f32.mrb[0].mxu0
      %v913 = vpop.f32.mrb[0].mxu0
      %v914 = vadd.f32 %v622, %v913
      %v915 = vpop.f32.mrb[0].mxu0
      %916 = vmatprep.mubr.bf16.mxu0 0
      %917 = vmatmul.mubr.bf16.gmra.mrb[0].mxu0 %v769
      %v918 = vpop.f32.mrb[0].mxu0
      %v919 = vadd.f32 %v627, %v918
      %v920 = vpop.f32.mrb[0].mxu0
      %v921 = vpop.f32.mrb[0].mxu0
      %v922 = vadd.f32 %v630, %v921
      %v923 = vpop.f32.mrb[0].mxu0
      %924 = vmatprep.mubr.bf16.mxu0 0
      %925 = vmatmul.mubr.bf16.gmra.mrb[0].mxu0 %v772
      %v926 = vpop.f32.mrb[0].mxu0
      %v927 = vadd.f32 %v635, %v926
      %v928 = vpop.f32.mrb[0].mxu0
      %v929 = vpop.f32.mrb[0].mxu0
      %v930 = vadd.f32 %v638, %v929
      %v931 = vpop.f32.mrb[0].mxu0
      %932 = vmatprep.mubr.bf16.mxu0 0
      %933 = vmatmul.mubr.bf16.gmra.mrb[0].mxu0 %v775
      %v934 = vpop.f32.mrb[0].mxu0
      %v935 = vadd.f32 %v643, %v934
      %v936 = vpop.f32.mrb[0].mxu0
      %v937 = vpop.f32.mrb[0].mxu0
      %v938 = vadd.f32 %v646, %v937
      %v939 = vpop.f32.mrb[0].mxu0
      %940 = vdwg.mxu0
      %v941 = vld [vmem:[%s4] sm:$0x1]
      %v943 = vlaneseq
      %v944 = vshrl.u32 %v943, 7
      %v945 = vsub.s32 0, %v944
      %v946 = vrot.slane %v941, %v945
      %v948 = vadd.f32 %v815, %v946
      %v949 = vadd.f32 %v818, %v946
      %v950 = vadd.f32 %v823, %v946
      %v951 = vadd.f32 %v826, %v946
      %v952 = vadd.f32 %v831, %v946
      %v953 = vadd.f32 %v834, %v946
      %v954 = vadd.f32 %v839, %v946
      %v955 = vadd.f32 %v842, %v946
      %v956 = vadd.f32 %v847, %v946
      %v957 = vadd.f32 %v850, %v946
      %v958 = vadd.f32 %v855, %v946
      %v959 = vadd.f32 %v858, %v946
      %v960 = vadd.f32 %v863, %v946
      %v961 = vadd.f32 %v866, %v946
      %v962 = vadd.f32 %v871, %v946
      %v963 = vadd.f32 %v874, %v946
      %v964 = vadd.f32 %v879, %v946
      %v965 = vadd.f32 %v882, %v946
      %v966 = vadd.f32 %v887, %v946
      %v967 = vadd.f32 %v890, %v946
      %v968 = vadd.f32 %v895, %v946
      %v969 = vadd.f32 %v898, %v946
      %v970 = vadd.f32 %v903, %v946
      %v971 = vadd.f32 %v906, %v946
      %v972 = vadd.f32 %v911, %v946
      %v973 = vadd.f32 %v914, %v946
      %v974 = vadd.f32 %v919, %v946
      %v975 = vadd.f32 %v922, %v946
      %v976 = vadd.f32 %v927, %v946
      %v977 = vadd.f32 %v930, %v946
      %v978 = vadd.f32 %v935, %v946
      %v979 = vadd.f32 %v938, %v946
      %vm980 = vcmask 64512
      %981 = vst.msk [vmem:[%s282] sm:$0xff] %vm980, %v948
      %982 = vst.msk [vmem:[%s282 + $0x8] sm:$0xff] %vm980, %v949
      %983 = vst.msk [vmem:[%s282 + $0x10] sm:$0xff] %vm980, %v950
      %984 = vst.msk [vmem:[%s282 + $0x18] sm:$0xff] %vm980, %v951
      %985 = vst.msk [vmem:[%s282 + $0x20] sm:$0xff] %vm980, %v952
      %986 = vst.msk [vmem:[%s282 + $0x28] sm:$0xff] %vm980, %v953
      %987 = vst.msk [vmem:[%s282 + $0x30] sm:$0xff] %vm980, %v954
      %988 = vst.msk [vmem:[%s282 + $0x38] sm:$0xff] %vm980, %v955
      %989 = vst.msk [vmem:[%s282 + $0x40] sm:$0xff] %vm980, %v956
      %990 = vst.msk [vmem:[%s282 + $0x48] sm:$0xff] %vm980, %v957
      %991 = vst.msk [vmem:[%s282 + $0x50] sm:$0xff] %vm980, %v958
      %992 = vst.msk [vmem:[%s282 + $0x58] sm:$0xff] %vm980, %v959
      %993 = vst.msk [vmem:[%s282 + $0x60] sm:$0xff] %vm980, %v960
      %994 = vst.msk [vmem:[%s282 + $0x68] sm:$0xff] %vm980, %v961
      %995 = vst.msk [vmem:[%s282 + $0x70] sm:$0xff] %vm980, %v962
      %996 = vst.msk [vmem:[%s282 + $0x78] sm:$0xff] %vm980, %v963
      %997 = vst.msk [vmem:[%s282 + $0x80] sm:$0xff] %vm980, %v964
      %998 = vst.msk [vmem:[%s282 + $0x88] sm:$0xff] %vm980, %v965
      %999 = vst.msk [vmem:[%s282 + $0x90] sm:$0xff] %vm980, %v966
      %1000 = vst.msk [vmem:[%s282 + $0x98] sm:$0xff] %vm980, %v967
      %1001 = vst.msk [vmem:[%s282 + $0xa0] sm:$0xff] %vm980, %v968
      %1002 = vst.msk [vmem:[%s282 + $0xa8] sm:$0xff] %vm980, %v969
      %1003 = vst.msk [vmem:[%s282 + $0xb0] sm:$0xff] %vm980, %v970
      %1004 = vst.msk [vmem:[%s282 + $0xb8] sm:$0xff] %vm980, %v971
      %1005 = vst.msk [vmem:[%s282 + $0xc0] sm:$0xff] %vm980, %v972
      %1006 = vst.msk [vmem:[%s282 + $0xc8] sm:$0xff] %vm980, %v973
      %1007 = vst.msk [vmem:[%s282 + $0xd0] sm:$0xff] %vm980, %v974
      %1008 = vst.msk [vmem:[%s282 + $0xd8] sm:$0xff] %vm980, %v975
      %1009 = vst.msk [vmem:[%s282 + $0xe0] sm:$0xff] %vm980, %v976
      %1010 = vst.msk [vmem:[%s282 + $0xe8] sm:$0xff] %vm980, %v977
      %1011 = vst.msk [vmem:[%s282 + $0xf0] sm:$0xff] %vm980, %v978
      %1012 = vst.msk [vmem:[%s282 + $0xf8] sm:$0xff] %vm980, %v979
      %v1013 = vsel %vm980, %v948, 0.0
      %v1014 = vsel %vm980, %v949, 0.0
      %v1015 = vadd.f32 %v1013, %v1014
      %v1016 = vsel %vm980, %v950, 0.0
      %v1017 = vadd.f32 %v1015, %v1016
      %v1018 = vsel %vm980, %v951, 0.0
      %v1019 = vadd.f32 %v1017, %v1018
      %v1020 = vsel %vm980, %v952, 0.0
      %v1021 = vadd.f32 %v1019, %v1020
      %v1022 = vsel %vm980, %v953, 0.0
      %v1023 = vadd.f32 %v1021, %v1022
      %v1024 = vsel %vm980, %v954, 0.0
      %v1025 = vadd.f32 %v1023, %v1024
      %v1026 = vsel %vm980, %v955, 0.0
      %v1027 = vadd.f32 %v1025, %v1026
      %v1028 = vsel %vm980, %v956, 0.0
      %v1029 = vadd.f32 %v1027, %v1028
      %v1030 = vsel %vm980, %v957, 0.0
      %v1031 = vadd.f32 %v1029, %v1030
      %v1032 = vsel %vm980, %v958, 0.0
      %v1033 = vadd.f32 %v1031, %v1032
      %v1034 = vsel %vm980, %v959, 0.0
      %v1035 = vadd.f32 %v1033, %v1034
      %v1036 = vsel %vm980, %v960, 0.0
      %v1037 = vadd.f32 %v1035, %v1036
      %v1038 = vsel %vm980, %v961, 0.0
      %v1039 = vadd.f32 %v1037, %v1038
      %v1040 = vsel %vm980, %v962, 0.0
      %v1041 = vadd.f32 %v1039, %v1040
      %v1042 = vsel %vm980, %v963, 0.0
      %v1043 = vadd.f32 %v1041, %v1042
      %v1044 = vsel %vm980, %v964, 0.0
      %v1045 = vadd.f32 %v1043, %v1044
      %v1046 = vsel %vm980, %v965, 0.0
      %v1047 = vadd.f32 %v1045, %v1046
      %v1048 = vsel %vm980, %v966, 0.0
      %v1049 = vadd.f32 %v1047, %v1048
      %v1050 = vsel %vm980, %v967, 0.0
      %v1051 = vadd.f32 %v1049, %v1050
      %v1052 = vsel %vm980, %v968, 0.0
      %v1053 = vadd.f32 %v1051, %v1052
      %v1054 = vsel %vm980, %v969, 0.0
      %v1055 = vadd.f32 %v1053, %v1054
      %v1056 = vsel %vm980, %v970, 0.0
      %v1057 = vadd.f32 %v1055, %v1056
      %v1058 = vsel %vm980, %v971, 0.0
      %v1059 = vadd.f32 %v1057, %v1058
      %v1060 = vsel %vm980, %v972, 0.0
      %v1061 = vadd.f32 %v1059, %v1060
      %v1062 = vsel %vm980, %v973, 0.0
      %v1063 = vadd.f32 %v1061, %v1062
      %v1064 = vsel %vm980, %v974, 0.0
      %v1065 = vadd.f32 %v1063, %v1064
      %v1066 = vsel %vm980, %v975, 0.0
      %v1067 = vadd.f32 %v1065, %v1066
      %v1068 = vsel %vm980, %v976, 0.0
      %v1069 = vadd.f32 %v1067, %v1068
      %v1070 = vsel %vm980, %v977, 0.0
      %v1071 = vadd.f32 %v1069, %v1070
      %v1072 = vsel %vm980, %v978, 0.0
      %v1073 = vadd.f32 %v1071, %v1072
      %v1074 = vsel %vm980, %v979, 0.0
      %v1075 = vadd.f32 %v1073, %v1074
      %v1076 = vrot.slane %v1075, 4
      %v1077 = vadd.f32 %v1075, %v1076
      %v1078 = vrot.slane %v1077, 2
      %v1079 = vadd.f32 %v1077, %v1078
      %v1080 = vrot.slane %v1079, 1
      %v1081 = vadd.f32 %v1079, %v1080
      %v1082 = vrcp.pop 256.0
      %v1083 = vmul.f32 %v1081, %v1082
      %v1084 = vsub.f32 %v948, %v1083
      %v1085 = vsub.f32 %v949, %v1083
      %v1086 = vsub.f32 %v950, %v1083
      %v1087 = vsub.f32 %v951, %v1083
      %v1088 = vsub.f32 %v952, %v1083
      %v1089 = vsub.f32 %v953, %v1083
      %v1090 = vsub.f32 %v954, %v1083
      %v1091 = vsub.f32 %v955, %v1083
      %v1092 = vsub.f32 %v956, %v1083
      %v1093 = vsub.f32 %v957, %v1083
      %v1094 = vsub.f32 %v958, %v1083
      %v1095 = vsub.f32 %v959, %v1083
      %v1096 = vsub.f32 %v960, %v1083
      %v1097 = vsub.f32 %v961, %v1083
      %v1098 = vsub.f32 %v962, %v1083
      %v1099 = vsub.f32 %v963, %v1083
      %v1100 = vsub.f32 %v964, %v1083
      %v1101 = vsub.f32 %v965, %v1083
      %v1102 = vsub.f32 %v966, %v1083
      %v1103 = vsub.f32 %v967, %v1083
      %v1104 = vsub.f32 %v968, %v1083
      %v1105 = vsub.f32 %v969, %v1083
      %v1106 = vsub.f32 %v970, %v1083
      %v1107 = vsub.f32 %v971, %v1083
      %v1108 = vsub.f32 %v972, %v1083
      %v1109 = vsub.f32 %v973, %v1083
      %v1110 = vsub.f32 %v974, %v1083
      %v1111 = vsub.f32 %v975, %v1083
      %v1112 = vsub.f32 %v976, %v1083
      %v1113 = vsub.f32 %v977, %v1083
      %v1114 = vsub.f32 %v978, %v1083
      %v1115 = vsub.f32 %v979, %v1083
      %v1116 = vmul.f32 %v1084, %v1084
      %v1117 = vmul.f32 %v1085, %v1085
      %v1118 = vmul.f32 %v1086, %v1086
      %v1119 = vmul.f32 %v1087, %v1087
      %v1120 = vmul.f32 %v1088, %v1088
      %v1121 = vmul.f32 %v1089, %v1089
      %v1122 = vmul.f32 %v1090, %v1090
      %v1123 = vmul.f32 %v1091, %v1091
      %v1124 = vmul.f32 %v1092, %v1092
      %v1125 = vmul.f32 %v1093, %v1093
      %v1126 = vmul.f32 %v1094, %v1094
      %v1127 = vmul.f32 %v1095, %v1095
      %v1128 = vmul.f32 %v1096, %v1096
      %v1129 = vmul.f32 %v1097, %v1097
      %v1130 = vmul.f32 %v1098, %v1098
      %v1131 = vmul.f32 %v1099, %v1099
      %v1132 = vmul.f32 %v1100, %v1100
      %v1133 = vmul.f32 %v1101, %v1101
      %v1134 = vmul.f32 %v1102, %v1102
      %v1135 = vmul.f32 %v1103, %v1103
      %v1136 = vmul.f32 %v1104, %v1104
      %v1137 = vmul.f32 %v1105, %v1105
      %v1138 = vmul.f32 %v1106, %v1106
      %v1139 = vmul.f32 %v1107, %v1107
      %v1140 = vmul.f32 %v1108, %v1108
      %v1141 = vmul.f32 %v1109, %v1109
      %v1142 = vmul.f32 %v1110, %v1110
      %v1143 = vmul.f32 %v1111, %v1111
      %v1144 = vmul.f32 %v1112, %v1112
      %v1145 = vmul.f32 %v1113, %v1113
      %v1146 = vmul.f32 %v1114, %v1114
      %v1147 = vmul.f32 %v1115, %v1115
      %v1148 = vsel %vm980, %v1116, 0.0
      %v1149 = vsel %vm980, %v1117, 0.0
      %v1150 = vadd.f32 %v1148, %v1149
      %v1151 = vsel %vm980, %v1118, 0.0
      %v1152 = vadd.f32 %v1150, %v1151
      %v1153 = vsel %vm980, %v1119, 0.0
      %v1154 = vadd.f32 %v1152, %v1153
      %v1155 = vsel %vm980, %v1120, 0.0
      %v1156 = vadd.f32 %v1154, %v1155
      %v1157 = vsel %vm980, %v1121, 0.0
      %v1158 = vadd.f32 %v1156, %v1157
      %v1159 = vsel %vm980, %v1122, 0.0
      %v1160 = vadd.f32 %v1158, %v1159
      %v1161 = vsel %vm980, %v1123, 0.0
      %v1162 = vadd.f32 %v1160, %v1161
      %v1163 = vsel %vm980, %v1124, 0.0
      %v1164 = vadd.f32 %v1162, %v1163
      %v1165 = vsel %vm980, %v1125, 0.0
      %v1166 = vadd.f32 %v1164, %v1165
      %v1167 = vsel %vm980, %v1126, 0.0
      %v1168 = vadd.f32 %v1166, %v1167
      %v1169 = vsel %vm980, %v1127, 0.0
      %v1170 = vadd.f32 %v1168, %v1169
      %v1171 = vsel %vm980, %v1128, 0.0
      %v1172 = vadd.f32 %v1170, %v1171
      %v1173 = vsel %vm980, %v1129, 0.0
      %v1174 = vadd.f32 %v1172, %v1173
      %v1175 = vsel %vm980, %v1130, 0.0
      %v1176 = vadd.f32 %v1174, %v1175
      %v1177 = vsel %vm980, %v1131, 0.0
      %v1178 = vadd.f32 %v1176, %v1177
      %v1179 = vsel %vm980, %v1132, 0.0
      %v1180 = vadd.f32 %v1178, %v1179
      %v1181 = vsel %vm980, %v1133, 0.0
      %v1182 = vadd.f32 %v1180, %v1181
      %v1183 = vsel %vm980, %v1134, 0.0
      %v1184 = vadd.f32 %v1182, %v1183
      %v1185 = vsel %vm980, %v1135, 0.0
      %v1186 = vadd.f32 %v1184, %v1185
      %v1187 = vsel %vm980, %v1136, 0.0
      %v1188 = vadd.f32 %v1186, %v1187
      %v1189 = vsel %vm980, %v1137, 0.0
      %v1190 = vadd.f32 %v1188, %v1189
      %v1191 = vsel %vm980, %v1138, 0.0
      %v1192 = vadd.f32 %v1190, %v1191
      %v1193 = vsel %vm980, %v1139, 0.0
      %v1194 = vadd.f32 %v1192, %v1193
      %v1195 = vsel %vm980, %v1140, 0.0
      %v1196 = vadd.f32 %v1194, %v1195
      %v1197 = vsel %vm980, %v1141, 0.0
      %v1198 = vadd.f32 %v1196, %v1197
      %v1199 = vsel %vm980, %v1142, 0.0
      %v1200 = vadd.f32 %v1198, %v1199
      %v1201 = vsel %vm980, %v1143, 0.0
      %v1202 = vadd.f32 %v1200, %v1201
      %v1203 = vsel %vm980, %v1144, 0.0
      %v1204 = vadd.f32 %v1202, %v1203
      %v1205 = vsel %vm980, %v1145, 0.0
      %v1206 = vadd.f32 %v1204, %v1205
      %v1207 = vsel %vm980, %v1146, 0.0
      %v1208 = vadd.f32 %v1206, %v1207
      %v1209 = vsel %vm980, %v1147, 0.0
      %v1210 = vadd.f32 %v1208, %v1209
      %v1211 = vrot.slane %v1210, 4
      %v1212 = vadd.f32 %v1210, %v1211
      %v1213 = vrot.slane %v1212, 2
      %v1214 = vadd.f32 %v1212, %v1213
      %v1215 = vrot.slane %v1214, 1
      %v1216 = vadd.f32 %v1214, %v1215
      %vm1217 = vcmask 1040384
      %v1218 = vsel %vm1217, %v1083, %v1216
      %vm1219 = vcmask 58368
      %1220 = vst.msk [vmem:[%s287] sm:$0x3] %vm1219, %v1218
      %s1221 = smul.u32 32, %s18
      %p1222 = scmp.lt.s32.totalorder %s1221, 63
      %s1223 = scalar_select %p1222, %s1221, 63
      %s1224 = smul.addr %s1223, 8
      %s1225 = scalar_lea.vmem %s5, %s1224
      %p1226 = scmp.lt.s32.totalorder %s18, 1
      %s1227 = scalar_select %p1226, %s18, 1
      %s1228 = smul.addr %s1227, 2
      %s1229 = scalar_lea.vmem %s6, %s1228
      // Predicated region
      $region41: #{hlayer_forward.3} parent=39 // pred_check
        %p1230 = pneg %p151
      $region42: #{hlayer_forward.3} parent=39 // pred_check_branch
        %1232 = sbr.rel (%p1230) target = $region44
      $region43: #{hlayer_forward.3} parent=39 // pred_region
        %s1233 = smul.u32 32, %s18
      $region44: #{hlayer_forward.3} parent=39 // pred_fallthru
        _
      // Predicated region
      $region45: #{hlayer_forward.3} parent=39 // pred_check
        %p1234 = pneg %p177
      $region46: #{hlayer_forward.3} parent=39 // pred_check_branch
        %1236 = sbr.rel (%p1234) target = $region48
      $region47: #{hlayer_forward.3} parent=39 // pred_region
        _
      $region48: #{hlayer_forward.3} parent=39 // pred_fallthru
        _
    $region40: #{hlayer_forward.3} parent=5 // pred_fallthru
      _
    %p1237 = scmp.le.s32.totalorder 2, %s13
    // Predicated region
    $region49: #{hlayer_forward.3} parent=5 // pred_check
      %p1238 = pneg %p1237
    $region50: #{hlayer_forward.3} parent=5 // pred_check_branch
      %1240 = sbr.rel (%p1238) target = $region52
    $region51: #{hlayer_forward.3} parent=5 // pred_region
      %s1241 = ssub.s32 %s13, 2
      // Predicated region
      $region53: #{hlayer_forward.3} parent=51 // pred_check
        %p1242 = pneg %p157
      $region54: #{hlayer_forward.3} parent=51 // pred_check_branch
        %1244 = sbr.rel (%p1242) target = $region56
      $region55: #{hlayer_forward.3} parent=51 // pred_region
        %s1245 = smul.u32 32, %s19
        %p1246 = scmp.lt.s32.totalorder %s1245, 63
        %s1247 = scalar_select %p1246, %s1245, 63
        %s1248 = smul.addr %s1247, 8
        %s1249 = scalar_lea.vmem %s5, %s1248
      $region56: #{hlayer_forward.3} parent=51 // pred_fallthru
        _
      // Predicated region
      $region57: #{hlayer_forward.3} parent=51 // pred_check
        %p1250 = pneg %p183
      $region58: #{hlayer_forward.3} parent=51 // pred_check_branch
        %1252 = sbr.rel (%p1250) target = $region60
      $region59: #{hlayer_forward.3} parent=51 // pred_region
        %p1253 = scmp.lt.s32.totalorder %s19, 1
        %s1254 = scalar_select %p1253, %s19, 1
        %s1255 = smul.addr %s1254, 2
        %s1256 = scalar_lea.vmem %s6, %s1255
      $region60: #{hlayer_forward.3} parent=51 // pred_fallthru
        _
    $region52: #{hlayer_forward.3} parent=5 // pred_fallthru
      _
  $region6: #{hlayer_forward.3} parent=0 // loop_footer
    %s17 = sadd.s32 1, %s13
  $region7: #{hlayer_forward.3} parent=0 // loop_footer_branch
    %12 = sbr.rel target = $region3
  $region8: #{hlayer_forward.3} parent=0 // loop_exit
    _

// kernel: hlayer_forward.5
$region0: #{hlayer_forward.5}
  #allocation0 [shape = 'u32[]', space=smem, size = 0x4, offset = 0x4, fixed_abs, tag = 'smem constant byte address 0x4 - core index']
  #allocation1 [shape = 'u32[144,128]{1,0:T(1,128)}', space=vmem, size = 0x12000, scoped, tag = 'internal scratch']
  %s0 = inlined_call_operand.vmem [shape: f32[32,128], index: 0, kind: input, shape index: {}]
  %s1 = inlined_call_operand.vmem [shape: f32[1,128], index: 1, kind: input, shape index: {}]
  %s2 = inlined_call_operand.vmem [shape: f32[1,128], index: 2, kind: input, shape index: {}]
  %s3 = inlined_call_operand.vmem [shape: f32[32,128], index: 3, kind: output, shape index: {}]
  %s4 = sld [smem:[#allocation0]]
  $region45: #{hlayer_forward.5} parent=0
    _
  %s6 = ssub.s32 1, %s4
  %s7 = scalar_select 0, %s6, %s4
  loop: start=0, step=1, limit=4
  $region2: #{hlayer_forward.5} parent=0 // loop_pre_header
    _
  $region3: #{hlayer_forward.5} parent=0 // loop_header
    %s9 = sphi 0, %s13
    %p10 = scmp.ge.s32.totalorder %s9, 4
    %s19 = sphi 0, %s21
    %s22 = sphi 0, %s19
    %s23 = sphi 0, %s22
    %s39 = sphi 0, %s23
    %s43 = sphi 0, %s43
    %s45 = sphi 0, %s43
    %s46 = sphi 0, %s45
    %s60 = sphi 0, %s46
    %s64 = sphi 0, %s64
    %s66 = sphi 0, %s64
    %s67 = sphi 0, %s66
    %s81 = sphi 0, %s67
    %s87 = sphi 0, %s89
    %s90 = sphi 0, %s87
    %s91 = sphi 0, %s90
    %s107 = sphi 0, %s91
  $region4: #{hlayer_forward.5} parent=0 // loop_header_branch
    %12 = sbr.rel (%p10) target = $region8
  $region5: #{hlayer_forward.5} parent=0 // loop_body
    %s14 = ssub.s32 %s9, 1
    %s15 = ssub.s32 %s9, 2
    %s16 = sadd.s32 %s9, 1
    %s17 = ssub.s32 %s9, %s16
    %p18 = scmp.eq.s32.totalorder %s17, 0
    %s20 = sadd.s32 %s19, 1
    %s21 = scalar_select %p18, %s19, %s20
    %p24 = pneg %p18
    %p25 = scmp.eq.s32.totalorder %s9, 1
    %p26 = por %p24, %p25
    %p27 = scmp.ne.s32.totalorder %s19, %s22
    %p28 = scmp.eq.s32.totalorder %s9, 0
    %p29 = por %p27, %p28
    %p30 = scmp.ne.s32.totalorder %s19, %s22
    %p31 = scmp.eq.s32.totalorder %s14, 1
    %p32 = por %p30, %p31
    %p33 = scmp.ne.s32.totalorder %s22, %s23
    %p34 = scmp.eq.s32.totalorder %s14, 0
    %p35 = por %p33, %p34
    %p36 = scmp.ne.s32.totalorder %s22, %s23
    %p37 = scmp.eq.s32.totalorder %s15, 1
    %p38 = por %p36, %p37
    %p40 = scmp.ne.s32.totalorder %s23, %s39
    %p41 = scmp.eq.s32.totalorder %s15, 0
    %p42 = por %p40, %p41
    %s44 = sadd.s32 %s43, 1
    %p47 = scmp.eq.s32.totalorder %s9, 1
    %p48 = scmp.ne.s32.totalorder %s43, %s45
    %p49 = scmp.eq.s32.totalorder %s9, 0
    %p50 = por %p48, %p49
    %p51 = scmp.ne.s32.totalorder %s43, %s45
    %p52 = scmp.eq.s32.totalorder %s14, 1
    %p53 = por %p51, %p52
    %p54 = scmp.ne.s32.totalorder %s45, %s46
    %p55 = scmp.eq.s32.totalorder %s14, 0
    %p56 = por %p54, %p55
    %p57 = scmp.ne.s32.totalorder %s45, %s46
    %p58 = scmp.eq.s32.totalorder %s15, 1
    %p59 = por %p57, %p58
    %p61 = scmp.ne.s32.totalorder %s46, %s60
    %p62 = scmp.eq.s32.totalorder %s15, 0
    %p63 = por %p61, %p62
    %s65 = sadd.s32 %s64, 1
    %p68 = scmp.eq.s32.totalorder %s9, 1
    %p69 = scmp.ne.s32.totalorder %s64, %s66
    %p70 = scmp.eq.s32.totalorder %s9, 0
    %p71 = por %p69, %p70
    %p72 = scmp.ne.s32.totalorder %s64, %s66
    %p73 = scmp.eq.s32.totalorder %s14, 1
    %p74 = por %p72, %p73
    %p75 = scmp.ne.s32.totalorder %s66, %s67
    %p76 = scmp.eq.s32.totalorder %s14, 0
    %p77 = por %p75, %p76
    %p78 = scmp.ne.s32.totalorder %s66, %s67
    %p79 = scmp.eq.s32.totalorder %s15, 1
    %p80 = por %p78, %p79
    %p82 = scmp.ne.s32.totalorder %s67, %s81
    %p83 = scmp.eq.s32.totalorder %s15, 0
    %p84 = por %p82, %p83
    %s85 = ssub.s32 %s9, %s16
    %p86 = scmp.eq.s32.totalorder %s85, 0
    %s88 = sadd.s32 %s87, 1
    %s89 = scalar_select %p86, %s87, %s88
    %p92 = pneg %p86
    %p93 = scmp.eq.s32.totalorder %s9, 1
    %p94 = por %p92, %p93
    %p95 = scmp.ne.s32.totalorder %s87, %s90
    %p96 = scmp.eq.s32.totalorder %s9, 0
    %p97 = por %p95, %p96
    %p98 = scmp.ne.s32.totalorder %s87, %s90
    %p99 = scmp.eq.s32.totalorder %s14, 1
    %p100 = por %p98, %p99
    %p101 = scmp.ne.s32.totalorder %s90, %s91
    %p102 = scmp.eq.s32.totalorder %s14, 0
    %p103 = por %p101, %p102
    %p104 = scmp.ne.s32.totalorder %s90, %s91
    %p105 = scmp.eq.s32.totalorder %s15, 1
    %p106 = por %p104, %p105
    %p108 = scmp.ne.s32.totalorder %s91, %s107
    %p109 = scmp.eq.s32.totalorder %s15, 0
    %p110 = por %p108, %p109
    %p111 = scmp.le.s32.totalorder 1, %s9
    %p112 = scmp.lt.s32.totalorder %s9, 3
    %p113 = pnand %p111, %p112
    %p114 = pneg %p113
    // Predicated region
    $region9: #{hlayer_forward.5} parent=5 // pred_check
      _
    $region10: #{hlayer_forward.5} parent=5 // pred_check_branch
      %116 = sbr.rel (%p113) target = $region12
    $region11: #{hlayer_forward.5} parent=5 // pred_region
      %s117 = ssub.s32 %s9, 1
      // Predicated region
      $region13: #{hlayer_forward.5} parent=11 // pred_check
        %p118 = pneg %p56
      $region14: #{hlayer_forward.5} parent=11 // pred_check_branch
        %120 = sbr.rel (%p118) target = $region16
      $region15: #{hlayer_forward.5} parent=11 // pred_region
        _
      $region16: #{hlayer_forward.5} parent=11 // pred_fallthru
        _
      // Predicated region
      $region17: #{hlayer_forward.5} parent=11 // pred_check
        %p121 = pneg %p77
      $region18: #{hlayer_forward.5} parent=11 // pred_check_branch
        %123 = sbr.rel (%p121) target = $region20
      $region19: #{hlayer_forward.5} parent=11 // pred_region
        _
      $region20: #{hlayer_forward.5} parent=11 // pred_fallthru
        _
    $region12: #{hlayer_forward.5} parent=5 // pred_fallthru
      _
    %p124 = scmp.lt.s32.totalorder %s9, 2
    // Predicated region
    $region21: #{hlayer_forward.5} parent=5 // pred_check
      %p125 = pneg %p124
    $region22: #{hlayer_forward.5} parent=5 // pred_check_branch
      %127 = sbr.rel (%p125) target = $region24
    $region23: #{hlayer_forward.5} parent=5 // pred_region
      // Predicated region
      $region25: #{hlayer_forward.5} parent=23 // pred_check
        %p128 = pneg %p29
      $region26: #{hlayer_forward.5} parent=23 // pred_check_branch
        %130 = sbr.rel (%p128) target = $region28
      $region27: #{hlayer_forward.5} parent=23 // pred_region
        %s131 = smul.u32 2, %s9
        %p132 = scmp.lt.s32.totalorder %s131, 3
        %s133 = scalar_select %p132, %s131, 3
        %s134 = smul.addr %s133, 8
        %s135 = scalar_lea.vmem %s0, %s134
        %s136 = smul.u32 2, %s9
      $region28: #{hlayer_forward.5} parent=23 // pred_fallthru
        _
    $region24: #{hlayer_forward.5} parent=5 // pred_fallthru
      _
    %p137 = scmp.le.s32.totalorder 1, %s9
    %p138 = scmp.lt.s32.totalorder %s9, 3
    %p139 = pnand %p137, %p138
    %p140 = pneg %p139
    // Predicated region
    $region29: #{hlayer_forward.5} parent=5 // pred_check
      _
    $region30: #{hlayer_forward.5} parent=5 // pred_check_branch
      %142 = sbr.rel (%p139) target = $region32
    $region31: #{hlayer_forward.5} parent=5 // pred_region
      %s143 = ssub.s32 %s9, 1
      %s144 = smul.u32 2, %s14
      %p145 = scmp.lt.s32.totalorder %s144, 3
      %s146 = scalar_select %p145, %s144, 3
      %s147 = smul.addr %s146, 8
      %s148 = scalar_lea.vmem %s0, %s147
      %p149 = pneg %p35
      %p150 = pneg %p32
      %p151 = pneg %p56
      %p152 = pneg %p53
      %p153 = pneg %p77
      %p154 = pneg %p74
      %p155 = pneg %p103
      %p156 = pneg %p100
      %s157 = smul.u32 2, %s14
      %p158 = scmp.lt.s32.totalorder %s157, 3
      %s159 = scalar_select %p158, %s157, 3
      %s160 = smul.addr %s159, 8
      %s161 = scalar_lea.vmem %s3, %s160
      %s162 = smul.u32 2, %s14
      %p163 = scmp.lt.s32.totalorder %s162, 3
      %s164 = scalar_select %p163, %s162, 3
      %s165 = smul.addr %s164, 8
      %s166 = scalar_lea.vmem %s0, %s165
      %s167 = smul.u32 2, %s14
      %s168 = smul.u32 2, %s14
      %p169 = scmp.lt.s32.totalorder %s168, 3
      %s170 = scalar_select %p169, %s168, 3
      %s171 = smul.addr %s170, 8
      %s172 = scalar_lea.vmem %s3, %s171
      %s173 = smul.u32 2, %s14
      %v174 = vld [vmem:[%s166] sm:$0xff]
      %v175 = vld [vmem:[%s166 + $0x8] sm:$0xff]
      %v176 = vld [vmem:[%s1] sm:$0x1]
      %v178 = vlaneseq
      %v179 = vshrl.u32 %v178, 7
      %v180 = vsub.s32 0, %v179
      %v181 = vrot.slane %v176, %v180
      %v183 = vmul.f32 %v174, %v181
      %v184 = vmul.f32 %v175, %v181
      %v185 = vld [vmem:[%s2] sm:$0x1]
      %v187 = vlaneseq
      %v188 = vshrl.u32 %v187, 7
      %v189 = vsub.s32 0, %v188
      %v190 = vrot.slane %v185, %v189
      %v192 = vadd.f32 %v183, %v190
      %v193 = vadd.f32 %v184, %v190
      %v194 = vmax.f32 %v192, 0.0
      %v195 = vmax.f32 %v193, 0.0
      %196 = vst [vmem:[%s172] sm:$0xff] %v194
      %197 = vst [vmem:[%s172 + $0x8] sm:$0xff] %v195
      %s198 = smul.u32 2, %s14
      %p199 = scmp.lt.s32.totalorder %s198, 3
      %s200 = scalar_select %p199, %s198, 3
      %s201 = smul.addr %s200, 8
      %s202 = scalar_lea.vmem %s3, %s201
      // Predicated region
      $region33: #{hlayer_forward.5} parent=31 // pred_check
        %p203 = pneg %p100
      $region34: #{hlayer_forward.5} parent=31 // pred_check_branch
        %205 = sbr.rel (%p203) target = $region36
      $region35: #{hlayer_forward.5} parent=31 // pred_region
        %s206 = smul.u32 2, %s14
      $region36: #{hlayer_forward.5} parent=31 // pred_fallthru
        _
    $region32: #{hlayer_forward.5} parent=5 // pred_fallthru
      _
    %p207 = scmp.le.s32.totalorder 2, %s9
    // Predicated region
    $region37: #{hlayer_forward.5} parent=5 // pred_check
      %p208 = pneg %p207
    $region38: #{hlayer_forward.5} parent=5 // pred_check_branch
      %210 = sbr.rel (%p208) target = $region40
    $region39: #{hlayer_forward.5} parent=5 // pred_region
      %s211 = ssub.s32 %s9, 2
      // Predicated region
      $region41: #{hlayer_forward.5} parent=39 // pred_check
        %p212 = pneg %p106
      $region42: #{hlayer_forward.5} parent=39 // pred_check_branch
        %214 = sbr.rel (%p212) target = $region44
      $region43: #{hlayer_forward.5} parent=39 // pred_region
        %s215 = smul.u32 2, %s15
        %p216 = scmp.lt.s32.totalorder %s215, 3
        %s217 = scalar_select %p216, %s215, 3
        %s218 = smul.addr %s217, 8
        %s219 = scalar_lea.vmem %s3, %s218
      $region44: #{hlayer_forward.5} parent=39 // pred_fallthru
        _
    $region40: #{hlayer_forward.5} parent=5 // pred_fallthru
      _
  $region6: #{hlayer_forward.5} parent=0 // loop_footer
    %s13 = sadd.s32 1, %s9
  $region7: #{hlayer_forward.5} parent=0 // loop_footer_branch
    %8 = sbr.rel target = $region3
  $region8: #{hlayer_forward.5} parent=0 // loop_exit
    _

// kernel: hlayer_forward.4
$region0: #{hlayer_forward.4}
  #allocation0 [shape = 'u32[]', space=smem, size = 0x4, offset = 0x4, fixed_abs, tag = 'smem constant byte address 0x4 - core index']
  #allocation1 [shape = 'u32[144,128]{1,0:T(1,128)}', space=vmem, size = 0x12000, scoped, tag = 'internal scratch']
  #allocation2 [shape = 'f32[10,18,8]{2,1,0:T(8,128)}', space=vmem, size = 0x1e000, scoped, tag = 'scratch operand']
  %s0 = inlined_call_operand.vmem [shape: f32[2,16,16,8], index: 0, kind: input, shape index: {}, may-alias: {0,1,2}]
  %s1 = inlined_call_operand.vmem [shape: f32[2,16,16,8], index: 1, kind: input, shape index: {}, may-alias: {0,1,2}]
  %s2 = inlined_call_operand.vmem [shape: f32[2,16,16,8], index: 2, kind: input, shape index: {}, may-alias: {0,1,2}]
  %s3 = inlined_call_operand.vmem [shape: bf16[9,8,8], index: 3, kind: input, shape index: {}]
  %s4 = inlined_call_operand.vmem [shape: f32[1,8], index: 4, kind: input, shape index: {}]
  %s5 = inlined_call_operand.vmem [shape: f32[1,8], index: 5, kind: input, shape index: {}]
  %s6 = inlined_call_operand.vmem [shape: f32[1,8], index: 6, kind: input, shape index: {}]
  %s7 = inlined_call_operand.vmem [shape: f32[2,16,16,8], index: 7, kind: output, shape index: {0}]
  %s8 = inlined_call_operand.vmem [shape: f32[2,2,2,8], index: 8, kind: output, shape index: {1}]
  %9 = xla_tuple %s7, %s8
  %s10 = sld [smem:[#allocation0]]
  $region69: #{hlayer_forward.4} parent=0
    _
  %s12 = ssub.s32 1, %s10
  %s13 = scalar_select 0, %s12, %s10
  loop: start=0, step=1, limit=6
  $region2: #{hlayer_forward.4} parent=0 // loop_pre_header
    _
  $region3: #{hlayer_forward.4} parent=0 // loop_header
    %s15 = sphi 0, %s19
    %p16 = scmp.ge.s32.totalorder %s15, 6
    %s22 = sphi 0, %s34
    %s23 = sphi 0, %s30
    %s24 = sphi 0, %s22
    %s25 = sphi 0, %s23
    %s26 = sphi 0, %s24
    %s27 = sphi 0, %s25
    %s39 = sphi 0, %s41
    %s42 = sphi 0, %s39
    %s43 = sphi 0, %s42
    %s59 = sphi 0, %s43
    %s75 = sphi 0, %s77
    %s78 = sphi 0, %s75
    %s79 = sphi 0, %s78
    %s95 = sphi 0, %s79
    %s111 = sphi 0, %s113
    %s114 = sphi 0, %s111
    %s115 = sphi 0, %s114
    %s131 = sphi 0, %s115
    %s135 = sphi 0, %s135
    %s137 = sphi 0, %s135
    %s138 = sphi 0, %s137
    %s152 = sphi 0, %s138
    %s156 = sphi 0, %s156
    %s158 = sphi 0, %s156
    %s159 = sphi 0, %s158
    %s173 = sphi 0, %s159
    %s177 = sphi 0, %s177
    %s179 = sphi 0, %s177
    %s180 = sphi 0, %s179
    %s194 = sphi 0, %s180
    %s198 = sphi 0, %s198
    %s200 = sphi 0, %s198
    %s201 = sphi 0, %s200
    %s215 = sphi 0, %s201
    %s223 = sphi 0, %s225
    %s226 = sphi 0, %s223
    %s227 = sphi 0, %s226
    %s243 = sphi 0, %s227
    %s251 = sphi 0, %s253
    %s254 = sphi 0, %s251
    %s255 = sphi 0, %s254
    %s271 = sphi 0, %s255
  $region4: #{hlayer_forward.4} parent=0 // loop_header_branch
    %18 = sbr.rel (%p16) target = $region8
  $region5: #{hlayer_forward.4} parent=0 // loop_body
    %s20 = ssub.s32 %s15, 1
    %s21 = ssub.s32 %s15, 2
    %s28 = sadd.s32 1, %s23
    %p29 = scmp.ge.s32.totalorder %s28, 2
    %s30 = scalar_select %p29, 0, %s28
    %s31 = sadd.s32 1, %s22
    %s32 = scalar_select %p29, %s31, %s22
    %p33 = scmp.ge.s32.totalorder %s32, 2
    %s34 = scalar_select %p33, 0, %s32
    %s35 = ssub.s32 %s22, %s34
    %s36 = ssub.s32 %s23, %s30
    %s37 = sor.u32 %s35, %s36
    %p38 = scmp.eq.s32.totalorder %s37, 0
    %s40 = sadd.s32 %s39, 1
    %s41 = scalar_select %p38, %s39, %s40
    %p44 = pneg %p38
    %p45 = scmp.eq.s32.totalorder %s15, 3
    %p46 = por %p44, %p45
    %p47 = scmp.ne.s32.totalorder %s39, %s42
    %p48 = scmp.eq.s32.totalorder %s15, 0
    %p49 = por %p47, %p48
    %p50 = scmp.ne.s32.totalorder %s39, %s42
    %p51 = scmp.eq.s32.totalorder %s20, 3
    %p52 = por %p50, %p51
    %p53 = scmp.ne.s32.totalorder %s42, %s43
    %p54 = scmp.eq.s32.totalorder %s20, 0
    %p55 = por %p53, %p54
    %p56 = scmp.ne.s32.totalorder %s42, %s43
    %p57 = scmp.eq.s32.totalorder %s21, 3
    %p58 = por %p56, %p57
    %p60 = scmp.ne.s32.totalorder %s43, %s59
    %p61 = scmp.eq.s32.totalorder %s21, 0
    %p62 = por %p60, %p61
    %s63 = smul.u32 %s23, 8
    %s64 = ssub.s32 %s63, 1
    %p65 = scmp.gt.s32.totalorder %s64, 0
    %s66 = scalar_select %p65, %s64, 0
    %s67 = smul.u32 %s30, 8
    %s68 = ssub.s32 %s67, 1
    %p69 = scmp.gt.s32.totalorder %s68, 0
    %s70 = scalar_select %p69, %s68, 0
    %s71 = ssub.s32 %s22, %s34
    %s72 = ssub.s32 %s66, %s70
    %s73 = sor.u32 %s71, %s72
    %p74 = scmp.eq.s32.totalorder %s73, 0
    %s76 = sadd.s32 %s75, 1
    %s77 = scalar_select %p74, %s75, %s76
    %p80 = pneg %p74
    %p81 = scmp.eq.s32.totalorder %s15, 3
    %p82 = por %p80, %p81
    %p83 = scmp.ne.s32.totalorder %s75, %s78
    %p84 = scmp.eq.s32.totalorder %s15, 0
    %p85 = por %p83, %p84
    %p86 = scmp.ne.s32.totalorder %s75, %s78
    %p87 = scmp.eq.s32.totalorder %s20, 3
    %p88 = por %p86, %p87
    %p89 = scmp.ne.s32.totalorder %s78, %s79
    %p90 = scmp.eq.s32.totalorder %s20, 0
    %p91 = por %p89, %p90
    %p92 = scmp.ne.s32.totalorder %s78, %s79
    %p93 = scmp.eq.s32.totalorder %s21, 3
    %p94 = por %p92, %p93
    %p96 = scmp.ne.s32.totalorder %s79, %s95
    %p97 = scmp.eq.s32.totalorder %s21, 0
    %p98 = por %p96, %p97
    %s99 = smul.u32 %s23, 8
    %s100 = sadd.s32 %s99, 8
    %p101 = scmp.lt.s32.totalorder %s100, 15
    %s102 = scalar_select %p101, %s100, 15
    %s103 = smul.u32 %s30, 8
    %s104 = sadd.s32 %s103, 8
    %p105 = scmp.lt.s32.totalorder %s104, 15
    %s106 = scalar_select %p105, %s104, 15
    %s107 = ssub.s32 %s22, %s34
    %s108 = ssub.s32 %s102, %s106
    %s109 = sor.u32 %s107, %s108
    %p110 = scmp.eq.s32.totalorder %s109, 0
    %s112 = sadd.s32 %s111, 1
    %s113 = scalar_select %p110, %s111, %s112
    %p116 = pneg %p110
    %p117 = scmp.eq.s32.totalorder %s15, 3
    %p118 = por %p116, %p117
    %p119 = scmp.ne.s32.totalorder %s111, %s114
    %p120 = scmp.eq.s32.totalorder %s15, 0
    %p121 = por %p119, %p120
    %p122 = scmp.ne.s32.totalorder %s111, %s114
    %p123 = scmp.eq.s32.totalorder %s20, 3
    %p124 = por %p122, %p123
    %p125 = scmp.ne.s32.totalorder %s114, %s115
    %p126 = scmp.eq.s32.totalorder %s20, 0
    %p127 = por %p125, %p126
    %p128 = scmp.ne.s32.totalorder %s114, %s115
    %p129 = scmp.eq.s32.totalorder %s21, 3
    %p130 = por %p128, %p129
    %p132 = scmp.ne.s32.totalorder %s115, %s131
    %p133 = scmp.eq.s32.totalorder %s21, 0
    %p134 = por %p132, %p133
    %s136 = sadd.s32 %s135, 1
    %p139 = scmp.eq.s32.totalorder %s15, 3
    %p140 = scmp.ne.s32.totalorder %s135, %s137
    %p141 = scmp.eq.s32.totalorder %s15, 0
    %p142 = por %p140, %p141
    %p143 = scmp.ne.s32.totalorder %s135, %s137
    %p144 = scmp.eq.s32.totalorder %s20, 3
    %p145 = por %p143, %p144
    %p146 = scmp.ne.s32.totalorder %s137, %s138
    %p147 = scmp.eq.s32.totalorder %s20, 0
    %p148 = por %p146, %p147
    %p149 = scmp.ne.s32.totalorder %s137, %s138
    %p150 = scmp.eq.s32.totalorder %s21, 3
    %p151 = por %p149, %p150
    %p153 = scmp.ne.s32.totalorder %s138, %s152
    %p154 = scmp.eq.s32.totalorder %s21, 0
    %p155 = por %p153, %p154
    %s157 = sadd.s32 %s156, 1
    %p160 = scmp.eq.s32.totalorder %s15, 3
    %p161 = scmp.ne.s32.totalorder %s156, %s158
    %p162 = scmp.eq.s32.totalorder %s15, 0
    %p163 = por %p161, %p162
    %p164 = scmp.ne.s32.totalorder %s156, %s158
    %p165 = scmp.eq.s32.totalorder %s20, 3
    %p166 = por %p164, %p165
    %p167 = scmp.ne.s32.totalorder %s158, %s159
    %p168 = scmp.eq.s32.totalorder %s20, 0
    %p169 = por %p167, %p168
    %p170 = scmp.ne.s32.totalorder %s158, %s159
    %p171 = scmp.eq.s32.totalorder %s21, 3
    %p172 = por %p170, %p171
    %p174 = scmp.ne.s32.totalorder %s159, %s173
    %p175 = scmp.eq.s32.totalorder %s21, 0
    %p176 = por %p174, %p175
    %s178 = sadd.s32 %s177, 1
    %p181 = scmp.eq.s32.totalorder %s15, 3
    %p182 = scmp.ne.s32.totalorder %s177, %s179
    %p183 = scmp.eq.s32.totalorder %s15, 0
    %p184 = por %p182, %p183
    %p185 = scmp.ne.s32.totalorder %s177, %s179
    %p186 = scmp.eq.s32.totalorder %s20, 3
    %p187 = por %p185, %p186
    %p188 = scmp.ne.s32.totalorder %s179, %s180
    %p189 = scmp.eq.s32.totalorder %s20, 0
    %p190 = por %p188, %p189
    %p191 = scmp.ne.s32.totalorder %s179, %s180
    %p192 = scmp.eq.s32.totalorder %s21, 3
    %p193 = por %p191, %p192
    %p195 = scmp.ne.s32.totalorder %s180, %s194
    %p196 = scmp.eq.s32.totalorder %s21, 0
    %p197 = por %p195, %p196
    %s199 = sadd.s32 %s198, 1
    %p202 = scmp.eq.s32.totalorder %s15, 3
    %p203 = scmp.ne.s32.totalorder %s198, %s200
    %p204 = scmp.eq.s32.totalorder %s15, 0
    %p205 = por %p203, %p204
    %p206 = scmp.ne.s32.totalorder %s198, %s200
    %p207 = scmp.eq.s32.totalorder %s20, 3
    %p208 = por %p206, %p207
    %p209 = scmp.ne.s32.totalorder %s200, %s201
    %p210 = scmp.eq.s32.totalorder %s20, 0
    %p211 = por %p209, %p210
    %p212 = scmp.ne.s32.totalorder %s200, %s201
    %p213 = scmp.eq.s32.totalorder %s21, 3
    %p214 = por %p212, %p213
    %p216 = scmp.ne.s32.totalorder %s201, %s215
    %p217 = scmp.eq.s32.totalorder %s21, 0
    %p218 = por %p216, %p217
    %s219 = ssub.s32 %s22, %s34
    %s220 = ssub.s32 %s23, %s30
    %s221 = sor.u32 %s219, %s220
    %p222 = scmp.eq.s32.totalorder %s221, 0
    %s224 = sadd.s32 %s223, 1
    %s225 = scalar_select %p222, %s223, %s224
    %p228 = pneg %p222
    %p229 = scmp.eq.s32.totalorder %s15, 3
    %p230 = por %p228, %p229
    %p231 = scmp.ne.s32.totalorder %s223, %s226
    %p232 = scmp.eq.s32.totalorder %s15, 0
    %p233 = por %p231, %p232
    %p234 = scmp.ne.s32.totalorder %s223, %s226
    %p235 = scmp.eq.s32.totalorder %s20, 3
    %p236 = por %p234, %p235
    %p237 = scmp.ne.s32.totalorder %s226, %s227
    %p238 = scmp.eq.s32.totalorder %s20, 0
    %p239 = por %p237, %p238
    %p240 = scmp.ne.s32.totalorder %s226, %s227
    %p241 = scmp.eq.s32.totalorder %s21, 3
    %p242 = por %p240, %p241
    %p244 = scmp.ne.s32.totalorder %s227, %s243
    %p245 = scmp.eq.s32.totalorder %s21, 0
    %p246 = por %p244, %p245
    %s247 = ssub.s32 %s22, %s34
    %s248 = ssub.s32 %s23, %s30
    %s249 = sor.u32 %s247, %s248
    %p250 = scmp.eq.s32.totalorder %s249, 0
    %s252 = sadd.s32 %s251, 1
    %s253 = scalar_select %p250, %s251, %s252
    %p256 = pneg %p250
    %p257 = scmp.eq.s32.totalorder %s15, 3
    %p258 = por %p256, %p257
    %p259 = scmp.ne.s32.totalorder %s251, %s254
    %p260 = scmp.eq.s32.totalorder %s15, 0
    %p261 = por %p259, %p260
    %p262 = scmp.ne.s32.totalorder %s251, %s254
    %p263 = scmp.eq.s32.totalorder %s20, 3
    %p264 = por %p262, %p263
    %p265 = scmp.ne.s32.totalorder %s254, %s255
    %p266 = scmp.eq.s32.totalorder %s20, 0
    %p267 = por %p265, %p266
    %p268 = scmp.ne.s32.totalorder %s254, %s255
    %p269 = scmp.eq.s32.totalorder %s21, 3
    %p270 = por %p268, %p269
    %p272 = scmp.ne.s32.totalorder %s255, %s271
    %p273 = scmp.eq.s32.totalorder %s21, 0
    %p274 = por %p272, %p273
    %p275 = scmp.le.s32.totalorder 1, %s15
    %p276 = scmp.lt.s32.totalorder %s15, 5
    %p277 = pnand %p275, %p276
    %p278 = pneg %p277
    // Predicated region
    $region9: #{hlayer_forward.4} parent=5 // pred_check
      _
    $region10: #{hlayer_forward.4} parent=5 // pred_check_branch
      %280 = sbr.rel (%p277) target = $region12
    $region11: #{hlayer_forward.4} parent=5 // pred_region
      %s281 = ssub.s32 %s15, 1
      // Predicated region
      $region13: #{hlayer_forward.4} parent=11 // pred_check
        %p282 = pneg %p148
      $region14: #{hlayer_forward.4} parent=11 // pred_check_branch
        %284 = sbr.rel (%p282) target = $region16
      $region15: #{hlayer_forward.4} parent=11 // pred_region
        _
      $region16: #{hlayer_forward.4} parent=11 // pred_fallthru
        _
      // Predicated region
      $region17: #{hlayer_forward.4} parent=11 // pred_check
        %p285 = pneg %p169
      $region18: #{hlayer_forward.4} parent=11 // pred_check_branch
        %287 = sbr.rel (%p285) target = $region20
      $region19: #{hlayer_forward.4} parent=11 // pred_region
        _
      $region20: #{hlayer_forward.4} parent=11 // pred_fallthru
        _
      // Predicated region
      $region21: #{hlayer_forward.4} parent=11 // pred_check
        %p288 = pneg %p190
      $region22: #{hlayer_forward.4} parent=11 // pred_check_branch
        %290 = sbr.rel (%p288) target = $region24
      $region23: #{hlayer_forward.4} parent=11 // pred_region
        _
      $region24: #{hlayer_forward.4} parent=11 // pred_fallthru
        _
      // Predicated region
      $region25: #{hlayer_forward.4} parent=11 // pred_check
        %p291 = pneg %p211
      $region26: #{hlayer_forward.4} parent=11 // pred_check_branch
        %293 = sbr.rel (%p291) target = $region28
      $region27: #{hlayer_forward.4} parent=11 // pred_region
        _
      $region28: #{hlayer_forward.4} parent=11 // pred_fallthru
        _
    $region12: #{hlayer_forward.4} parent=5 // pred_fallthru
      _
    %p294 = scmp.lt.s32.totalorder %s15, 4
    // Predicated region
    $region29: #{hlayer_forward.4} parent=5 // pred_check
      %p295 = pneg %p294
    $region30: #{hlayer_forward.4} parent=5 // pred_check_branch
      %297 = sbr.rel (%p295) target = $region32
    $region31: #{hlayer_forward.4} parent=5 // pred_region
      // Predicated region
      $region33: #{hlayer_forward.4} parent=31 // pred_check
        %p298 = pneg %p49
      $region34: #{hlayer_forward.4} parent=31 // pred_check_branch
        %300 = sbr.rel (%p298) target = $region36
      $region35: #{hlayer_forward.4} parent=31 // pred_region
        %s301 = smul.u32 8, %s23
        %p302 = scmp.lt.s32.totalorder %s22, 1
        %s303 = scalar_select %p302, %s22, 1
        %p304 = scmp.lt.s32.totalorder %s301, 15
        %s305 = scalar_select %p304, %s301, 15
        %s306 = smul.addr %s305, 2
        %s307 = smul.addr %s303, 32
        %s308 = sadd.s32 %s306, %s307
        %s309 = smul.addr %s308, 8
        %s310 = scalar_lea.vmem %s0, %s309
        %s311 = smul.u32 8, %s23
      $region36: #{hlayer_forward.4} parent=31 // pred_fallthru
        _
      // Predicated region
      $region37: #{hlayer_forward.4} parent=31 // pred_check
        %p312 = pneg %p85
      $region38: #{hlayer_forward.4} parent=31 // pred_check_branch
        %314 = sbr.rel (%p312) target = $region40
      $region39: #{hlayer_forward.4} parent=31 // pred_region
        %s315 = smul.u32 %s23, 8
        %s316 = ssub.s32 %s315, 1
        %p317 = scmp.gt.s32.totalorder %s316, 0
        %s318 = scalar_select %p317, %s316, 0
        %p319 = scmp.lt.s32.totalorder %s22, 1
        %s320 = scalar_select %p319, %s22, 1
        %p321 = scmp.lt.s32.totalorder %s318, 15
        %s322 = scalar_select %p321, %s318, 15
        %s323 = smul.addr %s322, 2
        %s324 = smul.addr %s320, 32
        %s325 = sadd.s32 %s323, %s324
        %s326 = smul.addr %s325, 8
        %s327 = scalar_lea.vmem %s1, %s326
        %s328 = smul.u32 %s23, 8
        %s329 = ssub.s32 %s328, 1
        %p330 = scmp.gt.s32.totalorder %s329, 0
        %s331 = scalar_select %p330, %s329, 0
      $region40: #{hlayer_forward.4} parent=31 // pred_fallthru
        _
      // Predicated region
      $region41: #{hlayer_forward.4} parent=31 // pred_check
        %p332 = pneg %p121
      $region42: #{hlayer_forward.4} parent=31 // pred_check_branch
        %334 = sbr.rel (%p332) target = $region44
      $region43: #{hlayer_forward.4} parent=31 // pred_region
        %s335 = smul.u32 %s23, 8
        %s336 = sadd.s32 %s335, 8
        %p337 = scmp.lt.s32.totalorder %s336, 15
        %s338 = scalar_select %p337, %s336, 15
        %p339 = scmp.lt.s32.totalorder %s22, 1
        %s340 = scalar_select %p339, %s22, 1
        %p341 = scmp.lt.s32.totalorder %s338, 15
        %s342 = scalar_select %p341, %s338, 15
        %s343 = smul.addr %s342, 2
        %s344 = smul.addr %s340, 32
        %s345 = sadd.s32 %s343, %s344
        %s346 = smul.addr %s345, 8
        %s347 = scalar_lea.vmem %s2, %s346
        %s348 = smul.u32 %s23, 8
        %s349 = sadd.s32 %s348, 8
        %p350 = scmp.lt.s32.totalorder %s349, 15
        %s351 = scalar_select %p350, %s349, 15
      $region44: #{hlayer_forward.4} parent=31 // pred_fallthru
        _
    $region32: #{hlayer_forward.4} parent=5 // pred_fallthru
      _
    %p352 = scmp.le.s32.totalorder 1, %s15
    %p353 = scmp.lt.s32.totalorder %s15, 5
    %p354 = pnand %p352, %p353
    %p355 = pneg %p354
    // Predicated region
    $region45: #{hlayer_forward.4} parent=5 // pred_check
      _
    $region46: #{hlayer_forward.4} parent=5 // pred_check_branch
      %357 = sbr.rel (%p354) target = $region48
    $region47: #{hlayer_forward.4} parent=5 // pred_region
      %s358 = ssub.s32 %s15, 1
      %s359 = smul.u32 8, %s25
      %p360 = scmp.lt.s32.totalorder %s24, 1
      %s361 = scalar_select %p360, %s24, 1
      %p362 = scmp.lt.s32.totalorder %s359, 15
      %s363 = scalar_select %p362, %s359, 15
      %s364 = smul.addr %s363, 2
      %s365 = smul.addr %s361, 32
      %s366 = sadd.s32 %s364, %s365
      %s367 = smul.addr %s366, 8
      %s368 = scalar_lea.vmem %s0, %s367
      %p369 = pneg %p55
      %p370 = pneg %p52
      %s371 = smul.u32 %s25, 8
      %s372 = ssub.s32 %s371, 1
      %p373 = scmp.gt.s32.totalorder %s372, 0
      %s374 = scalar_select %p373, %s372, 0
      %p375 = scmp.lt.s32.totalorder %s24, 1
      %s376 = scalar_select %p375, %s24, 1
      %p377 = scmp.lt.s32.totalorder %s374, 15
      %s378 = scalar_select %p377, %s374, 15
      %s379 = smul.addr %s378, 2
      %s380 = smul.addr %s376, 32
      %s381 = sadd.s32 %s379, %s380
      %s382 = smul.addr %s381, 8
      %s383 = scalar_lea.vmem %s1, %s382
      %p384 = pneg %p91
      %p385 = pneg %p88
      %s386 = smul.u32 %s25, 8
      %s387 = sadd.s32 %s386, 8
      %p388 = scmp.lt.s32.totalorder %s387, 15
      %s389 = scalar_select %p388, %s387, 15
      %p390 = scmp.lt.s32.totalorder %s24, 1
      %s391 = scalar_select %p390, %s24, 1
      %p392 = scmp.lt.s32.totalorder %s389, 15
      %s393 = scalar_select %p392, %s389, 15
      %s394 = smul.addr %s393, 2
      %s395 = smul.addr %s391, 32
      %s396 = sadd.s32 %s394, %s395
      %s397 = smul.addr %s396, 8
      %s398 = scalar_lea.vmem %s2, %s397
      %p399 = pneg %p127
      %p400 = pneg %p124
      %p401 = pneg %p148
      %p402 = pneg %p145
      %p403 = pneg %p169
      %p404 = pneg %p166
      %p405 = pneg %p190
      %p406 = pneg %p187
      %p407 = pneg %p211
      %p408 = pneg %p208
      %p409 = pneg %p239
      %p410 = pneg %p236
      %s411 = smul.u32 8, %s25
      %p412 = scmp.lt.s32.totalorder %s24, 1
      %s413 = scalar_select %p412, %s24, 1
      %p414 = scmp.lt.s32.totalorder %s411, 15
      %s415 = scalar_select %p414, %s411, 15
      %s416 = smul.addr %s415, 2
      %s417 = smul.addr %s413, 32
      %s418 = sadd.s32 %s416, %s417
      %s419 = smul.addr %s418, 8
      %s420 = scalar_lea.vmem %s7, %s419
      %p421 = pneg %p267
      %p422 = pneg %p264
      %p423 = scmp.lt.s32.totalorder %s24, 1
      %s424 = scalar_select %p423, %s24, 1
      %p425 = scmp.lt.s32.totalorder %s25, 1
      %s426 = scalar_select %p425, %s25, 1
      %s427 = smul.addr %s424, 2
      %s428 = sadd.s32 %s426, %s427
      %s429 = smul.addr %s428, 2
      %s430 = scalar_lea.vmem %s8, %s429
      %s431 = smul.u32 8, %s25
      %p432 = scmp.lt.s32.totalorder %s24, 1
      %s433 = scalar_select %p432, %s24, 1
      %p434 = scmp.lt.s32.totalorder %s431, 15
      %s435 = scalar_select %p434, %s431, 15
      %s436 = smul.addr %s435, 2
      %s437 = smul.addr %s433, 32
      %s438 = sadd.s32 %s436, %s437
      %s439 = smul.addr %s438, 8
      %s440 = scalar_lea.vmem %s0, %s439
      %s441 = smul.u32 8, %s25
      %s442 = smul.u32 %s25, 8
      %s443 = ssub.s32 %s442, 1
      %p444 = scmp.gt.s32.totalorder %s443, 0
      %s445 = scalar_select %p444, %s443, 0
      %p446 = scmp.lt.s32.totalorder %s24, 1
      %s447 = scalar_select %p446, %s24, 1
      %p448 = scmp.lt.s32.totalorder %s445, 15
      %s449 = scalar_select %p448, %s445, 15
      %s450 = smul.addr %s449, 2
      %s451 = smul.addr %s447, 32
      %s452 = sadd.s32 %s450, %s451
      %s453 = smul.addr %s452, 8
      %s454 = scalar_lea.vmem %s1, %s453
      %s455 = smul.u32 %s25, 8
      %s456 = ssub.s32 %s455, 1
      %p457 = scmp.gt.s32.totalorder %s456, 0
      %s458 = scalar_select %p457, %s456, 0
      %s459 = smul.u32 %s25, 8
      %s460 = sadd.s32 %s459, 8
      %p461 = scmp.lt.s32.totalorder %s460, 15
      %s462 = scalar_select %p461, %s460, 15
      %p463 = scmp.lt.s32.totalorder %s24, 1
      %s464 = scalar_select %p463, %s24, 1
      %p465 = scmp.lt.s32.totalorder %s462, 15
      %s466 = scalar_select %p465, %s462, 15
      %s467 = smul.addr %s466, 2
      %s468 = smul.addr %s464, 32
      %s469 = sadd.s32 %s467, %s468
      %s470 = smul.addr %s469, 8
      %s471 = scalar_lea.vmem %s2, %s470
      %s472 = smul.u32 %s25, 8
      %s473 = sadd.s32 %s472, 8
      %p474 = scmp.lt.s32.totalorder %s473, 15
      %s475 = scalar_select %p474, %s473, 15
      %s476 = smul.u32 8, %s25
      %p477 = scmp.lt.s32.totalorder %s24, 1
      %s478 = scalar_select %p477, %s24, 1
      %p479 = scmp.lt.s32.totalorder %s476, 15
      %s480 = scalar_select %p479, %s476, 15
      %s481 = smul.addr %s480, 2
      %s482 = smul.addr %s478, 32
      %s483 = sadd.s32 %s481, %s482
      %s484 = smul.addr %s483, 8
      %s485 = scalar_lea.vmem %s7, %s484
      %s486 = smul.u32 8, %s25
      %p487 = scmp.lt.s32.totalorder %s24, 1
      %s488 = scalar_select %p487, %s24, 1
      %p489 = scmp.lt.s32.totalorder %s25, 1
      %s490 = scalar_select %p489, %s25, 1
      %s491 = smul.addr %s488, 2
      %s492 = sadd.s32 %s490, %s491
      %s493 = smul.addr %s492, 2
      %s494 = scalar_lea.vmem %s8, %s493
      %v496 = vld [vmem:[%s5] sm:$0x1]
      %v497 = vld [vmem:[%s6] sm:$0x1]
      %v498 = vld [vmem:[%s440] sm:$0xff]
      %v499 = vld [vmem:[%s440 + $0x8] sm:$0xff]
      %v500 = vld [vmem:[%s440 + $0x10] sm:$0xff]
      %v501 = vld [vmem:[%s440 + $0x18] sm:$0xff]
      %v502 = vld [vmem:[%s440 + $0x20] sm:$0xff]
      %v503 = vld [vmem:[%s440 + $0x28] sm:$0xff]
      %v504 = vld [vmem:[%s440 + $0x30] sm:$0xff]
      %v505 = vld [vmem:[%s440 + $0x38] sm:$0xff]
      %v506 = vld [vmem:[%s440 + $0x40] sm:$0xff]
      %v507 = vld [vmem:[%s440 + $0x48] sm:$0xff]
      %v508 = vld [vmem:[%s440 + $0x50] sm:$0xff]
      %v509 = vld [vmem:[%s440 + $0x58] sm:$0xff]
      %v510 = vld [vmem:[%s440 + $0x60] sm:$0xff]
      %v511 = vld [vmem:[%s440 + $0x68] sm:$0xff]
      %v512 = vld [vmem:[%s440 + $0x70] sm:$0xff]
      %v513 = vld [vmem:[%s440 + $0x78] sm:$0xff]
      %v515 = vlaneseq
      %v516 = vshrl.u32 %v515, 7
      %v517 = vsub.s32 0, %v516
      %v518 = vrot.slane %v496, %v517
      %v520 = vmul.f32 %v498, %v518
      %v521 = vmul.f32 %v499, %v518
      %v522 = vmul.f32 %v500, %v518
      %v523 = vmul.f32 %v501, %v518
      %v524 = vmul.f32 %v502, %v518
      %v525 = vmul.f32 %v503, %v518
      %v526 = vmul.f32 %v504, %v518
      %v527 = vmul.f32 %v505, %v518
      %v528 = vmul.f32 %v506, %v518
      %v529 = vmul.f32 %v507, %v518
      %v530 = vmul.f32 %v508, %v518
      %v531 = vmul.f32 %v509, %v518
      %v532 = vmul.f32 %v510, %v518
      %v533 = vmul.f32 %v511, %v518
      %v534 = vmul.f32 %v512, %v518
      %v535 = vmul.f32 %v513, %v518
      %v537 = vlaneseq
      %v538 = vshrl.u32 %v537, 7
      %v539 = vsub.s32 0, %v538
      %v540 = vrot.slane %v497, %v539
      %v542 = vadd.f32 %v520, %v540
      %v543 = vadd.f32 %v521, %v540
      %v544 = vadd.f32 %v522, %v540
      %v545 = vadd.f32 %v523, %v540
      %v546 = vadd.f32 %v524, %v540
      %v547 = vadd.f32 %v525, %v540
      %v548 = vadd.f32 %v526, %v540
      %v549 = vadd.f32 %v527, %v540
      %v550 = vadd.f32 %v528, %v540
      %v551 = vadd.f32 %v529, %v540
      %v552 = vadd.f32 %v530, %v540
      %v553 = vadd.f32 %v531, %v540
      %v554 = vadd.f32 %v532, %v540
      %v555 = vadd.f32 %v533, %v540
      %v556 = vadd.f32 %v534, %v540
      %v557 = vadd.f32 %v535, %v540
      %v558 = vmax.f32 %v542, 0.0
      %v559 = vmax.f32 %v543, 0.0
      %v560 = vmax.f32 %v544, 0.0
      %v561 = vmax.f32 %v545, 0.0
      %v562 = vmax.f32 %v546, 0.0
      %v563 = vmax.f32 %v547, 0.0
      %v564 = vmax.f32 %v548, 0.0
      %v565 = vmax.f32 %v549, 0.0
      %v566 = vmax.f32 %v550, 0.0
      %v567 = vmax.f32 %v551, 0.0
      %v568 = vmax.f32 %v552, 0.0
      %v569 = vmax.f32 %v553, 0.0
      %v570 = vmax.f32 %v554, 0.0
      %v571 = vmax.f32 %v555, 0.0
      %v572 = vmax.f32 %v556, 0.0
      %v573 = vmax.f32 %v557, 0.0
      %v574 = vld [vmem:[%s454] sm:$0xff]
      %v575 = vld [vmem:[%s454 + $0x8] sm:$0xff]
      %v576 = vmul.f32 %v574, %v518
      %v577 = vmul.f32 %v575, %v518
      %v578 = vadd.f32 %v576, %v540
      %v579 = vadd.f32 %v577, %v540
      %v580 = vmax.f32 %v578, 0.0
      %v581 = vmax.f32 %v579, 0.0
      %v582 = vld [vmem:[%s471] sm:$0xff]
      %v583 = vld [vmem:[%s471 + $0x8] sm:$0xff]
      %v584 = vmul.f32 %v582, %v518
      %v585 = vmul.f32 %v583, %v518
      %v586 = vadd.f32 %v584, %v540
      %v587 = vadd.f32 %v585, %v540
      %v588 = vmax.f32 %v586, 0.0
      %v589 = vmax.f32 %v587, 0.0
      %p590 = scmp.eq.s32.totalorder %s25, 0
      %s591 = scalar_select %p590, 1, 0
      %v592 = vstv %s591
      %vm593 = vcmp.eq.s32.totalorder %v592, 1
      %v594 = vsel %vm593, 0.0, %v580
      %v595 = vsel %vm593, 0.0, %v581
      %p596 = scmp.eq.s32.totalorder %s25, 1
      %s597 = scalar_select %p596, 1, 0
      %v598 = vstv %s597
      %vm599 = vcmp.eq.s32.totalorder %v598, 1
      %v600 = vsel %vm599, 0.0, %v588
      %v601 = vsel %vm599, 0.0, %v589
      %s602 = scalar_lea.vmem [#allocation2], 24
      %vm603 = vcmask 64512
      %604 = vst.msk [vmem:[%s602 + $0x1] sm:$0xff] %vm603, %v558
      %605 = vst.msk [vmem:[%s602 + $0x9] sm:$0xff] %vm603, %v559
      %606 = vst.msk [vmem:[%s602 + $0x19] sm:$0xff] %vm603, %v560
      %607 = vst.msk [vmem:[%s602 + $0x21] sm:$0xff] %vm603, %v561
      %608 = vst.msk [vmem:[%s602 + $0x31] sm:$0xff] %vm603, %v562
      %609 = vst.msk [vmem:[%s602 + $0x39] sm:$0xff] %vm603, %v563
      %610 = vst.msk [vmem:[%s602 + $0x49] sm:$0xff] %vm603, %v564
      %611 = vst.msk [vmem:[%s602 + $0x51] sm:$0xff] %vm603, %v565
      %612 = vst.msk [vmem:[%s602 + $0x61] sm:$0xff] %vm603, %v566
      %613 = vst.msk [vmem:[%s602 + $0x69] sm:$0xff] %vm603, %v567
      %614 = vst.msk [vmem:[%s602 + $0x79] sm:$0xff] %vm603, %v568
      %615 = vst.msk [vmem:[%s602 + $0x81] sm:$0xff] %vm603, %v569
      %616 = vst.msk [vmem:[%s602 + $0x91] sm:$0xff] %vm603, %v570
      %617 = vst.msk [vmem:[%s602 + $0x99] sm:$0xff] %vm603, %v571
      %618 = vst.msk [vmem:[%s602 + $0xa9] sm:$0xff] %vm603, %v572
      %619 = vst.msk [vmem:[%s602 + $0xb1] sm:$0xff] %vm603, %v573
      %620 = vst.msk [vmem:[#allocation2 + $0x1] sm:$0xff] %vm603, %v594
      %621 = vst.msk [vmem:[#allocation2 + $0x9] sm:$0xff] %vm603, %v595
      %s622 = scalar_lea.vmem [#allocation2], 216
      %623 = vst.msk [vmem:[%s622 + $0x1] sm:$0xff] %vm603, %v600
      %624 = vst.msk [vmem:[%s622 + $0x9] sm:$0xff] %vm603, %v601
      %vm625 = vcmask 57344
      %626 = vst.msk [vmem:[#allocation2] sm:$0x1] %vm625, 0.0
      %627 = vst.msk [vmem:[#allocation2 + $0x18] sm:$0x1] %vm625, 0.0
      %628 = vst.msk [vmem:[#allocation2 + $0x30] sm:$0x1] %vm625, 0.0
      %629 = vst.msk [vmem:[#allocation2 + $0x48] sm:$0x1] %vm625, 0.0
      %630 = vst.msk [vmem:[#allocation2 + $0x60] sm:$0x1] %vm625, 0.0
      %631 = vst.msk [vmem:[#allocation2 + $0x78] sm:$0x1] %vm625, 0.0
      %632 = vst.msk [vmem:[#allocation2 + $0x90] sm:$0x1] %vm625, 0.0
      %633 = vst.msk [vmem:[#allocation2 + $0xa8] sm:$0x1] %vm625, 0.0
      %634 = vst.msk [vmem:[#allocation2 + $0xc0] sm:$0x1] %vm625, 0.0
      %635 = vst.msk [vmem:[#allocation2 + $0xd8] sm:$0x1] %vm625, 0.0
      %636 = vst.msk [vmem:[#allocation2 + $0x11] sm:$0x1] %vm625, 0.0
      %637 = vst.msk [vmem:[#allocation2 + $0x29] sm:$0x1] %vm625, 0.0
      %638 = vst.msk [vmem:[#allocation2 + $0x41] sm:$0x1] %vm625, 0.0
      %639 = vst.msk [vmem:[#allocation2 + $0x59] sm:$0x1] %vm625, 0.0
      %640 = vst.msk [vmem:[#allocation2 + $0x71] sm:$0x1] %vm625, 0.0
      %641 = vst.msk [vmem:[#allocation2 + $0x89] sm:$0x1] %vm625, 0.0
      %642 = vst.msk [vmem:[#allocation2 + $0xa1] sm:$0x1] %vm625, 0.0
      %643 = vst.msk [vmem:[#allocation2 + $0xb9] sm:$0x1] %vm625, 0.0
      %644 = vst.msk [vmem:[#allocation2 + $0xd1] sm:$0x1] %vm625, 0.0
      %645 = vst.msk [vmem:[#allocation2 + $0xe9] sm:$0x1] %vm625, 0.0
      %v646 = vld [vmem:[#allocation2] sm:$0xff]
      %v647 = vld [vmem:[#allocation2 + $0x8] sm:$0xff]
      %v648 = vld [vmem:[#allocation2 + $0x18] sm:$0xff]
      %v649 = vld [vmem:[#allocation2 + $0x20] sm:$0xff]
      %v650 = vld [vmem:[#allocation2 + $0x30] sm:$0xff]
      %v651 = vld [vmem:[#allocation2 + $0x38] sm:$0xff]
      %v652 = vld [vmem:[#allocation2 + $0x48] sm:$0xff]
      %v653 = vld [vmem:[#allocation2 + $0x50] sm:$0xff]
      %v654 = vld [vmem:[#allocation2 + $0x60] sm:$0xff]
      %v655 = vld [vmem:[#allocation2 + $0x68] sm:$0xff]
      %v656 = vld [vmem:[#allocation2 + $0x78] sm:$0xff]
      %v657 = vld [vmem:[#allocation2 + $0x80] sm:$0xff]
      %v658 = vld [vmem:[#allocation2 + $0x90] sm:$0xff]
      %v659 = vld [vmem:[#allocation2 + $0x98] sm:$0xff]
      %v660 = vld [vmem:[#allocation2 + $0xa8] sm:$0xff]
      %v661 = vld [vmem:[#allocation2 + $0xb0] sm:$0xff]
      %v662 = vpack.c.bf16 %v647, %v646
      %v663 = vpack.c.bf16 %v649, %v648
      %v664 = vpack.c.bf16 %v651, %v650
      %v665 = vpack.c.bf16 %v653, %v652
      %v666 = vpack.c.bf16 %v655, %v654
      %v667 = vpack.c.bf16 %v657, %v656
      %v668 = vpack.c.bf16 %v659, %v658
      %v669 = vpack.c.bf16 %v661, %v660
      %v670 = vld [vmem:[%s3] sm:$0xf]
      %v671 = vld [vmem:[#allocation2 + $0x1] sm:$0xff]
      %v672 = vld [vmem:[#allocation2 + $0x9] sm:$0xff]
      %v673 = vld [vmem:[#allocation2 + $0x19] sm:$0xff]
      %v674 = vld [vmem:[#allocation2 + $0x21] sm:$0xff]
      %v675 = vld [vmem:[#allocation2 + $0x31] sm:$0xff]
      %v676 = vld [vmem:[#allocation2 + $0x39] sm:$0xff]
      %v677 = vld [vmem:[#allocation2 + $0x49] sm:$0xff]
      %v678 = vld [vmem:[#allocation2 + $0x51] sm:$0xff]
      %v679 = vld [vmem:[#allocation2 + $0x61] sm:$0xff]
      %v680 = vld [vmem:[#allocation2 + $0x69] sm:$0xff]
      %v681 = vld [vmem:[#allocation2 + $0x79] sm:$0xff]
      %v682 = vld [vmem:[#allocation2 + $0x81] sm:$0xff]
      %v683 = vld [vmem:[#allocation2 + $0x91] sm:$0xff]
      %v684 = vld [vmem:[#allocation2 + $0x99] sm:$0xff]
      %v685 = vld [vmem:[#allocation2 + $0xa9] sm:$0xff]
      %v686 = vld [vmem:[#allocation2 + $0xb1] sm:$0xff]
      %v687 = vpack.c.bf16 %v672, %v671
      %v688 = vpack.c.bf16 %v674, %v673
      %v689 = vpack.c.bf16 %v676, %v675
      %v690 = vpack.c.bf16 %v678, %v677
      %v691 = vpack.c.bf16 %v680, %v679
      %v692 = vpack.c.bf16 %v682, %v681
      %v693 = vpack.c.bf16 %v684, %v683
      %v694 = vpack.c.bf16 %v686, %v685
      %s695 = scalar_lea.vmem %s3, 4
      %v696 = vld [vmem:[%s695] sm:$0xf]
      %v698 = vsel %vm603, %v687, 0
      %v701 = vsel %vm603, %v688, 0
      %v704 = vsel %vm603, %v689, 0
      %v707 = vsel %vm603, %v690, 0
      %v710 = vsel %vm603, %v691, 0
      %v713 = vsel %vm603, %v692, 0
      %v716 = vsel %vm603, %v693, 0
      %v719 = vsel %vm603, %v694, 0
      %vm721 = vcmask 1043456
      %v723 = vsel %vm721, %v696, 0
      %725 = vmatprep.subr.bf16.mxu0 0
      %726 = vmatpush1.bf16.msra.mxu0 %v723
      %727 = vmatprep.subr.bf16.mxu0 0
      %728 = vmatpush1.bf16.msra.mxu0 0
      %729 = vmatprep.subr.bf16.mxu0 0
      %730 = vmatpush1.bf16.msra.mxu0 0
      %731 = vmatprep.subr.bf16.mxu0 0
      %732 = vmatpush1.bf16.msra.mxu0 0
      %733 = vmatprep.subr.bf16.mxu0 0
      %734 = vmatpush1.bf16.msra.mxu0 0
      %735 = vmatprep.subr.bf16.mxu0 0
      %736 = vmatpush1.bf16.msra.mxu0 0
      %737 = vmatprep.subr.bf16.mxu0 0
      %738 = vmatpush1.bf16.msra.mxu0 0
      %739 = vmatprep.subr.bf16.mxu0 0
      %740 = vmatpush1.bf16.msra.mxu0 0
      %741 = vmatprep.subr.bf16.mxu0 0
      %742 = vmatpush1.bf16.msra.mxu0 0
      %743 = vmatprep.subr.bf16.mxu0 0
      %744 = vmatpush1.bf16.msra.mxu0 0
      %745 = vmatprep.subr.bf16.mxu0 0
      %746 = vmatpush1.bf16.msra.mxu0 0
      %747 = vmatprep.subr.bf16.mxu0 0
      %748 = vmatpush1.bf16.msra.mxu0 0
      %749 = vmatprep.subr.bf16.mxu0 0
      %750 = vmatpush1.bf16.msra.mxu0 0
      %751 = vmatprep.subr.bf16.mxu0 0
      %752 = vmatpush1.bf16.msra.mxu0 0
      %753 = vmatprep.subr.bf16.mxu0 0
      %754 = vmatpush1.bf16.msra.mxu0 0
      %755 = vmatprep.subr.bf16.mxu0 0
      %756 = vmatpush1.bf16.msra.mxu0 0
      %757 = vmatprep.mubr.bf16.mxu0 0
      %758 = vmatmul.mubr.bf16.gmra.mrb[0].mxu0 %v698
      %v759 = vpop.f32.mrb[0].mxu0
      %v760 = vadd.f32 0.0, %v759
      %v761 = vpop.f32.mrb[0].mxu0
      %v762 = vpop.f32.mrb[0].mxu0
      %v763 = vadd.f32 0.0, %v762
      %v764 = vpop.f32.mrb[0].mxu0
      %765 = vmatprep.mubr.bf16.mxu0 0
      %766 = vmatmul.mubr.bf16.gmra.mrb[0].mxu0 %v701
      %v767 = vpop.f32.mrb[0].mxu0
      %v768 = vadd.f32 0.0, %v767
      %v769 = vpop.f32.mrb[0].mxu0
      %v770 = vpop.f32.mrb[0].mxu0
      %v771 = vadd.f32 0.0, %v770
      %v772 = vpop.f32.mrb[0].mxu0
      %773 = vmatprep.mubr.bf16.mxu0 0
      %774 = vmatmul.mubr.bf16.gmra.mrb[0].mxu0 %v704
      %v775 = vpop.f32.mrb[0].mxu0
      %v776 = vadd.f32 0.0, %v775
      %v777 = vpop.f32.mrb[0].mxu0
      %v778 = vpop.f32.mrb[0].mxu0
      %v779 = vadd.f32 0.0, %v778
      %v780 = vpop.f32.mrb[0].mxu0
      %781 = vmatprep.mubr.bf16.mxu0 0
      %782 = vmatmul.mubr.bf16.gmra.mrb[0].mxu0 %v707
      %v783 = vpop.f32.mrb[0].mxu0
      %v784 = vadd.f32 0.0, %v783
      %v785 = vpop.f32.mrb[0].mxu0
      %v786 = vpop.f32.mrb[0].mxu0
      %v787 = vadd.f32 0.0, %v786
      %v788 = vpop.f32.mrb[0].mxu0
      %789 = vmatprep.mubr.bf16.mxu0 0
      %790 = vmatmul.mubr.bf16.gmra.mrb[0].mxu0 %v710
      %v791 = vpop.f32.mrb[0].mxu0
      %v792 = vadd.f32 0.0, %v791
      %v793 = vpop.f32.mrb[0].mxu0
      %v794 = vpop.f32.mrb[0].mxu0
      %v795 = vadd.f32 0.0, %v794
      %v796 = vpop.f32.mrb[0].mxu0
      %797 = vmatprep.mubr.bf16.mxu0 0
      %798 = vmatmul.mubr.bf16.gmra.mrb[0].mxu0 %v713
      %v799 = vpop.f32.mrb[0].mxu0
      %v800 = vadd.f32 0.0, %v799
      %v801 = vpop.f32.mrb[0].mxu0
      %v802 = vpop.f32.mrb[0].mxu0
      %v803 = vadd.f32 0.0, %v802
      %v804 = vpop.f32.mrb[0].mxu0
      %805 = vmatprep.mubr.bf16.mxu0 0
      %806 = vmatmul.mubr.bf16.gmra.mrb[0].mxu0 %v716
      %v807 = vpop.f32.mrb[0].mxu0
      %v808 = vadd.f32 0.0, %v807
      %v809 = vpop.f32.mrb[0].mxu0
      %v810 = vpop.f32.mrb[0].mxu0
      %v811 = vadd.f32 0.0, %v810
      %v812 = vpop.f32.mrb[0].mxu0
      %813 = vmatprep.mubr.bf16.mxu0 0
      %814 = vmatmul.mubr.bf16.gmra.mrb[0].mxu0 %v719
      %v815 = vpop.f32.mrb[0].mxu0
      %v816 = vadd.f32 0.0, %v815
      %v817 = vpop.f32.mrb[0].mxu0
      %v818 = vpop.f32.mrb[0].mxu0
      %v819 = vadd.f32 0.0, %v818
      %v820 = vpop.f32.mrb[0].mxu0
      %821 = vdwg.mxu0
      %v823 = vsel %vm603, %v662, 0
      %v826 = vsel %vm603, %v663, 0
      %v829 = vsel %vm603, %v664, 0
      %v832 = vsel %vm603, %v665, 0
      %v835 = vsel %vm603, %v666, 0
      %v838 = vsel %vm603, %v667, 0
      %v841 = vsel %vm603, %v668, 0
      %v844 = vsel %vm603, %v669, 0
      %v847 = vsel %vm721, %v670, 0
      %849 = vmatprep.subr.bf16.mxu0 0
      %850 = vmatpush1.bf16.msra.mxu0 %v847
      %851 = vmatprep.subr.bf16.mxu0 0
      %852 = vmatpush1.bf16.msra.mxu0 0
      %853 = vmatprep.subr.bf16.mxu0 0
      %854 = vmatpush1.bf16.msra.mxu0 0
      %855 = vmatprep.subr.bf16.mxu0 0
      %856 = vmatpush1.bf16.msra.mxu0 0
      %857 = vmatprep.subr.bf16.mxu0 0
      %858 = vmatpush1.bf16.msra.mxu0 0
      %859 = vmatprep.subr.bf16.mxu0 0
      %860 = vmatpush1.bf16.msra.mxu0 0
      %861 = vmatprep.subr.bf16.mxu0 0
      %862 = vmatpush1.bf16.msra.mxu0 0
      %863 = vmatprep.subr.bf16.mxu0 0
      %864 = vmatpush1.bf16.msra.mxu0 0
      %865 = vmatprep.subr.bf16.mxu0 0
      %866 = vmatpush1.bf16.msra.mxu0 0
      %867 = vmatprep.subr.bf16.mxu0 0
      %868 = vmatpush1.bf16.msra.mxu0 0
      %869 = vmatprep.subr.bf16.mxu0 0
      %870 = vmatpush1.bf16.msra.mxu0 0
      %871 = vmatprep.subr.bf16.mxu0 0
      %872 = vmatpush1.bf16.msra.mxu0 0
      %873 = vmatprep.subr.bf16.mxu0 0
      %874 = vmatpush1.bf16.msra.mxu0 0
      %875 = vmatprep.subr.bf16.mxu0 0
      %876 = vmatpush1.bf16.msra.mxu0 0
      %877 = vmatprep.subr.bf16.mxu0 0
      %878 = vmatpush1.bf16.msra.mxu0 0
      %879 = vmatprep.subr.bf16.mxu0 0
      %880 = vmatpush1.bf16.msra.mxu0 0
      %881 = vmatprep.mubr.bf16.mxu0 0
      %882 = vmatmul.mubr.bf16.gmra.mrb[0].mxu0 %v823
      %v883 = vpop.f32.mrb[0].mxu0
      %v884 = vadd.f32 %v760, %v883
      %v885 = vpop.f32.mrb[0].mxu0
      %v886 = vpop.f32.mrb[0].mxu0
      %v887 = vadd.f32 %v763, %v886
      %v888 = vpop.f32.mrb[0].mxu0
      %889 = vmatprep.mubr.bf16.mxu0 0
      %890 = vmatmul.mubr.bf16.gmra.mrb[0].mxu0 %v826
      %v891 = vpop.f32.mrb[0].mxu0
      %v892 = vadd.f32 %v768, %v891
      %v893 = vpop.f32.mrb[0].mxu0
      %v894 = vpop.f32.mrb[0].mxu0
      %v895 = vadd.f32 %v771, %v894
      %v896 = vpop.f32.mrb[0].mxu0
      %897 = vmatprep.mubr.bf16.mxu0 0
      %898 = vmatmul.mubr.bf16.gmra.mrb[0].mxu0 %v829
      %v899 = vpop.f32.mrb[0].mxu0
      %v900 = vadd.f32 %v776, %v899
      %v901 = vpop.f32.mrb[0].mxu0
      %v902 = vpop.f32.mrb[0].mxu0
      %v903 = vadd.f32 %v779, %v902
      %v904 = vpop.f32.mrb[0].mxu0
      %905 = vmatprep.mubr.bf16.mxu0 0
      %906 = vmatmul.mubr.bf16.gmra.mrb[0].mxu0 %v832
      %v907 = vpop.f32.mrb[0].mxu0
      %v908 = vadd.f32 %v784, %v907
      %v909 = vpop.f32.mrb[0].mxu0
      %v910 = vpop.f32.mrb[0].mxu0
      %v911 = vadd.f32 %v787, %v910
      %v912 = vpop.f32.mrb[0].mxu0
      %913 = vmatprep.mubr.bf16.mxu0 0
      %914 = vmatmul.mubr.bf16.gmra.mrb[0].mxu0 %v835
      %v915 = vpop.f32.mrb[0].mxu0
      %v916 = vadd.f32 %v792, %v915
      %v917 = vpop.f32.mrb[0].mxu0
      %v918 = vpop.f32.mrb[0].mxu0
      %v919 = vadd.f32 %v795, %v918
      %v920 = vpop.f32.mrb[0].mxu0
      %921 = vmatprep.mubr.bf16.mxu0 0
      %922 = vmatmul.mubr.bf16.gmra.mrb[0].mxu0 %v838
      %v923 = vpop.f32.mrb[0].mxu0
      %v924 = vadd.f32 %v800, %v923
      %v925 = vpop.f32.mrb[0].mxu0
      %v926 = vpop.f32.mrb[0].mxu0
      %v927 = vadd.f32 %v803, %v926
      %v928 = vpop.f32.mrb[0].mxu0
      %929 = vmatprep.mubr.bf16.mxu0 0
      %930 = vmatmul.mubr.bf16.gmra.mrb[0].mxu0 %v841
      %v931 = vpop.f32.mrb[0].mxu0
      %v932 = vadd.f32 %v808, %v931
      %v933 = vpop.f32.mrb[0].mxu0
      %v934 = vpop.f32.mrb[0].mxu0
      %v935 = vadd.f32 %v811, %v934
      %v936 = vpop.f32.mrb[0].mxu0
      %937 = vmatprep.mubr.bf16.mxu0 0
      %938 = vmatmul.mubr.bf16.gmra.mrb[0].mxu0 %v844
      %v939 = vpop.f32.mrb[0].mxu0
      %v940 = vadd.f32 %v816, %v939
      %v941 = vpop.f32.mrb[0].mxu0
      %v942 = vpop.f32.mrb[0].mxu0
      %v943 = vadd.f32 %v819, %v942
      %v944 = vpop.f32.mrb[0].mxu0
      %945 = vdwg.mxu0
      %v946 = vld [vmem:[#allocation2 + $0x2] sm:$0xff]
      %v947 = vld [vmem:[#allocation2 + $0xa] sm:$0xff]
      %v948 = vld [vmem:[#allocation2 + $0x1a] sm:$0xff]
      %v949 = vld [vmem:[#allocation2 + $0x22] sm:$0xff]
      %v950 = vld [vmem:[#allocation2 + $0x32] sm:$0xff]
      %v951 = vld [vmem:[#allocation2 + $0x3a] sm:$0xff]
      %v952 = vld [vmem:[#allocation2 + $0x4a] sm:$0xff]
      %v953 = vld [vmem:[#allocation2 + $0x52] sm:$0xff]
      %v954 = vld [vmem:[#allocation2 + $0x62] sm:$0xff]
      %v955 = vld [vmem:[#allocation2 + $0x6a] sm:$0xff]
      %v956 = vld [vmem:[#allocation2 + $0x7a] sm:$0xff]
      %v957 = vld [vmem:[#allocation2 + $0x82] sm:$0xff]
      %v958 = vld [vmem:[#allocation2 + $0x92] sm:$0xff]
      %v959 = vld [vmem:[#allocation2 + $0x9a] sm:$0xff]
      %v960 = vld [vmem:[#allocation2 + $0xaa] sm:$0xff]
      %v961 = vld [vmem:[#allocation2 + $0xb2] sm:$0xff]
      %v962 = vpack.c.bf16 %v947, %v946
      %v963 = vpack.c.bf16 %v949, %v948
      %v964 = vpack.c.bf16 %v951, %v950
      %v965 = vpack.c.bf16 %v953, %v952
      %v966 = vpack.c.bf16 %v955, %v954
      %v967 = vpack.c.bf16 %v957, %v956
      %v968 = vpack.c.bf16 %v959, %v958
      %v969 = vpack.c.bf16 %v961, %v960
      %s970 = scalar_lea.vmem %s3, 8
      %v971 = vld [vmem:[%s970] sm:$0xf]
      %v973 = vsel %vm603, %v962, 0
      %v976 = vsel %vm603, %v963, 0
      %v979 = vsel %vm603, %v964, 0
      %v982 = vsel %vm603, %v965, 0
      %v985 = vsel %vm603, %v966, 0
      %v988 = vsel %vm603, %v967, 0
      %v991 = vsel %vm603, %v968, 0
      %v994 = vsel %vm603, %v969, 0
      %v997 = vsel %vm721, %v971, 0
      %999 = vmatprep.subr.bf16.mxu0 0
      %1000 = vmatpush1.bf16.msra.mxu0 %v997
      %1001 = vmatprep.subr.bf16.mxu0 0
      %1002 = vmatpush1.bf16.msra.mxu0 0
      %1003 = vmatprep.subr.bf16.mxu0 0
      %1004 = vmatpush1.bf16.msra.mxu0 0
      %1005 = vmatprep.subr.bf16.mxu0 0
      %1006 = vmatpush1.bf16.msra.mxu0 0
      %1007 = vmatprep.subr.bf16.mxu0 0
      %1008 = vmatpush1.bf16.msra.mxu0 0
      %1009 = vmatprep.subr.bf16.mxu0 0
      %1010 = vmatpush1.bf16.msra.mxu0 0
      %1011 = vmatprep.subr.bf16.mxu0 0
      %1012 = vmatpush1.bf16.msra.mxu0 0
      %1013 = vmatprep.subr.bf16.mxu0 0
      %1014 = vmatpush1.bf16.msra.mxu0 0
      %1015 = vmatprep.subr.bf16.mxu0 0
      %1016 = vmatpush1.bf16.msra.mxu0 0
      %1017 = vmatprep.subr.bf16.mxu0 0
      %1018 = vmatpush1.bf16.msra.mxu0 0
      %1019 = vmatprep.subr.bf16.mxu0 0
      %1020 = vmatpush1.bf16.msra.mxu0 0
      %1021 = vmatprep.subr.bf16.mxu0 0
      %1022 = vmatpush1.bf16.msra.mxu0 0
      %1023 = vmatprep.subr.bf16.mxu0 0
      %1024 = vmatpush1.bf16.msra.mxu0 0
      %1025 = vmatprep.subr.bf16.mxu0 0
      %1026 = vmatpush1.bf16.msra.mxu0 0
      %1027 = vmatprep.subr.bf16.mxu0 0
      %1028 = vmatpush1.bf16.msra.mxu0 0
      %1029 = vmatprep.subr.bf16.mxu0 0
      %1030 = vmatpush1.bf16.msra.mxu0 0
      %1031 = vmatprep.mubr.bf16.mxu0 0
      %1032 = vmatmul.mubr.bf16.gmra.mrb[0].mxu0 %v973
      %v1033 = vpop.f32.mrb[0].mxu0
      %v1034 = vadd.f32 0.0, %v1033
      %v1035 = vpop.f32.mrb[0].mxu0
      %v1036 = vpop.f32.mrb[0].mxu0
      %v1037 = vadd.f32 0.0, %v1036
      %v1038 = vpop.f32.mrb[0].mxu0
      %1039 = vmatprep.mubr.bf16.mxu0 0
      %1040 = vmatmul.mubr.bf16.gmra.mrb[0].mxu0 %v976
      %v1041 = vpop.f32.mrb[0].mxu0
      %v1042 = vadd.f32 0.0, %v1041
      %v1043 = vpop.f32.mrb[0].mxu0
      %v1044 = vpop.f32.mrb[0].mxu0
      %v1045 = vadd.f32 0.0, %v1044
      %v1046 = vpop.f32.mrb[0].mxu0
      %1047 = vmatprep.mubr.bf16.mxu0 0
      %1048 = vmatmul.mubr.bf16.gmra.mrb[0].mxu0 %v979
      %v1049 = vpop.f32.mrb[0].mxu0
      %v1050 = vadd.f32 0.0, %v1049
      %v1051 = vpop.f32.mrb[0].mxu0
      %v1052 = vpop.f32.mrb[0].mxu0
      %v1053 = vadd.f32 0.0, %v1052
      %v1054 = vpop.f32.mrb[0].mxu0
      %1055 = vmatprep.mubr.bf16.mxu0 0
      %1056 = vmatmul.mubr.bf16.gmra.mrb[0].mxu0 %v982
      %v1057 = vpop.f32.mrb[0].mxu0
      %v1058 = vadd.f32 0.0, %v1057
      %v1059 = vpop.f32.mrb[0].mxu0
      %v1060 = vpop.f32.mrb[0].mxu0
      %v1061 = vadd.f32 0.0, %v1060
      %v1062 = vpop.f32.mrb[0].mxu0
      %1063 = vmatprep.mubr.bf16.mxu0 0
      %1064 = vmatmul.mubr.bf16.gmra.mrb[0].mxu0 %v985
      %v1065 = vpop.f32.mrb[0].mxu0
      %v1066 = vadd.f32 0.0, %v1065
      %v1067 = vpop.f32.mrb[0].mxu0
      %v1068 = vpop.f32.mrb[0].mxu0
      %v1069 = vadd.f32 0.0, %v1068
      %v1070 = vpop.f32.mrb[0].mxu0
      %1071 = vmatprep.mubr.bf16.mxu0 0
      %1072 = vmatmul.mubr.bf16.gmra.mrb[0].mxu0 %v988
      %v1073 = vpop.f32.mrb[0].mxu0
      %v1074 = vadd.f32 0.0, %v1073
      %v1075 = vpop.f32.mrb[0].mxu0
      %v1076 = vpop.f32.mrb[0].mxu0
      %v1077 = vadd.f32 0.0, %v1076
      %v1078 = vpop.f32.mrb[0].mxu0
      %1079 = vmatprep.mubr.bf16.mxu0 0
      %1080 = vmatmul.mubr.bf16.gmra.mrb[0].mxu0 %v991
      %v1081 = vpop.f32.mrb[0].mxu0
      %v1082 = vadd.f32 0.0, %v1081
      %v1083 = vpop.f32.mrb[0].mxu0
      %v1084 = vpop.f32.mrb[0].mxu0
      %v1085 = vadd.f32 0.0, %v1084
      %v1086 = vpop.f32.mrb[0].mxu0
      %1087 = vmatprep.mubr.bf16.mxu0 0
      %1088 = vmatmul.mubr.bf16.gmra.mrb[0].mxu0 %v994
      %v1089 = vpop.f32.mrb[0].mxu0
      %v1090 = vadd.f32 0.0, %v1089
      %v1091 = vpop.f32.mrb[0].mxu0
      %v1092 = vpop.f32.mrb[0].mxu0
      %v1093 = vadd.f32 0.0, %v1092
      %v1094 = vpop.f32.mrb[0].mxu0
      %1095 = vdwg.mxu0
      %v1096 = vadd.f32 %v884, %v1034
      %v1097 = vadd.f32 %v887, %v1037
      %v1098 = vadd.f32 %v892, %v1042
      %v1099 = vadd.f32 %v895, %v1045
      %v1100 = vadd.f32 %v900, %v1050
      %v1101 = vadd.f32 %v903, %v1053
      %v1102 = vadd.f32 %v908, %v1058
      %v1103 = vadd.f32 %v911, %v1061
      %v1104 = vadd.f32 %v916, %v1066
      %v1105 = vadd.f32 %v919, %v1069
      %v1106 = vadd.f32 %v924, %v1074
      %v1107 = vadd.f32 %v927, %v1077
      %v1108 = vadd.f32 %v932, %v1082
      %v1109 = vadd.f32 %v935, %v1085
      %v1110 = vadd.f32 %v940, %v1090
      %v1111 = vadd.f32 %v943, %v1093
      %v1112 = vld [vmem:[%s602] sm:$0xff]
      %v1113 = vld [vmem:[%s602 + $0x8] sm:$0xff]
      %v1114 = vld [vmem:[%s602 + $0x18] sm:$0xff]
      %v1115 = vld [vmem:[%s602 + $0x20] sm:$0xff]
      %v1116 = vld [vmem:[%s602 + $0x30] sm:$0xff]
      %v1117 = vld [vmem:[%s602 + $0x38] sm:$0xff]
      %v1118 = vld [vmem:[%s602 + $0x48] sm:$0xff]
      %v1119 = vld [vmem:[%s602 + $0x50] sm:$0xff]
      %v1120 = vld [vmem:[%s602 + $0x60] sm:$0xff]
      %v1121 = vld [vmem:[%s602 + $0x68] sm:$0xff]
      %v1122 = vld [vmem:[%s602 + $0x78] sm:$0xff]
      %v1123 = vld [vmem:[%s602 + $0x80] sm:$0xff]
      %v1124 = vld [vmem:[%s602 + $0x90] sm:$0xff]
      %v1125 = vld [vmem:[%s602 + $0x98] sm:$0xff]
      %v1126 = vld [vmem:[%s602 + $0xa8] sm:$0xff]
      %v1127 = vld [vmem:[%s602 + $0xb0] sm:$0xff]
      %v1128 = vpack.c.bf16 %v1113, %v1112
      %v1129 = vpack.c.bf16 %v1115, %v1114
      %v1130 = vpack.c.bf16 %v1117, %v1116
      %v1131 = vpack.c.bf16 %v1119, %v1118
      %v1132 = vpack.c.bf16 %v1121, %v1120
      %v1133 = vpack.c.bf16 %v1123, %v1122
      %v1134 = vpack.c.bf16 %v1125, %v1124
      %v1135 = vpack.c.bf16 %v1127, %v1126
      %s1136 = scalar_lea.vmem %s3, 12
      %v1137 = vld [vmem:[%s1136] sm:$0xf]
      %v1139 = vsel %vm603, %v1128, 0
      %v1142 = vsel %vm603, %v1129, 0
      %v1145 = vsel %vm603, %v1130, 0
      %v1148 = vsel %vm603, %v1131, 0
      %v1151 = vsel %vm603, %v1132, 0
      %v1154 = vsel %vm603, %v1133, 0
      %v1157 = vsel %vm603, %v1134, 0
      %v1160 = vsel %vm603, %v1135, 0
      %v1163 = vsel %vm721, %v1137, 0
      %1165 = vmatprep.subr.bf16.mxu0 0
      %1166 = vmatpush1.bf16.msra.mxu0 %v1163
      %1167 = vmatprep.subr.bf16.mxu0 0
      %1168 = vmatpush1.bf16.msra.mxu0 0
      %1169 = vmatprep.subr.bf16.mxu0 0
      %1170 = vmatpush1.bf16.msra.mxu0 0
      %1171 = vmatprep.subr.bf16.mxu0 0
      %1172 = vmatpush1.bf16.msra.mxu0 0
      %1173 = vmatprep.subr.bf16.mxu0 0
      %1174 = vmatpush1.bf16.msra.mxu0 0
      %1175 = vmatprep.subr.bf16.mxu0 0
      %1176 = vmatpush1.bf16.msra.mxu0 0
      %1177 = vmatprep.subr.bf16.mxu0 0
      %1178 = vmatpush1.bf16.msra.mxu0 0
      %1179 = vmatprep.subr.bf16.mxu0 0
      %1180 = vmatpush1.bf16.msra.mxu0 0
      %1181 = vmatprep.subr.bf16.mxu0 0
      %1182 = vmatpush1.bf16.msra.mxu0 0
      %1183 = vmatprep.subr.bf16.mxu0 0
      %1184 = vmatpush1.bf16.msra.mxu0 0
      %1185 = vmatprep.subr.bf16.mxu0 0
      %1186 = vmatpush1.bf16.msra.mxu0 0
      %1187 = vmatprep.subr.bf16.mxu0 0
      %1188 = vmatpush1.bf16.msra.mxu0 0
      %1189 = vmatprep.subr.bf16.mxu0 0
      %1190 = vmatpush1.bf16.msra.mxu0 0
      %1191 = vmatprep.subr.bf16.mxu0 0
      %1192 = vmatpush1.bf16.msra.mxu0 0
      %1193 = vmatprep.subr.bf16.mxu0 0
      %1194 = vmatpush1.bf16.msra.mxu0 0
      %1195 = vmatprep.subr.bf16.mxu0 0
      %1196 = vmatpush1.bf16.msra.mxu0 0
      %1197 = vmatprep.mubr.bf16.mxu0 0
      %1198 = vmatmul.mubr.bf16.gmra.mrb[0].mxu0 %v1139
      %v1199 = vpop.f32.mrb[0].mxu0
      %v1200 = vadd.f32 0.0, %v1199
      %v1201 = vpop.f32.mrb[0].mxu0
      %v1202 = vpop.f32.mrb[0].mxu0
      %v1203 = vadd.f32 0.0, %v1202
      %v1204 = vpop.f32.mrb[0].mxu0
      %1205 = vmatprep.mubr.bf16.mxu0 0
      %1206 = vmatmul.mubr.bf16.gmra.mrb[0].mxu0 %v1142
      %v1207 = vpop.f32.mrb[0].mxu0
      %v1208 = vadd.f32 0.0, %v1207
      %v1209 = vpop.f32.mrb[0].mxu0
      %v1210 = vpop.f32.mrb[0].mxu0
      %v1211 = vadd.f32 0.0, %v1210
      %v1212 = vpop.f32.mrb[0].mxu0
      %1213 = vmatprep.mubr.bf16.mxu0 0
      %1214 = vmatmul.mubr.bf16.gmra.mrb[0].mxu0 %v1145
      %v1215 = vpop.f32.mrb[0].mxu0
      %v1216 = vadd.f32 0.0, %v1215
      %v1217 = vpop.f32.mrb[0].mxu0
      %v1218 = vpop.f32.mrb[0].mxu0
      %v1219 = vadd.f32 0.0, %v1218
      %v1220 = vpop.f32.mrb[0].mxu0
      %1221 = vmatprep.mubr.bf16.mxu0 0
      %1222 = vmatmul.mubr.bf16.gmra.mrb[0].mxu0 %v1148
      %v1223 = vpop.f32.mrb[0].mxu0
      %v1224 = vadd.f32 0.0, %v1223
      %v1225 = vpop.f32.mrb[0].mxu0
      %v1226 = vpop.f32.mrb[0].mxu0
      %v1227 = vadd.f32 0.0, %v1226
      %v1228 = vpop.f32.mrb[0].mxu0
      %1229 = vmatprep.mubr.bf16.mxu0 0
      %1230 = vmatmul.mubr.bf16.gmra.mrb[0].mxu0 %v1151
      %v1231 = vpop.f32.mrb[0].mxu0
      %v1232 = vadd.f32 0.0, %v1231
      %v1233 = vpop.f32.mrb[0].mxu0
      %v1234 = vpop.f32.mrb[0].mxu0
      %v1235 = vadd.f32 0.0, %v1234
      %v1236 = vpop.f32.mrb[0].mxu0
      %1237 = vmatprep.mubr.bf16.mxu0 0
      %1238 = vmatmul.mubr.bf16.gmra.mrb[0].mxu0 %v1154
      %v1239 = vpop.f32.mrb[0].mxu0
      %v1240 = vadd.f32 0.0, %v1239
      %v1241 = vpop.f32.mrb[0].mxu0
      %v1242 = vpop.f32.mrb[0].mxu0
      %v1243 = vadd.f32 0.0, %v1242
      %v1244 = vpop.f32.mrb[0].mxu0
      %1245 = vmatprep.mubr.bf16.mxu0 0
      %1246 = vmatmul.mubr.bf16.gmra.mrb[0].mxu0 %v1157
      %v1247 = vpop.f32.mrb[0].mxu0
      %v1248 = vadd.f32 0.0, %v1247
      %v1249 = vpop.f32.mrb[0].mxu0
      %v1250 = vpop.f32.mrb[0].mxu0
      %v1251 = vadd.f32 0.0, %v1250
      %v1252 = vpop.f32.mrb[0].mxu0
      %1253 = vmatprep.mubr.bf16.mxu0 0
      %1254 = vmatmul.mubr.bf16.gmra.mrb[0].mxu0 %v1160
      %v1255 = vpop.f32.mrb[0].mxu0
      %v1256 = vadd.f32 0.0, %v1255
      %v1257 = vpop.f32.mrb[0].mxu0
      %v1258 = vpop.f32.mrb[0].mxu0
      %v1259 = vadd.f32 0.0, %v1258
      %v1260 = vpop.f32.mrb[0].mxu0
      %1261 = vdwg.mxu0
      %v1262 = vadd.f32 %v1096, %v1200
      %v1263 = vadd.f32 %v1097, %v1203
      %v1264 = vadd.f32 %v1098, %v1208
      %v1265 = vadd.f32 %v1099, %v1211
      %v1266 = vadd.f32 %v1100, %v1216
      %v1267 = vadd.f32 %v1101, %v1219
      %v1268 = vadd.f32 %v1102, %v1224
      %v1269 = vadd.f32 %v1103, %v1227
      %v1270 = vadd.f32 %v1104, %v1232
      %v1271 = vadd.f32 %v1105, %v1235
      %v1272 = vadd.f32 %v1106, %v1240
      %v1273 = vadd.f32 %v1107, %v1243
      %v1274 = vadd.f32 %v1108, %v1248
      %v1275 = vadd.f32 %v1109, %v1251
      %v1276 = vadd.f32 %v1110, %v1256
      %v1277 = vadd.f32 %v1111, %v1259
      %v1278 = vld [vmem:[%s602 + $0x1] sm:$0xff]
      %v1279 = vld [vmem:[%s602 + $0x9] sm:$0xff]
      %v1280 = vld [vmem:[%s602 + $0x19] sm:$0xff]
      %v1281 = vld [vmem:[%s602 + $0x21] sm:$0xff]
      %v1282 = vld [vmem:[%s602 + $0x31] sm:$0xff]
      %v1283 = vld [vmem:[%s602 + $0x39] sm:$0xff]
      %v1284 = vld [vmem:[%s602 + $0x49] sm:$0xff]
      %v1285 = vld [vmem:[%s602 + $0x51] sm:$0xff]
      %v1286 = vld [vmem:[%s602 + $0x61] sm:$0xff]
      %v1287 = vld [vmem:[%s602 + $0x69] sm:$0xff]
      %v1288 = vld [vmem:[%s602 + $0x79] sm:$0xff]
      %v1289 = vld [vmem:[%s602 + $0x81] sm:$0xff]
      %v1290 = vld [vmem:[%s602 + $0x91] sm:$0xff]
      %v1291 = vld [vmem:[%s602 + $0x99] sm:$0xff]
      %v1292 = vld [vmem:[%s602 + $0xa9] sm:$0xff]
      %v1293 = vld [vmem:[%s602 + $0xb1] sm:$0xff]
      %v1294 = vpack.c.bf16 %v1279, %v1278
      %v1295 = vpack.c.bf16 %v1281, %v1280
      %v1296 = vpack.c.bf16 %v1283, %v1282
      %v1297 = vpack.c.bf16 %v1285, %v1284
      %v1298 = vpack.c.bf16 %v1287, %v1286
      %v1299 = vpack.c.bf16 %v1289, %v1288
      %v1300 = vpack.c.bf16 %v1291, %v1290
      %v1301 = vpack.c.bf16 %v1293, %v1292
      %s1302 = scalar_lea.vmem %s3, 16
      %v1303 = vld [vmem:[%s1302] sm:$0xf]
      %v1305 = vsel %vm603, %v1294, 0
      %v1308 = vsel %vm603, %v1295, 0
      %v1311 = vsel %vm603, %v1296, 0
      %v1314 = vsel %vm603, %v1297, 0
      %v1317 = vsel %vm603, %v1298, 0
      %v1320 = vsel %vm603, %v1299, 0
      %v1323 = vsel %vm603, %v1300, 0
      %v1326 = vsel %vm603, %v1301, 0
      %v1329 = vsel %vm721, %v1303, 0
      %1331 = vmatprep.subr.bf16.mxu0 0
      %1332 = vmatpush1.bf16.msra.mxu0 %v1329
      %1333 = vmatprep.subr.bf16.mxu0 0
      %1334 = vmatpush1.bf16.msra.mxu0 0
      %1335 = vmatprep.subr.bf16.mxu0 0
      %1336 = vmatpush1.bf16.msra.mxu0 0
      %1337 = vmatprep.subr.bf16.mxu0 0
      %1338 = vmatpush1.bf16.msra.mxu0 0
      %1339 = vmatprep.subr.bf16.mxu0 0
      %1340 = vmatpush1.bf16.msra.mxu0 0
      %1341 = vmatprep.subr.bf16.mxu0 0
      %1342 = vmatpush1.bf16.msra.mxu0 0
      %1343 = vmatprep.subr.bf16.mxu0 0
      %1344 = vmatpush1.bf16.msra.mxu0 0
      %1345 = vmatprep.subr.bf16.mxu0 0
      %1346 = vmatpush1.bf16.msra.mxu0 0
      %1347 = vmatprep.subr.bf16.mxu0 0
      %1348 = vmatpush1.bf16.msra.mxu0 0
      %1349 = vmatprep.subr.bf16.mxu0 0
      %1350 = vmatpush1.bf16.msra.mxu0 0
      %1351 = vmatprep.subr.bf16.mxu0 0
      %1352 = vmatpush1.bf16.msra.mxu0 0
      %1353 = vmatprep.subr.bf16.mxu0 0
      %1354 = vmatpush1.bf16.msra.mxu0 0
      %1355 = vmatprep.subr.bf16.mxu0 0
      %1356 = vmatpush1.bf16.msra.mxu0 0
      %1357 = vmatprep.subr.bf16.mxu0 0
      %1358 = vmatpush1.bf16.msra.mxu0 0
      %1359 = vmatprep.subr.bf16.mxu0 0
      %1360 = vmatpush1.bf16.msra.mxu0 0
      %1361 = vmatprep.subr.bf16.mxu0 0
      %1362 = vmatpush1.bf16.msra.mxu0 0
      %1363 = vmatprep.mubr.bf16.mxu0 0
      %1364 = vmatmul.mubr.bf16.gmra.mrb[0].mxu0 %v1305
      %v1365 = vpop.f32.mrb[0].mxu0
      %v1366 = vadd.f32 0.0, %v1365
      %v1367 = vpop.f32.mrb[0].mxu0
      %v1368 = vpop.f32.mrb[0].mxu0
      %v1369 = vadd.f32 0.0, %v1368
      %v1370 = vpop.f32.mrb[0].mxu0
      %1371 = vmatprep.mubr.bf16.mxu0 0
      %1372 = vmatmul.mubr.bf16.gmra.mrb[0].mxu0 %v1308
      %v1373 = vpop.f32.mrb[0].mxu0
      %v1374 = vadd.f32 0.0, %v1373
      %v1375 = vpop.f32.mrb[0].mxu0
      %v1376 = vpop.f32.mrb[0].mxu0
      %v1377 = vadd.f32 0.0, %v1376
      %v1378 = vpop.f32.mrb[0].mxu0
      %1379 = vmatprep.mubr.bf16.mxu0 0
      %1380 = vmatmul.mubr.bf16.gmra.mrb[0].mxu0 %v1311
      %v1381 = vpop.f32.mrb[0].mxu0
      %v1382 = vadd.f32 0.0, %v1381
      %v1383 = vpop.f32.mrb[0].mxu0
      %v1384 = vpop.f32.mrb[0].mxu0
      %v1385 = vadd.f32 0.0, %v1384
      %v1386 = vpop.f32.mrb[0].mxu0
      %1387 = vmatprep.mubr.bf16.mxu0 0
      %1388 = vmatmul.mubr.bf16.gmra.mrb[0].mxu0 %v1314
      %v1389 = vpop.f32.mrb[0].mxu0
      %v1390 = vadd.f32 0.0, %v1389
      %v1391 = vpop.f32.mrb[0].mxu0
      %v1392 = vpop.f32.mrb[0].mxu0
      %v1393 = vadd.f32 0.0, %v1392
      %v1394 = vpop.f32.mrb[0].mxu0
      %1395 = vmatprep.mubr.bf16.mxu0 0
      %1396 = vmatmul.mubr.bf16.gmra.mrb[0].mxu0 %v1317
      %v1397 = vpop.f32.mrb[0].mxu0
      %v1398 = vadd.f32 0.0, %v1397
      %v1399 = vpop.f32.mrb[0].mxu0
      %v1400 = vpop.f32.mrb[0].mxu0
      %v1401 = vadd.f32 0.0, %v1400
      %v1402 = vpop.f32.mrb[0].mxu0
      %1403 = vmatprep.mubr.bf16.mxu0 0
      %1404 = vmatmul.mubr.bf16.gmra.mrb[0].mxu0 %v1320
      %v1405 = vpop.f32.mrb[0].mxu0
      %v1406 = vadd.f32 0.0, %v1405
      %v1407 = vpop.f32.mrb[0].mxu0
      %v1408 = vpop.f32.mrb[0].mxu0
      %v1409 = vadd.f32 0.0, %v1408
      %v1410 = vpop.f32.mrb[0].mxu0
      %1411 = vmatprep.mubr.bf16.mxu0 0
      %1412 = vmatmul.mubr.bf16.gmra.mrb[0].mxu0 %v1323
      %v1413 = vpop.f32.mrb[0].mxu0
      %v1414 = vadd.f32 0.0, %v1413
      %v1415 = vpop.f32.mrb[0].mxu0
      %v1416 = vpop.f32.mrb[0].mxu0
      %v1417 = vadd.f32 0.0, %v1416
      %v1418 = vpop.f32.mrb[0].mxu0
      %1419 = vmatprep.mubr.bf16.mxu0 0
      %1420 = vmatmul.mubr.bf16.gmra.mrb[0].mxu0 %v1326
      %v1421 = vpop.f32.mrb[0].mxu0
      %v1422 = vadd.f32 0.0, %v1421
      %v1423 = vpop.f32.mrb[0].mxu0
      %v1424 = vpop.f32.mrb[0].mxu0
      %v1425 = vadd.f32 0.0, %v1424
      %v1426 = vpop.f32.mrb[0].mxu0
      %1427 = vdwg.mxu0
      %v1428 = vadd.f32 %v1262, %v1366
      %v1429 = vadd.f32 %v1263, %v1369
      %v1430 = vadd.f32 %v1264, %v1374
      %v1431 = vadd.f32 %v1265, %v1377
      %v1432 = vadd.f32 %v1266, %v1382
      %v1433 = vadd.f32 %v1267, %v1385
      %v1434 = vadd.f32 %v1268, %v1390
      %v1435 = vadd.f32 %v1269, %v1393
      %v1436 = vadd.f32 %v1270, %v1398
      %v1437 = vadd.f32 %v1271, %v1401
      %v1438 = vadd.f32 %v1272, %v1406
      %v1439 = vadd.f32 %v1273, %v1409
      %v1440 = vadd.f32 %v1274, %v1414
      %v1441 = vadd.f32 %v1275, %v1417
      %v1442 = vadd.f32 %v1276, %v1422
      %v1443 = vadd.f32 %v1277, %v1425
      %v1444 = vld [vmem:[%s602 + $0x2] sm:$0xff]
      %v1445 = vld [vmem:[%s602 + $0xa] sm:$0xff]
      %v1446 = vld [vmem:[%s602 + $0x1a] sm:$0xff]
      %v1447 = vld [vmem:[%s602 + $0x22] sm:$0xff]
      %v1448 = vld [vmem:[%s602 + $0x32] sm:$0xff]
      %v1449 = vld [vmem:[%s602 + $0x3a] sm:$0xff]
      %v1450 = vld [vmem:[%s602 + $0x4a] sm:$0xff]
      %v1451 = vld [vmem:[%s602 + $0x52] sm:$0xff]
      %v1452 = vld [vmem:[%s602 + $0x62] sm:$0xff]
      %v1453 = vld [vmem:[%s602 + $0x6a] sm:$0xff]
      %v1454 = vld [vmem:[%s602 + $0x7a] sm:$0xff]
      %v1455 = vld [vmem:[%s602 + $0x82] sm:$0xff]
      %v1456 = vld [vmem:[%s602 + $0x92] sm:$0xff]
      %v1457 = vld [vmem:[%s602 + $0x9a] sm:$0xff]
      %v1458 = vld [vmem:[%s602 + $0xaa] sm:$0xff]
      %v1459 = vld [vmem:[%s602 + $0xb2] sm:$0xff]
      %v1460 = vpack.c.bf16 %v1445, %v1444
      %v1461 = vpack.c.bf16 %v1447, %v1446
      %v1462 = vpack.c.bf16 %v1449, %v1448
      %v1463 = vpack.c.bf16 %v1451, %v1450
      %v1464 = vpack.c.bf16 %v1453, %v1452
      %v1465 = vpack.c.bf16 %v1455, %v1454
      %v1466 = vpack.c.bf16 %v1457, %v1456
      %v1467 = vpack.c.bf16 %v1459, %v1458
      %s1468 = scalar_lea.vmem %s3, 20
      %v1469 = vld [vmem:[%s1468] sm:$0xf]
      %v1471 = vsel %vm603, %v1460, 0
      %v1474 = vsel %vm603, %v1461, 0
      %v1477 = vsel %vm603, %v1462, 0
      %v1480 = vsel %vm603, %v1463, 0
      %v1483 = vsel %vm603, %v1464, 0
      %v1486 = vsel %vm603, %v1465, 0
      %v1489 = vsel %vm603, %v1466, 0
      %v1492 = vsel %vm603, %v1467, 0
      %v1495 = vsel %vm721, %v1469, 0
      %1497 = vmatprep.subr.bf16.mxu0 0
      %1498 = vmatpush1.bf16.msra.mxu0 %v1495
      %1499 = vmatprep.subr.bf16.mxu0 0
      %1500 = vmatpush1.bf16.msra.mxu0 0
      %1501 = vmatprep.subr.bf16.mxu0 0
      %1502 = vmatpush1.bf16.msra.mxu0 0
      %1503 = vmatprep.subr.bf16.mxu0 0
      %1504 = vmatpush1.bf16.msra.mxu0 0
      %1505 = vmatprep.subr.bf16.mxu0 0
      %1506 = vmatpush1.bf16.msra.mxu0 0
      %1507 = vmatprep.subr.bf16.mxu0 0
      %1508 = vmatpush1.bf16.msra.mxu0 0
      %1509 = vmatprep.subr.bf16.mxu0 0
      %1510 = vmatpush1.bf16.msra.mxu0 0
      %1511 = vmatprep.subr.bf16.mxu0 0
      %1512 = vmatpush1.bf16.msra.mxu0 0
      %1513 = vmatprep.subr.bf16.mxu0 0
      %1514 = vmatpush1.bf16.msra.mxu0 0
      %1515 = vmatprep.subr.bf16.mxu0 0
      %1516 = vmatpush1.bf16.msra.mxu0 0
      %1517 = vmatprep.subr.bf16.mxu0 0
      %1518 = vmatpush1.bf16.msra.mxu0 0
      %1519 = vmatprep.subr.bf16.mxu0 0
      %1520 = vmatpush1.bf16.msra.mxu0 0
      %1521 = vmatprep.subr.bf16.mxu0 0
      %1522 = vmatpush1.bf16.msra.mxu0 0
      %1523 = vmatprep.subr.bf16.mxu0 0
      %1524 = vmatpush1.bf16.msra.mxu0 0
      %1525 = vmatprep.subr.bf16.mxu0 0
      %1526 = vmatpush1.bf16.msra.mxu0 0
      %1527 = vmatprep.subr.bf16.mxu0 0
      %1528 = vmatpush1.bf16.msra.mxu0 0
      %1529 = vmatprep.mubr.bf16.mxu0 0
      %1530 = vmatmul.mubr.bf16.gmra.mrb[0].mxu0 %v1471
      %v1531 = vpop.f32.mrb[0].mxu0
      %v1532 = vadd.f32 0.0, %v1531
      %v1533 = vpop.f32.mrb[0].mxu0
      %v1534 = vpop.f32.mrb[0].mxu0
      %v1535 = vadd.f32 0.0, %v1534
      %v1536 = vpop.f32.mrb[0].mxu0
      %1537 = vmatprep.mubr.bf16.mxu0 0
      %1538 = vmatmul.mubr.bf16.gmra.mrb[0].mxu0 %v1474
      %v1539 = vpop.f32.mrb[0].mxu0
      %v1540 = vadd.f32 0.0, %v1539
      %v1541 = vpop.f32.mrb[0].mxu0
      %v1542 = vpop.f32.mrb[0].mxu0
      %v1543 = vadd.f32 0.0, %v1542
      %v1544 = vpop.f32.mrb[0].mxu0
      %1545 = vmatprep.mubr.bf16.mxu0 0
      %1546 = vmatmul.mubr.bf16.gmra.mrb[0].mxu0 %v1477
      %v1547 = vpop.f32.mrb[0].mxu0
      %v1548 = vadd.f32 0.0, %v1547
      %v1549 = vpop.f32.mrb[0].mxu0
      %v1550 = vpop.f32.mrb[0].mxu0
      %v1551 = vadd.f32 0.0, %v1550
      %v1552 = vpop.f32.mrb[0].mxu0
      %1553 = vmatprep.mubr.bf16.mxu0 0
      %1554 = vmatmul.mubr.bf16.gmra.mrb[0].mxu0 %v1480
      %v1555 = vpop.f32.mrb[0].mxu0
      %v1556 = vadd.f32 0.0, %v1555
      %v1557 = vpop.f32.mrb[0].mxu0
      %v1558 = vpop.f32.mrb[0].mxu0
      %v1559 = vadd.f32 0.0, %v1558
      %v1560 = vpop.f32.mrb[0].mxu0
      %1561 = vmatprep.mubr.bf16.mxu0 0
      %1562 = vmatmul.mubr.bf16.gmra.mrb[0].mxu0 %v1483
      %v1563 = vpop.f32.mrb[0].mxu0
      %v1564 = vadd.f32 0.0, %v1563
      %v1565 = vpop.f32.mrb[0].mxu0
      %v1566 = vpop.f32.mrb[0].mxu0
      %v1567 = vadd.f32 0.0, %v1566
      %v1568 = vpop.f32.mrb[0].mxu0
      %1569 = vmatprep.mubr.bf16.mxu0 0
      %1570 = vmatmul.mubr.bf16.gmra.mrb[0].mxu0 %v1486
      %v1571 = vpop.f32.mrb[0].mxu0
      %v1572 = vadd.f32 0.0, %v1571
      %v1573 = vpop.f32.mrb[0].mxu0
      %v1574 = vpop.f32.mrb[0].mxu0
      %v1575 = vadd.f32 0.0, %v1574
      %v1576 = vpop.f32.mrb[0].mxu0
      %1577 = vmatprep.mubr.bf16.mxu0 0
      %1578 = vmatmul.mubr.bf16.gmra.mrb[0].mxu0 %v1489
      %v1579 = vpop.f32.mrb[0].mxu0
      %v1580 = vadd.f32 0.0, %v1579
      %v1581 = vpop.f32.mrb[0].mxu0
      %v1582 = vpop.f32.mrb[0].mxu0
      %v1583 = vadd.f32 0.0, %v1582
      %v1584 = vpop.f32.mrb[0].mxu0
      %1585 = vmatprep.mubr.bf16.mxu0 0
      %1586 = vmatmul.mubr.bf16.gmra.mrb[0].mxu0 %v1492
      %v1587 = vpop.f32.mrb[0].mxu0
      %v1588 = vadd.f32 0.0, %v1587
      %v1589 = vpop.f32.mrb[0].mxu0
      %v1590 = vpop.f32.mrb[0].mxu0
      %v1591 = vadd.f32 0.0, %v1590
      %v1592 = vpop.f32.mrb[0].mxu0
      %1593 = vdwg.mxu0
      %v1594 = vadd.f32 %v1428, %v1532
      %v1595 = vadd.f32 %v1429, %v1535
      %v1596 = vadd.f32 %v1430, %v1540
      %v1597 = vadd.f32 %v1431, %v1543
      %v1598 = vadd.f32 %v1432, %v1548
      %v1599 = vadd.f32 %v1433, %v1551
      %v1600 = vadd.f32 %v1434, %v1556
      %v1601 = vadd.f32 %v1435, %v1559
      %v1602 = vadd.f32 %v1436, %v1564
      %v1603 = vadd.f32 %v1437, %v1567
      %v1604 = vadd.f32 %v1438, %v1572
      %v1605 = vadd.f32 %v1439, %v1575
      %v1606 = vadd.f32 %v1440, %v1580
      %v1607 = vadd.f32 %v1441, %v1583
      %v1608 = vadd.f32 %v1442, %v1588
      %v1609 = vadd.f32 %v1443, %v1591
      %s1610 = scalar_lea.vmem [#allocation2], 48
      %v1611 = vld [vmem:[%s1610] sm:$0xff]
      %v1612 = vld [vmem:[%s1610 + $0x8] sm:$0xff]
      %v1613 = vld [vmem:[%s1610 + $0x18] sm:$0xff]
      %v1614 = vld [vmem:[%s1610 + $0x20] sm:$0xff]
      %v1615 = vld [vmem:[%s1610 + $0x30] sm:$0xff]
      %v1616 = vld [vmem:[%s1610 + $0x38] sm:$0xff]
      %v1617 = vld [vmem:[%s1610 + $0x48] sm:$0xff]
      %v1618 = vld [vmem:[%s1610 + $0x50] sm:$0xff]
      %v1619 = vld [vmem:[%s1610 + $0x60] sm:$0xff]
      %v1620 = vld [vmem:[%s1610 + $0x68] sm:$0xff]
      %v1621 = vld [vmem:[%s1610 + $0x78] sm:$0xff]
      %v1622 = vld [vmem:[%s1610 + $0x80] sm:$0xff]
      %v1623 = vld [vmem:[%s1610 + $0x90] sm:$0xff]
      %v1624 = vld [vmem:[%s1610 + $0x98] sm:$0xff]
      %v1625 = vld [vmem:[%s1610 + $0xa8] sm:$0xff]
      %v1626 = vld [vmem:[%s1610 + $0xb0] sm:$0xff]
      %v1627 = vpack.c.bf16 %v1612, %v1611
      %v1628 = vpack.c.bf16 %v1614, %v1613
      %v1629 = vpack.c.bf16 %v1616, %v1615
      %v1630 = vpack.c.bf16 %v1618, %v1617
      %v1631 = vpack.c.bf16 %v1620, %v1619
      %v1632 = vpack.c.bf16 %v1622, %v1621
      %v1633 = vpack.c.bf16 %v1624, %v1623
      %v1634 = vpack.c.bf16 %v1626, %v1625
      %s1635 = scalar_lea.vmem %s3, 24
      %v1636 = vld [vmem:[%s1635] sm:$0xf]
      %v1638 = vsel %vm603, %v1627, 0
      %v1641 = vsel %vm603, %v1628, 0
      %v1644 = vsel %vm603, %v1629, 0
      %v1647 = vsel %vm603, %v1630, 0
      %v1650 = vsel %vm603, %v1631, 0
      %v1653 = vsel %vm603, %v1632, 0
      %v1656 = vsel %vm603, %v1633, 0
      %v1659 = vsel %vm603, %v1634, 0
      %v1662 = vsel %vm721, %v1636, 0
      %1664 = vmatprep.subr.bf16.mxu0 0
      %1665 = vmatpush1.bf16.msra.mxu0 %v1662
      %1666 = vmatprep.subr.bf16.mxu0 0
      %1667 = vmatpush1.bf16.msra.mxu0 0
      %1668 = vmatprep.subr.bf16.mxu0 0
      %1669 = vmatpush1.bf16.msra.mxu0 0
      %1670 = vmatprep.subr.bf16.mxu0 0
      %1671 = vmatpush1.bf16.msra.mxu0 0
      %1672 = vmatprep.subr.bf16.mxu0 0
      %1673 = vmatpush1.bf16.msra.mxu0 0
      %1674 = vmatprep.subr.bf16.mxu0 0
      %1675 = vmatpush1.bf16.msra.mxu0 0
      %1676 = vmatprep.subr.bf16.mxu0 0
      %1677 = vmatpush1.bf16.msra.mxu0 0
      %1678 = vmatprep.subr.bf16.mxu0 0
      %1679 = vmatpush1.bf16.msra.mxu0 0
      %1680 = vmatprep.subr.bf16.mxu0 0
      %1681 = vmatpush1.bf16.msra.mxu0 0
      %1682 = vmatprep.subr.bf16.mxu0 0
      %1683 = vmatpush1.bf16.msra.mxu0 0
      %1684 = vmatprep.subr.bf16.mxu0 0
      %1685 = vmatpush1.bf16.msra.mxu0 0
      %1686 = vmatprep.subr.bf16.mxu0 0
      %1687 = vmatpush1.bf16.msra.mxu0 0
      %1688 = vmatprep.subr.bf16.mxu0 0
      %1689 = vmatpush1.bf16.msra.mxu0 0
      %1690 = vmatprep.subr.bf16.mxu0 0
      %1691 = vmatpush1.bf16.msra.mxu0 0
      %1692 = vmatprep.subr.bf16.mxu0 0
      %1693 = vmatpush1.bf16.msra.mxu0 0
      %1694 = vmatprep.subr.bf16.mxu0 0
      %1695 = vmatpush1.bf16.msra.mxu0 0
      %1696 = vmatprep.mubr.bf16.mxu0 0
      %1697 = vmatmul.mubr.bf16.gmra.mrb[0].mxu0 %v1638
      %v1698 = vpop.f32.mrb[0].mxu0
      %v1699 = vadd.f32 0.0, %v1698
      %v1700 = vpop.f32.mrb[0].mxu0
      %v1701 = vpop.f32.mrb[0].mxu0
      %v1702 = vadd.f32 0.0, %v1701
      %v1703 = vpop.f32.mrb[0].mxu0
      %1704 = vmatprep.mubr.bf16.mxu0 0
      %1705 = vmatmul.mubr.bf16.gmra.mrb[0].mxu0 %v1641
      %v1706 = vpop.f32.mrb[0].mxu0
      %v1707 = vadd.f32 0.0, %v1706
      %v1708 = vpop.f32.mrb[0].mxu0
      %v1709 = vpop.f32.mrb[0].mxu0
      %v1710 = vadd.f32 0.0, %v1709
      %v1711 = vpop.f32.mrb[0].mxu0
      %1712 = vmatprep.mubr.bf16.mxu0 0
      %1713 = vmatmul.mubr.bf16.gmra.mrb[0].mxu0 %v1644
      %v1714 = vpop.f32.mrb[0].mxu0
      %v1715 = vadd.f32 0.0, %v1714
      %v1716 = vpop.f32.mrb[0].mxu0
      %v1717 = vpop.f32.mrb[0].mxu0
      %v1718 = vadd.f32 0.0, %v1717
      %v1719 = vpop.f32.mrb[0].mxu0
      %1720 = vmatprep.mubr.bf16.mxu0 0
      %1721 = vmatmul.mubr.bf16.gmra.mrb[0].mxu0 %v1647
      %v1722 = vpop.f32.mrb[0].mxu0
      %v1723 = vadd.f32 0.0, %v1722
      %v1724 = vpop.f32.mrb[0].mxu0
      %v1725 = vpop.f32.mrb[0].mxu0
      %v1726 = vadd.f32 0.0, %v1725
      %v1727 = vpop.f32.mrb[0].mxu0
      %1728 = vmatprep.mubr.bf16.mxu0 0
      %1729 = vmatmul.mubr.bf16.gmra.mrb[0].mxu0 %v1650
      %v1730 = vpop.f32.mrb[0].mxu0
      %v1731 = vadd.f32 0.0, %v1730
      %v1732 = vpop.f32.mrb[0].mxu0
      %v1733 = vpop.f32.mrb[0].mxu0
      %v1734 = vadd.f32 0.0, %v1733
      %v1735 = vpop.f32.mrb[0].mxu0
      %1736 = vmatprep.mubr.bf16.mxu0 0
      %1737 = vmatmul.mubr.bf16.gmra.mrb[0].mxu0 %v1653
      %v1738 = vpop.f32.mrb[0].mxu0
      %v1739 = vadd.f32 0.0, %v1738
      %v1740 = vpop.f32.mrb[0].mxu0
      %v1741 = vpop.f32.mrb[0].mxu0
      %v1742 = vadd.f32 0.0, %v1741
      %v1743 = vpop.f32.mrb[0].mxu0
      %1744 = vmatprep.mubr.bf16.mxu0 0
      %1745 = vmatmul.mubr.bf16.gmra.mrb[0].mxu0 %v1656
      %v1746 = vpop.f32.mrb[0].mxu0
      %v1747 = vadd.f32 0.0, %v1746
      %v1748 = vpop.f32.mrb[0].mxu0
      %v1749 = vpop.f32.mrb[0].mxu0
      %v1750 = vadd.f32 0.0, %v1749
      %v1751 = vpop.f32.mrb[0].mxu0
      %1752 = vmatprep.mubr.bf16.mxu0 0
      %1753 = vmatmul.mubr.bf16.gmra.mrb[0].mxu0 %v1659
      %v1754 = vpop.f32.mrb[0].mxu0
      %v1755 = vadd.f32 0.0, %v1754
      %v1756 = vpop.f32.mrb[0].mxu0
      %v1757 = vpop.f32.mrb[0].mxu0
      %v1758 = vadd.f32 0.0, %v1757
      %v1759 = vpop.f32.mrb[0].mxu0
      %1760 = vdwg.mxu0
      %v1761 = vadd.f32 %v1594, %v1699
      %v1762 = vadd.f32 %v1595, %v1702
      %v1763 = vadd.f32 %v1596, %v1707
      %v1764 = vadd.f32 %v1597, %v1710
      %v1765 = vadd.f32 %v1598, %v1715
      %v1766 = vadd.f32 %v1599, %v1718
      %v1767 = vadd.f32 %v1600, %v1723
      %v1768 = vadd.f32 %v1601, %v1726
      %v1769 = vadd.f32 %v1602, %v1731
      %v1770 = vadd.f32 %v1603, %v1734
      %v1771 = vadd.f32 %v1604, %v1739
      %v1772 = vadd.f32 %v1605, %v1742
      %v1773 = vadd.f32 %v1606, %v1747
      %v1774 = vadd.f32 %v1607, %v1750
      %v1775 = vadd.f32 %v1608, %v1755
      %v1776 = vadd.f32 %v1609, %v1758
      %v1777 = vld [vmem:[%s1610 + $0x1] sm:$0xff]
      %v1778 = vld [vmem:[%s1610 + $0x9] sm:$0xff]
      %v1779 = vld [vmem:[%s1610 + $0x19] sm:$0xff]
      %v1780 = vld [vmem:[%s1610 + $0x21] sm:$0xff]
      %v1781 = vld [vmem:[%s1610 + $0x31] sm:$0xff]
      %v1782 = vld [vmem:[%s1610 + $0x39] sm:$0xff]
      %v1783 = vld [vmem:[%s1610 + $0x49] sm:$0xff]
      %v1784 = vld [vmem:[%s1610 + $0x51] sm:$0xff]
      %v1785 = vld [vmem:[%s1610 + $0x61] sm:$0xff]
      %v1786 = vld [vmem:[%s1610 + $0x69] sm:$0xff]
      %v1787 = vld [vmem:[%s1610 + $0x79] sm:$0xff]
      %v1788 = vld [vmem:[%s1610 + $0x81] sm:$0xff]
      %v1789 = vld [vmem:[%s1610 + $0x91] sm:$0xff]
      %v1790 = vld [vmem:[%s1610 + $0x99] sm:$0xff]
      %v1791 = vld [vmem:[%s1610 + $0xa9] sm:$0xff]
      %v1792 = vld [vmem:[%s1610 + $0xb1] sm:$0xff]
      %v1793 = vpack.c.bf16 %v1778, %v1777
      %v1794 = vpack.c.bf16 %v1780, %v1779
      %v1795 = vpack.c.bf16 %v1782, %v1781
      %v1796 = vpack.c.bf16 %v1784, %v1783
      %v1797 = vpack.c.bf16 %v1786, %v1785
      %v1798 = vpack.c.bf16 %v1788, %v1787
      %v1799 = vpack.c.bf16 %v1790, %v1789
      %v1800 = vpack.c.bf16 %v1792, %v1791
      %s1801 = scalar_lea.vmem %s3, 28
      %v1802 = vld [vmem:[%s1801] sm:$0xf]
      %v1804 = vsel %vm603, %v1793, 0
      %v1807 = vsel %vm603, %v1794, 0
      %v1810 = vsel %vm603, %v1795, 0
      %v1813 = vsel %vm603, %v1796, 0
      %v1816 = vsel %vm603, %v1797, 0
      %v1819 = vsel %vm603, %v1798, 0
      %v1822 = vsel %vm603, %v1799, 0
      %v1825 = vsel %vm603, %v1800, 0
      %v1828 = vsel %vm721, %v1802, 0
      %1830 = vmatprep.subr.bf16.mxu0 0
      %1831 = vmatpush1.bf16.msra.mxu0 %v1828
      %1832 = vmatprep.subr.bf16.mxu0 0
      %1833 = vmatpush1.bf16.msra.mxu0 0
      %1834 = vmatprep.subr.bf16.mxu0 0
      %1835 = vmatpush1.bf16.msra.mxu0 0
      %1836 = vmatprep.subr.bf16.mxu0 0
      %1837 = vmatpush1.bf16.msra.mxu0 0
      %1838 = vmatprep.subr.bf16.mxu0 0
      %1839 = vmatpush1.bf16.msra.mxu0 0
      %1840 = vmatprep.subr.bf16.mxu0 0
      %1841 = vmatpush1.bf16.msra.mxu0 0
      %1842 = vmatprep.subr.bf16.mxu0 0
      %1843 = vmatpush1.bf16.msra.mxu0 0
      %1844 = vmatprep.subr.bf16.mxu0 0
      %1845 = vmatpush1.bf16.msra.mxu0 0
      %1846 = vmatprep.subr.bf16.mxu0 0
      %1847 = vmatpush1.bf16.msra.mxu0 0
      %1848 = vmatprep.subr.bf16.mxu0 0
      %1849 = vmatpush1.bf16.msra.mxu0 0
      %1850 = vmatprep.subr.bf16.mxu0 0
      %1851 = vmatpush1.bf16.msra.mxu0 0
      %1852 = vmatprep.subr.bf16.mxu0 0
      %1853 = vmatpush1.bf16.msra.mxu0 0
      %1854 = vmatprep.subr.bf16.mxu0 0
      %1855 = vmatpush1.bf16.msra.mxu0 0
      %1856 = vmatprep.subr.bf16.mxu0 0
      %1857 = vmatpush1.bf16.msra.mxu0 0
      %1858 = vmatprep.subr.bf16.mxu0 0
      %1859 = vmatpush1.bf16.msra.mxu0 0
      %1860 = vmatprep.subr.bf16.mxu0 0
      %1861 = vmatpush1.bf16.msra.mxu0 0
      %1862 = vmatprep.mubr.bf16.mxu0 0
      %1863 = vmatmul.mubr.bf16.gmra.mrb[0].mxu0 %v1804
      %v1864 = vpop.f32.mrb[0].mxu0
      %v1865 = vadd.f32 0.0, %v1864
      %v1866 = vpop.f32.mrb[0].mxu0
      %v1867 = vpop.f32.mrb[0].mxu0
      %v1868 = vadd.f32 0.0, %v1867
      %v1869 = vpop.f32.mrb[0].mxu0
      %1870 = vmatprep.mubr.bf16.mxu0 0
      %1871 = vmatmul.mubr.bf16.gmra.mrb[0].mxu0 %v1807
      %v1872 = vpop.f32.mrb[0].mxu0
      %v1873 = vadd.f32 0.0, %v1872
      %v1874 = vpop.f32.mrb[0].mxu0
      %v1875 = vpop.f32.mrb[0].mxu0
      %v1876 = vadd.f32 0.0, %v1875
      %v1877 = vpop.f32.mrb[0].mxu0
      %1878 = vmatprep.mubr.bf16.mxu0 0
      %1879 = vmatmul.mubr.bf16.gmra.mrb[0].mxu0 %v1810
      %v1880 = vpop.f32.mrb[0].mxu0
      %v1881 = vadd.f32 0.0, %v1880
      %v1882 = vpop.f32.mrb[0].mxu0
      %v1883 = vpop.f32.mrb[0].mxu0
      %v1884 = vadd.f32 0.0, %v1883
      %v1885 = vpop.f32.mrb[0].mxu0
      %1886 = vmatprep.mubr.bf16.mxu0 0
      %1887 = vmatmul.mubr.bf16.gmra.mrb[0].mxu0 %v1813
      %v1888 = vpop.f32.mrb[0].mxu0
      %v1889 = vadd.f32 0.0, %v1888
      %v1890 = vpop.f32.mrb[0].mxu0
      %v1891 = vpop.f32.mrb[0].mxu0
      %v1892 = vadd.f32 0.0, %v1891
      %v1893 = vpop.f32.mrb[0].mxu0
      %1894 = vmatprep.mubr.bf16.mxu0 0
      %1895 = vmatmul.mubr.bf16.gmra.mrb[0].mxu0 %v1816
      %v1896 = vpop.f32.mrb[0].mxu0
      %v1897 = vadd.f32 0.0, %v1896
      %v1898 = vpop.f32.mrb[0].mxu0
      %v1899 = vpop.f32.mrb[0].mxu0
      %v1900 = vadd.f32 0.0, %v1899
      %v1901 = vpop.f32.mrb[0].mxu0
      %1902 = vmatprep.mubr.bf16.mxu0 0
      %1903 = vmatmul.mubr.bf16.gmra.mrb[0].mxu0 %v1819
      %v1904 = vpop.f32.mrb[0].mxu0
      %v1905 = vadd.f32 0.0, %v1904
      %v1906 = vpop.f32.mrb[0].mxu0
      %v1907 = vpop.f32.mrb[0].mxu0
      %v1908 = vadd.f32 0.0, %v1907
      %v1909 = vpop.f32.mrb[0].mxu0
      %1910 = vmatprep.mubr.bf16.mxu0 0
      %1911 = vmatmul.mubr.bf16.gmra.mrb[0].mxu0 %v1822
      %v1912 = vpop.f32.mrb[0].mxu0
      %v1913 = vadd.f32 0.0, %v1912
      %v1914 = vpop.f32.mrb[0].mxu0
      %v1915 = vpop.f32.mrb[0].mxu0
      %v1916 = vadd.f32 0.0, %v1915
      %v1917 = vpop.f32.mrb[0].mxu0
      %1918 = vmatprep.mubr.bf16.mxu0 0
      %1919 = vmatmul.mubr.bf16.gmra.mrb[0].mxu0 %v1825
      %v1920 = vpop.f32.mrb[0].mxu0
      %v1921 = vadd.f32 0.0, %v1920
      %v1922 = vpop.f32.mrb[0].mxu0
      %v1923 = vpop.f32.mrb[0].mxu0
      %v1924 = vadd.f32 0.0, %v1923
      %v1925 = vpop.f32.mrb[0].mxu0
      %1926 = vdwg.mxu0
      %v1927 = vadd.f32 %v1761, %v1865
      %v1928 = vadd.f32 %v1762, %v1868
      %v1929 = vadd.f32 %v1763, %v1873
      %v1930 = vadd.f32 %v1764, %v1876
      %v1931 = vadd.f32 %v1765, %v1881
      %v1932 = vadd.f32 %v1766, %v1884
      %v1933 = vadd.f32 %v1767, %v1889
      %v1934 = vadd.f32 %v1768, %v1892
      %v1935 = vadd.f32 %v1769, %v1897
      %v1936 = vadd.f32 %v1770, %v1900
      %v1937 = vadd.f32 %v1771, %v1905
      %v1938 = vadd.f32 %v1772, %v1908
      %v1939 = vadd.f32 %v1773, %v1913
      %v1940 = vadd.f32 %v1774, %v1916
      %v1941 = vadd.f32 %v1775, %v1921
      %v1942 = vadd.f32 %v1776, %v1924
      %v1943 = vld [vmem:[%s1610 + $0x2] sm:$0xff]
      %v1944 = vld [vmem:[%s1610 + $0xa] sm:$0xff]
      %v1945 = vld [vmem:[%s1610 + $0x1a] sm:$0xff]
      %v1946 = vld [vmem:[%s1610 + $0x22] sm:$0xff]
      %v1947 = vld [vmem:[%s1610 + $0x32] sm:$0xff]
      %v1948 = vld [vmem:[%s1610 + $0x3a] sm:$0xff]
      %v1949 = vld [vmem:[%s1610 + $0x4a] sm:$0xff]
      %v1950 = vld [vmem:[%s1610 + $0x52] sm:$0xff]
      %v1951 = vld [vmem:[%s1610 + $0x62] sm:$0xff]
      %v1952 = vld [vmem:[%s1610 + $0x6a] sm:$0xff]
      %v1953 = vld [vmem:[%s1610 + $0x7a] sm:$0xff]
      %v1954 = vld [vmem:[%s1610 + $0x82] sm:$0xff]
      %v1955 = vld [vmem:[%s1610 + $0x92] sm:$0xff]
      %v1956 = vld [vmem:[%s1610 + $0x9a] sm:$0xff]
      %v1957 = vld [vmem:[%s1610 + $0xaa] sm:$0xff]
      %v1958 = vld [vmem:[%s1610 + $0xb2] sm:$0xff]
      %v1959 = vpack.c.bf16 %v1944, %v1943
      %v1960 = vpack.c.bf16 %v1946, %v1945
      %v1961 = vpack.c.bf16 %v1948, %v1947
      %v1962 = vpack.c.bf16 %v1950, %v1949
      %v1963 = vpack.c.bf16 %v1952, %v1951
      %v1964 = vpack.c.bf16 %v1954, %v1953
      %v1965 = vpack.c.bf16 %v1956, %v1955
      %v1966 = vpack.c.bf16 %v1958, %v1957
      %s1967 = scalar_lea.vmem %s3, 32
      %v1968 = vld [vmem:[%s1967] sm:$0xf]
      %v1970 = vsel %vm603, %v1959, 0
      %v1973 = vsel %vm603, %v1960, 0
      %v1976 = vsel %vm603, %v1961, 0
      %v1979 = vsel %vm603, %v1962, 0
      %v1982 = vsel %vm603, %v1963, 0
      %v1985 = vsel %vm603, %v1964, 0
      %v1988 = vsel %vm603, %v1965, 0
      %v1991 = vsel %vm603, %v1966, 0
      %v1994 = vsel %vm721, %v1968, 0
      %1996 = vmatprep.subr.bf16.mxu0 0
      %1997 = vmatpush1.bf16.msra.mxu0 %v1994
      %1998 = vmatprep.subr.bf16.mxu0 0
      %1999 = vmatpush1.bf16.msra.mxu0 0
      %2000 = vmatprep.subr.bf16.mxu0 0
      %2001 = vmatpush1.bf16.msra.mxu0 0
      %2002 = vmatprep.subr.bf16.mxu0 0
      %2003 = vmatpush1.bf16.msra.mxu0 0
      %2004 = vmatprep.subr.bf16.mxu0 0
      %2005 = vmatpush1.bf16.msra.mxu0 0
      %2006 = vmatprep.subr.bf16.mxu0 0
      %2007 = vmatpush1.bf16.msra.mxu0 0
      %2008 = vmatprep.subr.bf16.mxu0 0
      %2009 = vmatpush1.bf16.msra.mxu0 0
      %2010 = vmatprep.subr.bf16.mxu0 0
      %2011 = vmatpush1.bf16.msra.mxu0 0
      %2012 = vmatprep.subr.bf16.mxu0 0
      %2013 = vmatpush1.bf16.msra.mxu0 0
      %2014 = vmatprep.subr.bf16.mxu0 0
      %2015 = vmatpush1.bf16.msra.mxu0 0
      %2016 = vmatprep.subr.bf16.mxu0 0
      %2017 = vmatpush1.bf16.msra.mxu0 0
      %2018 = vmatprep.subr.bf16.mxu0 0
      %2019 = vmatpush1.bf16.msra.mxu0 0
      %2020 = vmatprep.subr.bf16.mxu0 0
      %2021 = vmatpush1.bf16.msra.mxu0 0
      %2022 = vmatprep.subr.bf16.mxu0 0
      %2023 = vmatpush1.bf16.msra.mxu0 0
      %2024 = vmatprep.subr.bf16.mxu0 0
      %2025 = vmatpush1.bf16.msra.mxu0 0
      %2026 = vmatprep.subr.bf16.mxu0 0
      %2027 = vmatpush1.bf16.msra.mxu0 0
      %2028 = vmatprep.mubr.bf16.mxu0 0
      %2029 = vmatmul.mubr.bf16.gmra.mrb[0].mxu0 %v1970
      %v2030 = vpop.f32.mrb[0].mxu0
      %v2031 = vadd.f32 0.0, %v2030
      %v2032 = vpop.f32.mrb[0].mxu0
      %v2033 = vpop.f32.mrb[0].mxu0
      %v2034 = vadd.f32 0.0, %v2033
      %v2035 = vpop.f32.mrb[0].mxu0
      %2036 = vmatprep.mubr.bf16.mxu0 0
      %2037 = vmatmul.mubr.bf16.gmra.mrb[0].mxu0 %v1973
      %v2038 = vpop.f32.mrb[0].mxu0
      %v2039 = vadd.f32 0.0, %v2038
      %v2040 = vpop.f32.mrb[0].mxu0
      %v2041 = vpop.f32.mrb[0].mxu0
      %v2042 = vadd.f32 0.0, %v2041
      %v2043 = vpop.f32.mrb[0].mxu0
      %2044 = vmatprep.mubr.bf16.mxu0 0
      %2045 = vmatmul.mubr.bf16.gmra.mrb[0].mxu0 %v1976
      %v2046 = vpop.f32.mrb[0].mxu0
      %v2047 = vadd.f32 0.0, %v2046
      %v2048 = vpop.f32.mrb[0].mxu0
      %v2049 = vpop.f32.mrb[0].mxu0
      %v2050 = vadd.f32 0.0, %v2049
      %v2051 = vpop.f32.mrb[0].mxu0
      %2052 = vmatprep.mubr.bf16.mxu0 0
      %2053 = vmatmul.mubr.bf16.gmra.mrb[0].mxu0 %v1979
      %v2054 = vpop.f32.mrb[0].mxu0
      %v2055 = vadd.f32 0.0, %v2054
      %v2056 = vpop.f32.mrb[0].mxu0
      %v2057 = vpop.f32.mrb[0].mxu0
      %v2058 = vadd.f32 0.0, %v2057
      %v2059 = vpop.f32.mrb[0].mxu0
      %2060 = vmatprep.mubr.bf16.mxu0 0
      %2061 = vmatmul.mubr.bf16.gmra.mrb[0].mxu0 %v1982
      %v2062 = vpop.f32.mrb[0].mxu0
      %v2063 = vadd.f32 0.0, %v2062
      %v2064 = vpop.f32.mrb[0].mxu0
      %v2065 = vpop.f32.mrb[0].mxu0
      %v2066 = vadd.f32 0.0, %v2065
      %v2067 = vpop.f32.mrb[0].mxu0
      %2068 = vmatprep.mubr.bf16.mxu0 0
      %2069 = vmatmul.mubr.bf16.gmra.mrb[0].mxu0 %v1985
      %v2070 = vpop.f32.mrb[0].mxu0
      %v2071 = vadd.f32 0.0, %v2070
      %v2072 = vpop.f32.mrb[0].mxu0
      %v2073 = vpop.f32.mrb[0].mxu0
      %v2074 = vadd.f32 0.0, %v2073
      %v2075 = vpop.f32.mrb[0].mxu0
      %2076 = vmatprep.mubr.bf16.mxu0 0
      %2077 = vmatmul.mubr.bf16.gmra.mrb[0].mxu0 %v1988
      %v2078 = vpop.f32.mrb[0].mxu0
      %v2079 = vadd.f32 0.0, %v2078
      %v2080 = vpop.f32.mrb[0].mxu0
      %v2081 = vpop.f32.mrb[0].mxu0
      %v2082 = vadd.f32 0.0, %v2081
      %v2083 = vpop.f32.mrb[0].mxu0
      %2084 = vmatprep.mubr.bf16.mxu0 0
      %2085 = vmatmul.mubr.bf16.gmra.mrb[0].mxu0 %v1991
      %v2086 = vpop.f32.mrb[0].mxu0
      %v2087 = vadd.f32 0.0, %v2086
      %v2088 = vpop.f32.mrb[0].mxu0
      %v2089 = vpop.f32.mrb[0].mxu0
      %v2090 = vadd.f32 0.0, %v2089
      %v2091 = vpop.f32.mrb[0].mxu0
      %2092 = vdwg.mxu0
      %v2093 = vadd.f32 %v1927, %v2031
      %v2094 = vadd.f32 %v1928, %v2034
      %v2095 = vadd.f32 %v1929, %v2039
      %v2096 = vadd.f32 %v1930, %v2042
      %v2097 = vadd.f32 %v1931, %v2047
      %v2098 = vadd.f32 %v1932, %v2050
      %v2099 = vadd.f32 %v1933, %v2055
      %v2100 = vadd.f32 %v1934, %v2058
      %v2101 = vadd.f32 %v1935, %v2063
      %v2102 = vadd.f32 %v1936, %v2066
      %v2103 = vadd.f32 %v1937, %v2071
      %v2104 = vadd.f32 %v1938, %v2074
      %v2105 = vadd.f32 %v1939, %v2079
      %v2106 = vadd.f32 %v1940, %v2082
      %v2107 = vadd.f32 %v1941, %v2087
      %v2108 = vadd.f32 %v1942, %v2090
      %v2109 = vld [vmem:[%s4] sm:$0x1]
      %v2111 = vlaneseq
      %v2112 = vshrl.u32 %v2111, 7
      %v2113 = vsub.s32 0, %v2112
      %v2114 = vrot.slane %v2109, %v2113
      %v2116 = vadd.f32 %v2093, %v2114
      %v2117 = vadd.f32 %v2094, %v2114
      %v2118 = vadd.f32 %v2095, %v2114
      %v2119 = vadd.f32 %v2096, %v2114
      %v2120 = vadd.f32 %v2097, %v2114
      %v2121 = vadd.f32 %v2098, %v2114
      %v2122 = vadd.f32 %v2099, %v2114
      %v2123 = vadd.f32 %v2100, %v2114
      %v2124 = vadd.f32 %v2101, %v2114
      %v2125 = vadd.f32 %v2102, %v2114
      %v2126 = vadd.f32 %v2103, %v2114
      %v2127 = vadd.f32 %v2104, %v2114
      %v2128 = vadd.f32 %v2105, %v2114
      %v2129 = vadd.f32 %v2106, %v2114
      %v2130 = vadd.f32 %v2107, %v2114
      %v2131 = vadd.f32 %v2108, %v2114
      %2132 = vst.msk [vmem:[%s485] sm:$0xff] %vm603, %v2116
      %2133 = vst.msk [vmem:[%s485 + $0x8] sm:$0xff] %vm603, %v2117
      %2134 = vst.msk [vmem:[%s485 + $0x10] sm:$0xff] %vm603, %v2118
      %2135 = vst.msk [vmem:[%s485 + $0x18] sm:$0xff] %vm603, %v2119
      %2136 = vst.msk [vmem:[%s485 + $0x20] sm:$0xff] %vm603, %v2120
      %2137 = vst.msk [vmem:[%s485 + $0x28] sm:$0xff] %vm603, %v2121
      %2138 = vst.msk [vmem:[%s485 + $0x30] sm:$0xff] %vm603, %v2122
      %2139 = vst.msk [vmem:[%s485 + $0x38] sm:$0xff] %vm603, %v2123
      %2140 = vst.msk [vmem:[%s485 + $0x40] sm:$0xff] %vm603, %v2124
      %2141 = vst.msk [vmem:[%s485 + $0x48] sm:$0xff] %vm603, %v2125
      %2142 = vst.msk [vmem:[%s485 + $0x50] sm:$0xff] %vm603, %v2126
      %2143 = vst.msk [vmem:[%s485 + $0x58] sm:$0xff] %vm603, %v2127
      %2144 = vst.msk [vmem:[%s485 + $0x60] sm:$0xff] %vm603, %v2128
      %2145 = vst.msk [vmem:[%s485 + $0x68] sm:$0xff] %vm603, %v2129
      %2146 = vst.msk [vmem:[%s485 + $0x70] sm:$0xff] %vm603, %v2130
      %2147 = vst.msk [vmem:[%s485 + $0x78] sm:$0xff] %vm603, %v2131
      %v2148 = vsel %vm603, %v2116, 0.0
      %v2149 = vsel %vm603, %v2117, 0.0
      %v2150 = vadd.f32 %v2148, %v2149
      %v2151 = vsel %vm603, %v2118, 0.0
      %v2152 = vadd.f32 %v2150, %v2151
      %v2153 = vsel %vm603, %v2119, 0.0
      %v2154 = vadd.f32 %v2152, %v2153
      %v2155 = vsel %vm603, %v2120, 0.0
      %v2156 = vadd.f32 %v2154, %v2155
      %v2157 = vsel %vm603, %v2121, 0.0
      %v2158 = vadd.f32 %v2156, %v2157
      %v2159 = vsel %vm603, %v2122, 0.0
      %v2160 = vadd.f32 %v2158, %v2159
      %v2161 = vsel %vm603, %v2123, 0.0
      %v2162 = vadd.f32 %v2160, %v2161
      %v2163 = vsel %vm603, %v2124, 0.0
      %v2164 = vadd.f32 %v2162, %v2163
      %v2165 = vsel %vm603, %v2125, 0.0
      %v2166 = vadd.f32 %v2164, %v2165
      %v2167 = vsel %vm603, %v2126, 0.0
      %v2168 = vadd.f32 %v2166, %v2167
      %v2169 = vsel %vm603, %v2127, 0.0
      %v2170 = vadd.f32 %v2168, %v2169
      %v2171 = vsel %vm603, %v2128, 0.0
      %v2172 = vadd.f32 %v2170, %v2171
      %v2173 = vsel %vm603, %v2129, 0.0
      %v2174 = vadd.f32 %v2172, %v2173
      %v2175 = vsel %vm603, %v2130, 0.0
      %v2176 = vadd.f32 %v2174, %v2175
      %v2177 = vsel %vm603, %v2131, 0.0
      %v2178 = vadd.f32 %v2176, %v2177
      %v2179 = vrot.slane %v2178, 4
      %v2180 = vadd.f32 %v2178, %v2179
      %v2181 = vrot.slane %v2180, 2
      %v2182 = vadd.f32 %v2180, %v2181
      %v2183 = vrot.slane %v2182, 1
      %v2184 = vadd.f32 %v2182, %v2183
      %v2185 = vrcp.pop 128.0
      %v2186 = vmul.f32 %v2184, %v2185
      %v2187 = vsub.f32 %v2116, %v2186
      %v2188 = vsub.f32 %v2117, %v2186
      %v2189 = vsub.f32 %v2118, %v2186
      %v2190 = vsub.f32 %v2119, %v2186
      %v2191 = vsub.f32 %v2120, %v2186
      %v2192 = vsub.f32 %v2121, %v2186
      %v2193 = vsub.f32 %v2122, %v2186
      %v2194 = vsub.f32 %v2123, %v2186
      %v2195 = vsub.f32 %v2124, %v2186
      %v2196 = vsub.f32 %v2125, %v2186
      %v2197 = vsub.f32 %v2126, %v2186
      %v2198 = vsub.f32 %v2127, %v2186
      %v2199 = vsub.f32 %v2128, %v2186
      %v2200 = vsub.f32 %v2129, %v2186
      %v2201 = vsub.f32 %v2130, %v2186
      %v2202 = vsub.f32 %v2131, %v2186
      %v2203 = vmul.f32 %v2187, %v2187
      %v2204 = vmul.f32 %v2188, %v2188
      %v2205 = vmul.f32 %v2189, %v2189
      %v2206 = vmul.f32 %v2190, %v2190
      %v2207 = vmul.f32 %v2191, %v2191
      %v2208 = vmul.f32 %v2192, %v2192
      %v2209 = vmul.f32 %v2193, %v2193
      %v2210 = vmul.f32 %v2194, %v2194
      %v2211 = vmul.f32 %v2195, %v2195
      %v2212 = vmul.f32 %v2196, %v2196
      %v2213 = vmul.f32 %v2197, %v2197
      %v2214 = vmul.f32 %v2198, %v2198
      %v2215 = vmul.f32 %v2199, %v2199
      %v2216 = vmul.f32 %v2200, %v2200
      %v2217 = vmul.f32 %v2201, %v2201
      %v2218 = vmul.f32 %v2202, %v2202
      %v2219 = vsel %vm603, %v2203, 0.0
      %v2220 = vsel %vm603, %v2204, 0.0
      %v2221 = vadd.f32 %v2219, %v2220
      %v2222 = vsel %vm603, %v2205, 0.0
      %v2223 = vadd.f32 %v2221, %v2222
      %v2224 = vsel %vm603, %v2206, 0.0
      %v2225 = vadd.f32 %v2223, %v2224
      %v2226 = vsel %vm603, %v2207, 0.0
      %v2227 = vadd.f32 %v2225, %v2226
      %v2228 = vsel %vm603, %v2208, 0.0
      %v2229 = vadd.f32 %v2227, %v2228
      %v2230 = vsel %vm603, %v2209, 0.0
      %v2231 = vadd.f32 %v2229, %v2230
      %v2232 = vsel %vm603, %v2210, 0.0
      %v2233 = vadd.f32 %v2231, %v2232
      %v2234 = vsel %vm603, %v2211, 0.0
      %v2235 = vadd.f32 %v2233, %v2234
      %v2236 = vsel %vm603, %v2212, 0.0
      %v2237 = vadd.f32 %v2235, %v2236
      %v2238 = vsel %vm603, %v2213, 0.0
      %v2239 = vadd.f32 %v2237, %v2238
      %v2240 = vsel %vm603, %v2214, 0.0
      %v2241 = vadd.f32 %v2239, %v2240
      %v2242 = vsel %vm603, %v2215, 0.0
      %v2243 = vadd.f32 %v2241, %v2242
      %v2244 = vsel %vm603, %v2216, 0.0
      %v2245 = vadd.f32 %v2243, %v2244
      %v2246 = vsel %vm603, %v2217, 0.0
      %v2247 = vadd.f32 %v2245, %v2246
      %v2248 = vsel %vm603, %v2218, 0.0
      %v2249 = vadd.f32 %v2247, %v2248
      %v2250 = vrot.slane %v2249, 4
      %v2251 = vadd.f32 %v2249, %v2250
      %v2252 = vrot.slane %v2251, 2
      %v2253 = vadd.f32 %v2251, %v2252
      %v2254 = vrot.slane %v2253, 1
      %v2255 = vadd.f32 %v2253, %v2254
      %vm2256 = vcmask 1040384
      %v2257 = vsel %vm2256, %v2186, %v2255
      %vm2258 = vcmask 58368
      %2259 = vst.msk [vmem:[%s494] sm:$0x3] %vm2258, %v2257
      %s2260 = smul.u32 8, %s25
      %p2261 = scmp.lt.s32.totalorder %s24, 1
      %s2262 = scalar_select %p2261, %s24, 1
      %p2263 = scmp.lt.s32.totalorder %s2260, 15
      %s2264 = scalar_select %p2263, %s2260, 15
      %s2265 = smul.addr %s2264, 2
      %s2266 = smul.addr %s2262, 32
      %s2267 = sadd.s32 %s2265, %s2266
      %s2268 = smul.addr %s2267, 8
      %s2269 = scalar_lea.vmem %s7, %s2268
      %p2270 = scmp.lt.s32.totalorder %s24, 1
      %s2271 = scalar_select %p2270, %s24, 1
      %p2272 = scmp.lt.s32.totalorder %s25, 1
      %s2273 = scalar_select %p2272, %s25, 1
      %s2274 = smul.addr %s2271, 2
      %s2275 = sadd.s32 %s2273, %s2274
      %s2276 = smul.addr %s2275, 2
      %s2277 = scalar_lea.vmem %s8, %s2276
      // Predicated region
      $region49: #{hlayer_forward.4} parent=47 // pred_check
        %p2278 = pneg %p236
      $region50: #{hlayer_forward.4} parent=47 // pred_check_branch
        %2280 = sbr.rel (%p2278) target = $region52
      $region51: #{hlayer_forward.4} parent=47 // pred_region
        %s2281 = smul.u32 8, %s25
      $region52: #{hlayer_forward.4} parent=47 // pred_fallthru
        _
      // Predicated region
      $region53: #{hlayer_forward.4} parent=47 // pred_check
        %p2282 = pneg %p264
      $region54: #{hlayer_forward.4} parent=47 // pred_check_branch
        %2284 = sbr.rel (%p2282) target = $region56
      $region55: #{hlayer_forward.4} parent=47 // pred_region
        _
      $region56: #{hlayer_forward.4} parent=47 // pred_fallthru
        _
    $region48: #{hlayer_forward.4} parent=5 // pred_fallthru
      _
    %p2285 = scmp.le.s32.totalorder 2, %s15
    // Predicated region
    $region57: #{hlayer_forward.4} parent=5 // pred_check
      %p2286 = pneg %p2285
    $region58: #{hlayer_forward.4} parent=5 // pred_check_branch
      %2288 = sbr.rel (%p2286) target = $region60
    $region59: #{hlayer_forward.4} parent=5 // pred_region
      %s2289 = ssub.s32 %s15, 2
      // Predicated region
      $region61: #{hlayer_forward.4} parent=59 // pred_check
        %p2290 = pneg %p242
      $region62: #{hlayer_forward.4} parent=59 // pred_check_branch
        %2292 = sbr.rel (%p2290) target = $region64
      $region63: #{hlayer_forward.4} parent=59 // pred_region
        %s2293 = smul.u32 8, %s27
        %p2294 = scmp.lt.s32.totalorder %s26, 1
        %s2295 = scalar_select %p2294, %s26, 1
        %p2296 = scmp.lt.s32.totalorder %s2293, 15
        %s2297 = scalar_select %p2296, %s2293, 15
        %s2298 = smul.addr %s2297, 2
        %s2299 = smul.addr %s2295, 32
        %s2300 = sadd.s32 %s2298, %s2299
        %s2301 = smul.addr %s2300, 8
        %s2302 = scalar_lea.vmem %s7, %s2301
      $region64: #{hlayer_forward.4} parent=59 // pred_fallthru
        _
      // Predicated region
      $region65: #{hlayer_forward.4} parent=59 // pred_check
        %p2303 = pneg %p270
      $region66: #{hlayer_forward.4} parent=59 // pred_check_branch
        %2305 = sbr.rel (%p2303) target = $region68
      $region67: #{hlayer_forward.4} parent=59 // pred_region
        %p2306 = scmp.lt.s32.totalorder %s26, 1
        %s2307 = scalar_select %p2306, %s26, 1
        %p2308 = scmp.lt.s32.totalorder %s27, 1
        %s2309 = scalar_select %p2308, %s27, 1
        %s2310 = smul.addr %s2307, 2
        %s2311 = sadd.s32 %s2309, %s2310
        %s2312 = smul.addr %s2311, 2
        %s2313 = scalar_lea.vmem %s8, %s2312
      $region68: #{hlayer_forward.4} parent=59 // pred_fallthru
        _
    $region60: #{hlayer_forward.4} parent=5 // pred_fallthru
      _
  $region6: #{hlayer_forward.4} parent=0 // loop_footer
    %s19 = sadd.s32 1, %s15
  $region7: #{hlayer_forward.4} parent=0 // loop_footer_branch
    %14 = sbr.rel target = $region3
  $region8: #{hlayer_forward.4} parent=0 // loop_exit
    _

</llo_original>
